<compile_context>
chip_gen: v5e
topology: v5e:2x2
jax: 0.10.0
libtpu: 0.0.40
codegen_flags: <defaults>
</compile_context>

<pallas_src>
import functools

import jax
import jax.numpy as jnp
from jax.experimental import pallas as pl
from jax.experimental.pallas import tpu as pltpu


def _layernorm(v, g, b, eps=1e-5):
    mu = jnp.mean(v, axis=-1, keepdims=True)
    var = jnp.mean((v - mu) ** 2, axis=-1, keepdims=True)
    return (v - mu) * jax.lax.rsqrt(var + eps) * g + b


def _block_kernel(x_ref,
                  g1_ref, b1_ref,
                  wqkv_ref, bqkv_ref,
                  wo_ref, bo_ref,
                  g2_ref, b2_ref,
                  wfc_ref, bfc_ref, wpr_ref, bpr_ref,
                  out_ref,
                  ctx_ref,
                  *, n_head, compute_dtype):
    nb, seq, d_model = x_ref.shape
    head_dim = d_model // n_head
    rows = nb * seq

    x = x_ref[...].astype(jnp.float32).reshape(rows, d_model)          # (M, D) f32

    # ---- ln_1 + fused QKV projection (one (M,D)@(D,3D) MXU pass; Q-scale folded) ----
    h = _layernorm(x, g1_ref[0, :], b1_ref[0, :]).astype(compute_dtype)
    qkv = jnp.dot(h, wqkv_ref[...], preferred_element_type=jnp.float32) + bqkv_ref[0, :]
    qkv = qkv.astype(compute_dtype).reshape(nb, seq, 3 * d_model)       # cast ONCE
    q = qkv[:, :, :d_model]
    k = qkv[:, :, d_model:2 * d_model]
    v = qkv[:, :, 2 * d_model:]

    # ---- multi-head self-attention, batched over nb.  Per-head context is written to
    #      VMEM scratch at static lane offsets; single full-K out-projection afterwards.
    for hh in range(n_head):
        lo = hh * head_dim
        qs = q[:, :, lo:lo + head_dim]                                  # (nb, L, Dh) bf16
        ks = k[:, :, lo:lo + head_dim]
        vs = v[:, :, lo:lo + head_dim]
        s = jnp.einsum("bld,bmd->blm", qs, ks,
                       preferred_element_type=jnp.float32)              # (nb, L, L) f32
        s = s - jnp.max(s, axis=-1, keepdims=True)
        p = jnp.exp(s)
        # TODO(synk): approx reciprocal -> ~1e-3 rel error per softmax row; switch to an
        # exact divide for accuracy-critical deployments.
        p = p * pl.reciprocal(jnp.sum(p, axis=-1, keepdims=True), approx=True)
        ctx = jnp.einsum("blm,bmd->bld", p.astype(compute_dtype), vs,
                         preferred_element_type=jnp.float32)            # (nb, L, Dh)
        ctx_ref[:, lo:lo + head_dim] = ctx.reshape(rows, head_dim).astype(compute_dtype)

    attn = jnp.dot(ctx_ref[...], wo_ref[...],
                   preferred_element_type=jnp.float32) + bo_ref[0, :]   # full K=D matmul
    x = x + attn                                                        # residual 1

    # ---- ln_2 + MLP (c_fc -> QuickGELU -> c_proj) ----
    h2 = _layernorm(x, g2_ref[0, :], b2_ref[0, :]).astype(compute_dtype)
    ff = jnp.dot(h2, wfc_ref[...], preferred_element_type=jnp.float32) + bfc_ref[0, :]
    ff = ff.astype(compute_dtype)              # largest intermediate -> keep in bf16
    ff = ff * jax.nn.sigmoid(1.702 * ff)       # QuickGELU in compute dtype
    ff = jnp.dot(ff, wpr_ref[...], preferred_element_type=jnp.float32) + bpr_ref[0, :]

    out_ref[...] = (x + ff).reshape(nb, seq, d_model).astype(out_ref.dtype)  # residual 2


def prepare_params(params, *, d_model, n_head, param_dtype=jnp.bfloat16):
    """One-time conversion of PyTorch-convention weights to the kernel layout:
    transposes, Wq|Wk|Wv fusion, Q-scale folding, bf16 cast (hoisted off the fwd path)."""
    d = d_model
    head_dim = d // n_head
    scale = 1.0 / (head_dim ** 0.5)
    f32 = jnp.float32

    w_in = params["in_proj_weight"]            # (3D, D): qkv = x @ w_in.T + b_in
    b_in = params["in_proj_bias"]              # (3D,)

    wq = w_in[:d, :].T * scale                 # scale folded into Q
    wk = w_in[d:2 * d, :].T
    wv = w_in[2 * d:, :].T
    wqkv = jnp.concatenate([wq, wk, wv], axis=1).astype(param_dtype)     # (D, 3D)
    bqkv = jnp.concatenate([b_in[:d] * scale, b_in[d:2 * d], b_in[2 * d:]]
                           ).astype(f32)[None, :]                        # (1, 3D)

    wo = params["out_proj_weight"].T.astype(param_dtype)                 # (D, D)
    bo = params["out_proj_bias"].astype(f32)[None, :]
    wfc = params["c_fc_weight"].T.astype(param_dtype)                    # (D, 4D)
    bfc = params["c_fc_bias"].astype(f32)[None, :]
    wpr = params["c_proj_weight"].T.astype(param_dtype)                  # (4D, D)
    bpr = params["c_proj_bias"].astype(f32)[None, :]

    g1 = params["ln1_gamma"].astype(f32)[None, :]
    b1 = params["ln1_beta"].astype(f32)[None, :]
    g2 = params["ln2_gamma"].astype(f32)[None, :]
    b2 = params["ln2_beta"].astype(f32)[None, :]

    return (g1, b1, wqkv, bqkv, wo, bo, g2, b2, wfc, bfc, wpr, bpr)


@functools.lru_cache(maxsize=None)
def _vmem_budget_bytes():
    """~85% of this generation's VMEM (leaves compiler-scratch/semaphore headroom)."""
    try:
        cap = int(pltpu.get_tpu_info().vmem_capacity_bytes)
    except Exception:
        cap = 64 << 20          # conservative fallback valid on every generation
    return int(cap * 0.85)


def _pick_batch_block(n, seq_len, max_rows, min_grid_steps=2):
    """Largest divisor nb of n with nb*seq_len <= max_rows.  Prefers >= min_grid_steps
    grid steps (so v7x's two TensorCores both get work) and MXU-aligned row counts."""
    cands = [c for c in range(1, n + 1)
             if n % c == 0 and c * seq_len <= max(max_rows, seq_len)]
    if not cands:
        return 1

    def score(c):
        rows = c * seq_len
        return (n // c >= min_grid_steps, rows % 256 == 0, rows % 8 == 0, rows)

    return max(cands, key=score)


def _forward(xb, prepared, *, n_head, nb, weight_buffers):
    N, L, D = xb.shape
    rows = nb * L
    compute_dtype = prepared[2].dtype

    def const_spec(a):
        nd = a.ndim
        kwargs = {}
        if weight_buffers is not None:
            # Grid-invariant weights: single-buffer instead of default double-buffering.
            kwargs["pipeline_mode"] = pl.Buffered(buffer_count=weight_buffers)
        return pl.BlockSpec(a.shape, lambda b, _nd=nd: (0,) * _nd, **kwargs)

    param_bytes = sum(int(a.size) * a.dtype.itemsize for a in prepared)
    weight_copies = weight_buffers if weight_buffers is not None else 2
    block_bytes = rows * D * xb.dtype.itemsize
    # Generous activation slack: f32 residual/qkv/ff temps + bf16 copies + scores + ctx.
    act_bytes = rows * D * 64 + nb * L * L * 8 + rows * D * 2
    budget = _vmem_budget_bytes()
    vmem_limit = int(min(max(weight_copies * param_bytes + 4 * block_bytes + act_bytes,
                             32 << 20), budget))
    # TODO(synk): if param_bytes alone exceeds the budget (very large d_model on v7x),
    # stream the MLP weights (K-tiled inner pipeline) instead of relying on this clamp.

    flops = 24 * N * L * D * D + 4 * N * L * L * D
    transcendentals = n_head * N * L * L + 4 * N * L * D
    bytes_accessed = 2 * N * L * D * 4 + param_bytes

    kernel = functools.partial(_block_kernel, n_head=n_head, compute_dtype=compute_dtype)

    return pl.pallas_call(
        kernel,
        out_shape=jax.ShapeDtypeStruct((N, L, D), xb.dtype),
        grid_spec=pltpu.PrefetchScalarGridSpec(
            num_scalar_prefetch=0,
            grid=(N // nb,),
            in_specs=[pl.BlockSpec((nb, L, D), lambda b: (b, 0, 0))]
                     + [const_spec(a) for a in prepared],
            out_specs=pl.BlockSpec((nb, L, D), lambda b: (b, 0, 0)),
            scratch_shapes=[pltpu.VMEM((rows, D), compute_dtype)]),      # per-head ctx
        compiler_params=pltpu.CompilerParams(
            dimension_semantics=("parallel",),
            vmem_limit_bytes=vmem_limit),
        cost_estimate=pl.CostEstimate(
            flops=int(flops),
            transcendentals=int(transcendentals),
            bytes_accessed=int(bytes_accessed)),
    )(xb, *prepared)


def residual_attention_block_nld(xb, prepared, *, d_model, n_head, batch_block=None):
    """Batch-major entry point: xb is (N, L, D).  Preferred across layers (no transposes)."""
    N, L, D = xb.shape
    assert D == d_model and D % n_head == 0

    budget = _vmem_budget_bytes()
    max_rows = 1024 if budget >= (80 << 20) else 512      # smaller rows budget on v7x
    nb = batch_block or _pick_batch_block(N, L, max_rows=max_rows)
    assert N % nb == 0

    try:
        return _forward(xb, prepared, n_head=n_head, nb=nb, weight_buffers=1)
    except Exception:
        # TODO(synk): pl.Buffered(1) pipeline_mode unavailable on this jax build ->
        # fall back to default double-buffered weight windows.
        return _forward(xb, prepared, n_head=n_head, nb=nb, weight_buffers=None)


def residual_attention_block(x, prepared, *, d_model, n_head, batch_block=None):
    """x: (L, N, D) float32 (PyTorch MultiheadAttention layout).  Returns (L, N, D).

    The two transposes below are a full HBM round-trip of the activations; callers that
    keep activations batch-major should call residual_attention_block_nld directly and
    pay the layout change once per model, not per block."""
    xb = jnp.transpose(x, (1, 0, 2))                                     # (N, L, D)
    out = residual_attention_block_nld(xb, prepared, d_model=d_model,
                                       n_head=n_head, batch_block=batch_block)
    return jnp.transpose(out, (1, 0, 2))


def reference_block(x, params, *, d_model, n_head):
    """Pure-JAX f32 reference mirroring PyTorch semantics."""
    L, N, D = x.shape
    head_dim = d_model // n_head
    scale = 1.0 / (head_dim ** 0.5)

    def ln(v, g, b):
        mu = jnp.mean(v, axis=-1, keepdims=True)
        var = jnp.mean((v - mu) ** 2, axis=-1, keepdims=True)
        return (v - mu) / jnp.sqrt(var + 1e-5) * g + b

    h = ln(x, params["ln1_gamma"], params["ln1_beta"])
    qkv = jnp.einsum("lnd,ed->lne", h, params["in_proj_weight"]) + params["in_proj_bias"]
    q, k, v = jnp.split(qkv, 3, axis=-1)

    def split_heads(t):  # (L, N, D) -> (N, H, L, Dh)
        return t.reshape(L, N, n_head, head_dim).transpose(1, 2, 0, 3)

    qh, kh, vh = split_heads(q) * scale, split_heads(k), split_heads(v)
    s = jnp.einsum("nhld,nhmd->nhlm", qh, kh)
    p = jax.nn.softmax(s, axis=-1)
    a = jnp.einsum("nhlm,nhmd->nhld", p, vh)
    a = a.transpose(2, 0, 1, 3).reshape(L, N, D)
    a = jnp.einsum("lnd,ed->lne", a, params["out_proj_weight"]) + params["out_proj_bias"]
    x = x + a

    h2 = ln(x, params["ln2_gamma"], params["ln2_beta"])
    ff = jnp.einsum("lnd,ed->lne", h2, params["c_fc_weight"]) + params["c_fc_bias"]
    ff = ff * jax.nn.sigmoid(1.702 * ff)
    ff = jnp.einsum("lne,de->lnd", ff, params["c_proj_weight"]) + params["c_proj_bias"]
    return x + ff


def init_params(key, d_model):
    ks = jax.random.split(key, 11)
    s = 0.125
    return {
        "ln1_gamma": 1.0 + 0.1 * jax.random.normal(ks[0], (d_model,), jnp.float32),
        "ln1_beta": 0.1 * jax.random.normal(ks[1], (d_model,), jnp.float32),
        "in_proj_weight": s * jax.random.normal(ks[2], (3 * d_model, d_model), jnp.float32),
        "in_proj_bias": s * jax.random.normal(ks[3], (3 * d_model,), jnp.float32),
        "out_proj_weight": s * jax.random.normal(ks[4], (d_model, d_model), jnp.float32),
        "out_proj_bias": s * jax.random.normal(ks[5], (d_model,), jnp.float32),
        "ln2_gamma": 1.0 + 0.1 * jax.random.normal(ks[6], (d_model,), jnp.float32),
        "ln2_beta": 0.1 * jax.random.normal(ks[7], (d_model,), jnp.float32),
        "c_fc_weight": s * jax.random.normal(ks[8], (4 * d_model, d_model), jnp.float32),
        "c_fc_bias": s * jax.random.normal(ks[9], (4 * d_model,), jnp.float32),
        "c_proj_weight": s * jax.random.normal(ks[10], (d_model, 4 * d_model), jnp.float32),
        "c_proj_bias": jnp.zeros((d_model,), jnp.float32),
    }


if __name__ == "__main__":
    # Small shapes: seq=8, batch=4, d_model=32, n_head=4 (unmasked ViT block).
    L, N, D, H = 8, 4, 32, 4
    key = jax.random.PRNGKey(0)
    kx, kp = jax.random.split(key)
    x = jax.random.normal(kx, (L, N, D), jnp.float32)
    params = init_params(kp, D)

    prepared = prepare_params(params, d_model=D, n_head=H)   # bf16 fused weights
    out = residual_attention_block(x, prepared, d_model=D, n_head=H)
    out = jax.block_until_ready(out)

    ref = reference_block(x, params, d_model=D, n_head=H)
    assert out.shape == (L, N, D)
    # bf16 weights / matmul inputs / QuickGELU (f32 accumulation) + approx reciprocal
    # -> 1e-2-class tolerance vs the f32 reference.
    assert jnp.allclose(out, ref, atol=3e-2, rtol=3e-2), "mismatch vs reference"

    print("KERNEL_OK")
</pallas_src>

<mosaic_0001>
module attributes {stable_mosaic.version = 11 : i64} {
  func.func @_block_kernel(%arg0: i32, %arg1: memref<2x8x32xf32, #tpu.memory_space<vmem>>, %arg2: memref<1x32xf32, #tpu.memory_space<vmem>>, %arg3: memref<1x32xf32, #tpu.memory_space<vmem>>, %arg4: memref<32x96xbf16, #tpu.memory_space<vmem>>, %arg5: memref<1x96xf32, #tpu.memory_space<vmem>>, %arg6: memref<32x32xbf16, #tpu.memory_space<vmem>>, %arg7: memref<1x32xf32, #tpu.memory_space<vmem>>, %arg8: memref<1x32xf32, #tpu.memory_space<vmem>>, %arg9: memref<1x32xf32, #tpu.memory_space<vmem>>, %arg10: memref<32x128xbf16, #tpu.memory_space<vmem>>, %arg11: memref<1x128xf32, #tpu.memory_space<vmem>>, %arg12: memref<128x32xbf16, #tpu.memory_space<vmem>>, %arg13: memref<1x32xf32, #tpu.memory_space<vmem>>, %arg14: memref<2x8x32xf32, #tpu.memory_space<vmem>>, %arg15: memref<16x32xbf16, #tpu.memory_space<vmem>>) attributes {dimension_semantics = [#tpu.dimension_semantics<parallel>], iteration_bounds = array<i64: 2>, scalar_prefetch = 0 : i64, scratch_operands = 1 : i64, tpu.core_type = #tpu.core_type<tc>, window_params = [{transform_indices = @transform_0, window_bounds = array<i64: 2, 8, 32>}, {pipeline_mode = #tpu.pipeline_mode<synchronous>, transform_indices = @transform_1, window_bounds = array<i64: 1, 32>}, {pipeline_mode = #tpu.pipeline_mode<synchronous>, transform_indices = @transform_2, window_bounds = array<i64: 1, 32>}, {pipeline_mode = #tpu.pipeline_mode<synchronous>, transform_indices = @transform_3, window_bounds = array<i64: 32, 96>}, {pipeline_mode = #tpu.pipeline_mode<synchronous>, transform_indices = @transform_4, window_bounds = array<i64: 1, 96>}, {pipeline_mode = #tpu.pipeline_mode<synchronous>, transform_indices = @transform_5, window_bounds = array<i64: 32, 32>}, {pipeline_mode = #tpu.pipeline_mode<synchronous>, transform_indices = @transform_6, window_bounds = array<i64: 1, 32>}, {pipeline_mode = #tpu.pipeline_mode<synchronous>, transform_indices = @transform_7, window_bounds = array<i64: 1, 32>}, {pipeline_mode = #tpu.pipeline_mode<synchronous>, transform_indices = @transform_8, window_bounds = array<i64: 1, 32>}, {pipeline_mode = #tpu.pipeline_mode<synchronous>, transform_indices = @transform_9, window_bounds = array<i64: 32, 128>}, {pipeline_mode = #tpu.pipeline_mode<synchronous>, transform_indices = @transform_10, window_bounds = array<i64: 1, 128>}, {pipeline_mode = #tpu.pipeline_mode<synchronous>, transform_indices = @transform_11, window_bounds = array<i64: 128, 32>}, {pipeline_mode = #tpu.pipeline_mode<synchronous>, transform_indices = @transform_12, window_bounds = array<i64: 1, 32>}, {transform_indices = @transform_13, window_bounds = array<i64: 2, 8, 32>}]} {
    %c0 = arith.constant 0 : index
    %c0_0 = arith.constant 0 : index
    %c0_1 = arith.constant 0 : index
    %0 = vector.load %arg1[%c0, %c0_0, %c0_1] : memref<2x8x32xf32, #tpu.memory_space<vmem>>, vector<2x8x32xf32>
    %1 = vector.shape_cast %0 : vector<2x8x32xf32> to vector<16x32xf32>
    %c0_2 = arith.constant 0 : index
    %c0_3 = arith.constant 0 : index
    %2 = vector.load %arg2[%c0_2, %c0_3] : memref<1x32xf32, #tpu.memory_space<vmem>>, vector<1x32xf32>
    %3 = vector.shape_cast %2 : vector<1x32xf32> to vector<32xf32>
    %c0_4 = arith.constant 0 : index
    %c0_5 = arith.constant 0 : index
    %4 = vector.load %arg3[%c0_4, %c0_5] : memref<1x32xf32, #tpu.memory_space<vmem>>, vector<1x32xf32>
    %5 = vector.shape_cast %4 : vector<1x32xf32> to vector<32xf32>
    %cst = arith.constant dense<0.000000e+00> : vector<16xf32>
    %6 = vector.multi_reduction <add>, %1, %cst [1] : vector<16x32xf32> to vector<16xf32>
    %7 = vector.shape_cast %6 : vector<16xf32> to vector<16x1xf32>
    %cst_6 = arith.constant 3.200000e+01 : f32
    %8 = vector.broadcast %cst_6 : f32 to vector<16x1xf32>
    %9 = arith.divf %7, %8 : vector<16x1xf32>
    %10 = vector.broadcast %9 : vector<16x1xf32> to vector<16x32xf32>
    %11 = arith.subf %1, %10 : vector<16x32xf32>
    %12 = arith.mulf %11, %11 : vector<16x32xf32>
    %cst_7 = arith.constant dense<0.000000e+00> : vector<16xf32>
    %13 = vector.multi_reduction <add>, %12, %cst_7 [1] : vector<16x32xf32> to vector<16xf32>
    %14 = vector.shape_cast %13 : vector<16xf32> to vector<16x1xf32>
    %cst_8 = arith.constant 3.200000e+01 : f32
    %15 = vector.broadcast %cst_8 : f32 to vector<16x1xf32>
    %16 = arith.divf %14, %15 : vector<16x1xf32>
    %17 = vector.broadcast %9 : vector<16x1xf32> to vector<16x32xf32>
    %18 = arith.subf %1, %17 : vector<16x32xf32>
    %cst_9 = arith.constant 9.99999974E-6 : f32
    %19 = vector.broadcast %cst_9 : f32 to vector<16x1xf32>
    %20 = arith.addf %16, %19 : vector<16x1xf32>
    %21 = math.rsqrt %20 : vector<16x1xf32>
    %22 = vector.broadcast %21 : vector<16x1xf32> to vector<16x32xf32>
    %23 = arith.mulf %18, %22 : vector<16x32xf32>
    %24 = vector.shape_cast %3 : vector<32xf32> to vector<1x32xf32>
    %25 = vector.broadcast %24 : vector<1x32xf32> to vector<16x32xf32>
    %26 = arith.mulf %23, %25 : vector<16x32xf32>
    %27 = vector.shape_cast %5 : vector<32xf32> to vector<1x32xf32>
    %28 = vector.broadcast %27 : vector<1x32xf32> to vector<16x32xf32>
    %29 = arith.addf %26, %28 : vector<16x32xf32>
    %30 = arith.truncf %29 : vector<16x32xf32> to vector<16x32xbf16>
    %c0_10 = arith.constant 0 : index
    %c0_11 = arith.constant 0 : index
    %31 = vector.load %arg4[%c0_10, %c0_11] : memref<32x96xbf16, #tpu.memory_space<vmem>>, vector<32x96xbf16>
    %cst_12 = arith.constant dense<0.000000e+00> : vector<16x96xf32>
    %32 = tpu.matmul %30, %31, %cst_12 {dimension_numbers = #tpu.dot_dimension_numbers<[1], [0], [0], [1], [0, 0, 1, 1], [], []>} : vector<16x32xbf16>, vector<32x96xbf16>, vector<16x96xf32> -> vector<16x96xf32>
    %c0_13 = arith.constant 0 : index
    %c0_14 = arith.constant 0 : index
    %33 = vector.load %arg5[%c0_13, %c0_14] : memref<1x96xf32, #tpu.memory_space<vmem>>, vector<1x96xf32>
    %34 = vector.shape_cast %33 : vector<1x96xf32> to vector<96xf32>
    %35 = vector.shape_cast %34 : vector<96xf32> to vector<1x96xf32>
    %36 = vector.broadcast %35 : vector<1x96xf32> to vector<16x96xf32>
    %37 = arith.addf %32, %36 : vector<16x96xf32>
    %38 = arith.truncf %37 : vector<16x96xf32> to vector<16x96xbf16>
    %39 = vector.shape_cast %38 : vector<16x96xbf16> to vector<2x8x96xbf16>
    %40 = vector.extract_strided_slice %39 {offsets = [0, 0, 0], sizes = [2, 8, 32], strides = [1, 1, 1]} : vector<2x8x96xbf16> to vector<2x8x32xbf16>
    %41 = vector.extract_strided_slice %39 {offsets = [0, 0, 32], sizes = [2, 8, 32], strides = [1, 1, 1]} : vector<2x8x96xbf16> to vector<2x8x32xbf16>
    %42 = vector.extract_strided_slice %39 {offsets = [0, 0, 64], sizes = [2, 8, 32], strides = [1, 1, 1]} : vector<2x8x96xbf16> to vector<2x8x32xbf16>
    %43 = vector.extract_strided_slice %40 {offsets = [0, 0, 0], sizes = [2, 8, 8], strides = [1, 1, 1]} : vector<2x8x32xbf16> to vector<2x8x8xbf16>
    %44 = vector.extract_strided_slice %41 {offsets = [0, 0, 0], sizes = [2, 8, 8], strides = [1, 1, 1]} : vector<2x8x32xbf16> to vector<2x8x8xbf16>
    %45 = vector.extract_strided_slice %42 {offsets = [0, 0, 0], sizes = [2, 8, 8], strides = [1, 1, 1]} : vector<2x8x32xbf16> to vector<2x8x8xbf16>
    "tpu.trace_start"() <{level = 10 : i32, message = "bld,bmd->blm"}> : () -> ()
    %cst_15 = arith.constant dense<0.000000e+00> : vector<2x8x8xf32>
    %46 = tpu.matmul %43, %44, %cst_15 {dimension_numbers = #tpu.dot_dimension_numbers<[2], [2], [1], [1], [0, 0, 0, 1, 1, 1], [0], [0]>} : vector<2x8x8xbf16>, vector<2x8x8xbf16>, vector<2x8x8xf32> -> vector<2x8x8xf32>
    "tpu.trace_stop"() : () -> ()
    %cst_16 = arith.constant dense<0xFF800000> : vector<2x8xf32>
    %47 = vector.multi_reduction <maximumf>, %46, %cst_16 [2] : vector<2x8x8xf32> to vector<2x8xf32>
    %48 = vector.shape_cast %47 : vector<2x8xf32> to vector<2x8x1xf32>
    %49 = vector.broadcast %48 : vector<2x8x1xf32> to vector<2x8x8xf32>
    %50 = arith.subf %46, %49 : vector<2x8x8xf32>
    %51 = math.exp %50 : vector<2x8x8xf32>
    %cst_17 = arith.constant dense<0.000000e+00> : vector<2x8xf32>
    %52 = vector.multi_reduction <add>, %51, %cst_17 [2] : vector<2x8x8xf32> to vector<2x8xf32>
    %53 = vector.shape_cast %52 : vector<2x8xf32> to vector<2x8x1xf32>
    %54 = tpu.reciprocal %53 {approx = true} : vector<2x8x1xf32> -> vector<2x8x1xf32>
    %55 = vector.broadcast %54 : vector<2x8x1xf32> to vector<2x8x8xf32>
    %56 = arith.mulf %51, %55 : vector<2x8x8xf32>
    %57 = arith.truncf %56 : vector<2x8x8xf32> to vector<2x8x8xbf16>
    "tpu.trace_start"() <{level = 10 : i32, message = "blm,bmd->bld"}> : () -> ()
    %cst_18 = arith.constant dense<0.000000e+00> : vector<2x8x8xf32>
    %58 = tpu.matmul %57, %45, %cst_18 {dimension_numbers = #tpu.dot_dimension_numbers<[2], [1], [1], [2], [0, 0, 0, 1, 1, 2], [0], [0]>} : vector<2x8x8xbf16>, vector<2x8x8xbf16>, vector<2x8x8xf32> -> vector<2x8x8xf32>
    "tpu.trace_stop"() : () -> ()
    %59 = vector.shape_cast %58 : vector<2x8x8xf32> to vector<16x8xf32>
    %60 = arith.truncf %59 : vector<16x8xf32> to vector<16x8xbf16>
    %c0_19 = arith.constant 0 : index
    %c0_20 = arith.constant 0 : index
    %61 = vector.load %arg15[%c0_19, %c0_20] : memref<16x32xbf16, #tpu.memory_space<vmem>>, vector<16x8xbf16>
    tpu.vector_store %arg15[%c0_19, %c0_20], %60 {strides = array<i32>} : memref<16x32xbf16, #tpu.memory_space<vmem>>, vector<16x8xbf16>,
    %62 = vector.extract_strided_slice %40 {offsets = [0, 0, 8], sizes = [2, 8, 8], strides = [1, 1, 1]} : vector<2x8x32xbf16> to vector<2x8x8xbf16>
    %63 = vector.extract_strided_slice %41 {offsets = [0, 0, 8], sizes = [2, 8, 8], strides = [1, 1, 1]} : vector<2x8x32xbf16> to vector<2x8x8xbf16>
    %64 = vector.extract_strided_slice %42 {offsets = [0, 0, 8], sizes = [2, 8, 8], strides = [1, 1, 1]} : vector<2x8x32xbf16> to vector<2x8x8xbf16>
    "tpu.trace_start"() <{level = 10 : i32, message = "bld,bmd->blm"}> : () -> ()
    %cst_21 = arith.constant dense<0.000000e+00> : vector<2x8x8xf32>
    %65 = tpu.matmul %62, %63, %cst_21 {dimension_numbers = #tpu.dot_dimension_numbers<[2], [2], [1], [1], [0, 0, 0, 1, 1, 1], [0], [0]>} : vector<2x8x8xbf16>, vector<2x8x8xbf16>, vector<2x8x8xf32> -> vector<2x8x8xf32>
    "tpu.trace_stop"() : () -> ()
    %cst_22 = arith.constant dense<0xFF800000> : vector<2x8xf32>
    %66 = vector.multi_reduction <maximumf>, %65, %cst_22 [2] : vector<2x8x8xf32> to vector<2x8xf32>
    %67 = vector.shape_cast %66 : vector<2x8xf32> to vector<2x8x1xf32>
    %68 = vector.broadcast %67 : vector<2x8x1xf32> to vector<2x8x8xf32>
    %69 = arith.subf %65, %68 : vector<2x8x8xf32>
    %70 = math.exp %69 : vector<2x8x8xf32>
    %cst_23 = arith.constant dense<0.000000e+00> : vector<2x8xf32>
    %71 = vector.multi_reduction <add>, %70, %cst_23 [2] : vector<2x8x8xf32> to vector<2x8xf32>
    %72 = vector.shape_cast %71 : vector<2x8xf32> to vector<2x8x1xf32>
    %73 = tpu.reciprocal %72 {approx = true} : vector<2x8x1xf32> -> vector<2x8x1xf32>
    %74 = vector.broadcast %73 : vector<2x8x1xf32> to vector<2x8x8xf32>
    %75 = arith.mulf %70, %74 : vector<2x8x8xf32>
    %76 = arith.truncf %75 : vector<2x8x8xf32> to vector<2x8x8xbf16>
    "tpu.trace_start"() <{level = 10 : i32, message = "blm,bmd->bld"}> : () -> ()
    %cst_24 = arith.constant dense<0.000000e+00> : vector<2x8x8xf32>
    %77 = tpu.matmul %76, %64, %cst_24 {dimension_numbers = #tpu.dot_dimension_numbers<[2], [1], [1], [2], [0, 0, 0, 1, 1, 2], [0], [0]>} : vector<2x8x8xbf16>, vector<2x8x8xbf16>, vector<2x8x8xf32> -> vector<2x8x8xf32>
    "tpu.trace_stop"() : () -> ()
    %78 = vector.shape_cast %77 : vector<2x8x8xf32> to vector<16x8xf32>
    %79 = arith.truncf %78 : vector<16x8xf32> to vector<16x8xbf16>
    %c0_25 = arith.constant 0 : index
    %c8 = arith.constant 8 : index
    %80 = vector.load %arg15[%c0_25, %c8] : memref<16x32xbf16, #tpu.memory_space<vmem>>, vector<16x8xbf16>
    tpu.vector_store %arg15[%c0_25, %c8], %79 {strides = array<i32>} : memref<16x32xbf16, #tpu.memory_space<vmem>>, vector<16x8xbf16>,
    %81 = vector.extract_strided_slice %40 {offsets = [0, 0, 16], sizes = [2, 8, 8], strides = [1, 1, 1]} : vector<2x8x32xbf16> to vector<2x8x8xbf16>
    %82 = vector.extract_strided_slice %41 {offsets = [0, 0, 16], sizes = [2, 8, 8], strides = [1, 1, 1]} : vector<2x8x32xbf16> to vector<2x8x8xbf16>
    %83 = vector.extract_strided_slice %42 {offsets = [0, 0, 16], sizes = [2, 8, 8], strides = [1, 1, 1]} : vector<2x8x32xbf16> to vector<2x8x8xbf16>
    "tpu.trace_start"() <{level = 10 : i32, message = "bld,bmd->blm"}> : () -> ()
    %cst_26 = arith.constant dense<0.000000e+00> : vector<2x8x8xf32>
    %84 = tpu.matmul %81, %82, %cst_26 {dimension_numbers = #tpu.dot_dimension_numbers<[2], [2], [1], [1], [0, 0, 0, 1, 1, 1], [0], [0]>} : vector<2x8x8xbf16>, vector<2x8x8xbf16>, vector<2x8x8xf32> -> vector<2x8x8xf32>
    "tpu.trace_stop"() : () -> ()
    %cst_27 = arith.constant dense<0xFF800000> : vector<2x8xf32>
    %85 = vector.multi_reduction <maximumf>, %84, %cst_27 [2] : vector<2x8x8xf32> to vector<2x8xf32>
    %86 = vector.shape_cast %85 : vector<2x8xf32> to vector<2x8x1xf32>
    %87 = vector.broadcast %86 : vector<2x8x1xf32> to vector<2x8x8xf32>
    %88 = arith.subf %84, %87 : vector<2x8x8xf32>
    %89 = math.exp %88 : vector<2x8x8xf32>
    %cst_28 = arith.constant dense<0.000000e+00> : vector<2x8xf32>
    %90 = vector.multi_reduction <add>, %89, %cst_28 [2] : vector<2x8x8xf32> to vector<2x8xf32>
    %91 = vector.shape_cast %90 : vector<2x8xf32> to vector<2x8x1xf32>
    %92 = tpu.reciprocal %91 {approx = true} : vector<2x8x1xf32> -> vector<2x8x1xf32>
    %93 = vector.broadcast %92 : vector<2x8x1xf32> to vector<2x8x8xf32>
    %94 = arith.mulf %89, %93 : vector<2x8x8xf32>
    %95 = arith.truncf %94 : vector<2x8x8xf32> to vector<2x8x8xbf16>
    "tpu.trace_start"() <{level = 10 : i32, message = "blm,bmd->bld"}> : () -> ()
    %cst_29 = arith.constant dense<0.000000e+00> : vector<2x8x8xf32>
    %96 = tpu.matmul %95, %83, %cst_29 {dimension_numbers = #tpu.dot_dimension_numbers<[2], [1], [1], [2], [0, 0, 0, 1, 1, 2], [0], [0]>} : vector<2x8x8xbf16>, vector<2x8x8xbf16>, vector<2x8x8xf32> -> vector<2x8x8xf32>
    "tpu.trace_stop"() : () -> ()
    %97 = vector.shape_cast %96 : vector<2x8x8xf32> to vector<16x8xf32>
    %98 = arith.truncf %97 : vector<16x8xf32> to vector<16x8xbf16>
    %c0_30 = arith.constant 0 : index
    %c16 = arith.constant 16 : index
    %99 = vector.load %arg15[%c0_30, %c16] : memref<16x32xbf16, #tpu.memory_space<vmem>>, vector<16x8xbf16>
    tpu.vector_store %arg15[%c0_30, %c16], %98 {strides = array<i32>} : memref<16x32xbf16, #tpu.memory_space<vmem>>, vector<16x8xbf16>,
    %100 = vector.extract_strided_slice %40 {offsets = [0, 0, 24], sizes = [2, 8, 8], strides = [1, 1, 1]} : vector<2x8x32xbf16> to vector<2x8x8xbf16>
    %101 = vector.extract_strided_slice %41 {offsets = [0, 0, 24], sizes = [2, 8, 8], strides = [1, 1, 1]} : vector<2x8x32xbf16> to vector<2x8x8xbf16>
    %102 = vector.extract_strided_slice %42 {offsets = [0, 0, 24], sizes = [2, 8, 8], strides = [1, 1, 1]} : vector<2x8x32xbf16> to vector<2x8x8xbf16>
    "tpu.trace_start"() <{level = 10 : i32, message = "bld,bmd->blm"}> : () -> ()
    %cst_31 = arith.constant dense<0.000000e+00> : vector<2x8x8xf32>
    %103 = tpu.matmul %100, %101, %cst_31 {dimension_numbers = #tpu.dot_dimension_numbers<[2], [2], [1], [1], [0, 0, 0, 1, 1, 1], [0], [0]>} : vector<2x8x8xbf16>, vector<2x8x8xbf16>, vector<2x8x8xf32> -> vector<2x8x8xf32>
    "tpu.trace_stop"() : () -> ()
    %cst_32 = arith.constant dense<0xFF800000> : vector<2x8xf32>
    %104 = vector.multi_reduction <maximumf>, %103, %cst_32 [2] : vector<2x8x8xf32> to vector<2x8xf32>
    %105 = vector.shape_cast %104 : vector<2x8xf32> to vector<2x8x1xf32>
    %106 = vector.broadcast %105 : vector<2x8x1xf32> to vector<2x8x8xf32>
    %107 = arith.subf %103, %106 : vector<2x8x8xf32>
    %108 = math.exp %107 : vector<2x8x8xf32>
    %cst_33 = arith.constant dense<0.000000e+00> : vector<2x8xf32>
    %109 = vector.multi_reduction <add>, %108, %cst_33 [2] : vector<2x8x8xf32> to vector<2x8xf32>
    %110 = vector.shape_cast %109 : vector<2x8xf32> to vector<2x8x1xf32>
    %111 = tpu.reciprocal %110 {approx = true} : vector<2x8x1xf32> -> vector<2x8x1xf32>
    %112 = vector.broadcast %111 : vector<2x8x1xf32> to vector<2x8x8xf32>
    %113 = arith.mulf %108, %112 : vector<2x8x8xf32>
    %114 = arith.truncf %113 : vector<2x8x8xf32> to vector<2x8x8xbf16>
    "tpu.trace_start"() <{level = 10 : i32, message = "blm,bmd->bld"}> : () -> ()
    %cst_34 = arith.constant dense<0.000000e+00> : vector<2x8x8xf32>
    %115 = tpu.matmul %114, %102, %cst_34 {dimension_numbers = #tpu.dot_dimension_numbers<[2], [1], [1], [2], [0, 0, 0, 1, 1, 2], [0], [0]>} : vector<2x8x8xbf16>, vector<2x8x8xbf16>, vector<2x8x8xf32> -> vector<2x8x8xf32>
    "tpu.trace_stop"() : () -> ()
    %116 = vector.shape_cast %115 : vector<2x8x8xf32> to vector<16x8xf32>
    %117 = arith.truncf %116 : vector<16x8xf32> to vector<16x8xbf16>
    %c0_35 = arith.constant 0 : index
    %c24 = arith.constant 24 : index
    %118 = vector.load %arg15[%c0_35, %c24] : memref<16x32xbf16, #tpu.memory_space<vmem>>, vector<16x8xbf16>
    tpu.vector_store %arg15[%c0_35, %c24], %117 {strides = array<i32>} : memref<16x32xbf16, #tpu.memory_space<vmem>>, vector<16x8xbf16>,
    %c0_36 = arith.constant 0 : index
    %c0_37 = arith.constant 0 : index
    %119 = vector.load %arg15[%c0_36, %c0_37] : memref<16x32xbf16, #tpu.memory_space<vmem>>, vector<16x32xbf16>
    %c0_38 = arith.constant 0 : index
    %c0_39 = arith.constant 0 : index
    %120 = vector.load %arg6[%c0_38, %c0_39] : memref<32x32xbf16, #tpu.memory_space<vmem>>, vector<32x32xbf16>
    %cst_40 = arith.constant dense<0.000000e+00> : vector<16x32xf32>
    %121 = tpu.matmul %119, %120, %cst_40 {dimension_numbers = #tpu.dot_dimension_numbers<[1], [0], [0], [1], [0, 0, 1, 1], [], []>} : vector<16x32xbf16>, vector<32x32xbf16>, vector<16x32xf32> -> vector<16x32xf32>
    %c0_41 = arith.constant 0 : index
    %c0_42 = arith.constant 0 : index
    %122 = vector.load %arg7[%c0_41, %c0_42] : memref<1x32xf32, #tpu.memory_space<vmem>>, vector<1x32xf32>
    %123 = vector.shape_cast %122 : vector<1x32xf32> to vector<32xf32>
    %124 = vector.shape_cast %123 : vector<32xf32> to vector<1x32xf32>
    %125 = vector.broadcast %124 : vector<1x32xf32> to vector<16x32xf32>
    %126 = arith.addf %121, %125 : vector<16x32xf32>
    %127 = arith.addf %1, %126 : vector<16x32xf32>
    %c0_43 = arith.constant 0 : index
    %c0_44 = arith.constant 0 : index
    %128 = vector.load %arg8[%c0_43, %c0_44] : memref<1x32xf32, #tpu.memory_space<vmem>>, vector<1x32xf32>
    %129 = vector.shape_cast %128 : vector<1x32xf32> to vector<32xf32>
    %c0_45 = arith.constant 0 : index
    %c0_46 = arith.constant 0 : index
    %130 = vector.load %arg9[%c0_45, %c0_46] : memref<1x32xf32, #tpu.memory_space<vmem>>, vector<1x32xf32>
    %131 = vector.shape_cast %130 : vector<1x32xf32> to vector<32xf32>
    %cst_47 = arith.constant dense<0.000000e+00> : vector<16xf32>
    %132 = vector.multi_reduction <add>, %127, %cst_47 [1] : vector<16x32xf32> to vector<16xf32>
    %133 = vector.shape_cast %132 : vector<16xf32> to vector<16x1xf32>
    %cst_48 = arith.constant 3.200000e+01 : f32
    %134 = vector.broadcast %cst_48 : f32 to vector<16x1xf32>
    %135 = arith.divf %133, %134 : vector<16x1xf32>
    %136 = vector.broadcast %135 : vector<16x1xf32> to vector<16x32xf32>
    %137 = arith.subf %127, %136 : vector<16x32xf32>
    %138 = arith.mulf %137, %137 : vector<16x32xf32>
    %cst_49 = arith.constant dense<0.000000e+00> : vector<16xf32>
    %139 = vector.multi_reduction <add>, %138, %cst_49 [1] : vector<16x32xf32> to vector<16xf32>
    %140 = vector.shape_cast %139 : vector<16xf32> to vector<16x1xf32>
    %cst_50 = arith.constant 3.200000e+01 : f32
    %141 = vector.broadcast %cst_50 : f32 to vector<16x1xf32>
    %142 = arith.divf %140, %141 : vector<16x1xf32>
    %143 = vector.broadcast %135 : vector<16x1xf32> to vector<16x32xf32>
    %144 = arith.subf %127, %143 : vector<16x32xf32>
    %cst_51 = arith.constant 9.99999974E-6 : f32
    %145 = vector.broadcast %cst_51 : f32 to vector<16x1xf32>
    %146 = arith.addf %142, %145 : vector<16x1xf32>
    %147 = math.rsqrt %146 : vector<16x1xf32>
    %148 = vector.broadcast %147 : vector<16x1xf32> to vector<16x32xf32>
    %149 = arith.mulf %144, %148 : vector<16x32xf32>
    %150 = vector.shape_cast %129 : vector<32xf32> to vector<1x32xf32>
    %151 = vector.broadcast %150 : vector<1x32xf32> to vector<16x32xf32>
    %152 = arith.mulf %149, %151 : vector<16x32xf32>
    %153 = vector.shape_cast %131 : vector<32xf32> to vector<1x32xf32>
    %154 = vector.broadcast %153 : vector<1x32xf32> to vector<16x32xf32>
    %155 = arith.addf %152, %154 : vector<16x32xf32>
    %156 = arith.truncf %155 : vector<16x32xf32> to vector<16x32xbf16>
    %c0_52 = arith.constant 0 : index
    %c0_53 = arith.constant 0 : index
    %157 = vector.load %arg10[%c0_52, %c0_53] : memref<32x128xbf16, #tpu.memory_space<vmem>>, vector<32x128xbf16>
    %cst_54 = arith.constant dense<0.000000e+00> : vector<16x128xf32>
    %158 = tpu.matmul %156, %157, %cst_54 {dimension_numbers = #tpu.dot_dimension_numbers<[1], [0], [0], [1], [0, 0, 1, 1], [], []>} : vector<16x32xbf16>, vector<32x128xbf16>, vector<16x128xf32> -> vector<16x128xf32>
    %c0_55 = arith.constant 0 : index
    %c0_56 = arith.constant 0 : index
    %159 = vector.load %arg11[%c0_55, %c0_56] : memref<1x128xf32, #tpu.memory_space<vmem>>, vector<1x128xf32>
    %160 = vector.shape_cast %159 : vector<1x128xf32> to vector<128xf32>
    %161 = vector.shape_cast %160 : vector<128xf32> to vector<1x128xf32>
    %162 = vector.broadcast %161 : vector<1x128xf32> to vector<16x128xf32>
    %163 = arith.addf %158, %162 : vector<16x128xf32>
    %164 = arith.truncf %163 : vector<16x128xf32> to vector<16x128xbf16>
    %cst_57 = arith.constant 1.703130e+00 : bf16
    %165 = vector.broadcast %cst_57 : bf16 to vector<16x128xbf16>
    %166 = arith.mulf %165, %164 : vector<16x128xbf16>
    %167 = arith.negf %166 : vector<16x128xbf16>
    %168 = math.exp %167 : vector<16x128xbf16>
    %cst_58 = arith.constant 1.000000e+00 : bf16
    %169 = vector.broadcast %cst_58 : bf16 to vector<16x128xbf16>
    %170 = arith.addf %169, %168 : vector<16x128xbf16>
    %171 = arith.divf %169, %170 : vector<16x128xbf16>
    %172 = arith.mulf %164, %171 : vector<16x128xbf16>
    %c0_59 = arith.constant 0 : index
    %c0_60 = arith.constant 0 : index
    %173 = vector.load %arg12[%c0_59, %c0_60] : memref<128x32xbf16, #tpu.memory_space<vmem>>, vector<128x32xbf16>
    %cst_61 = arith.constant dense<0.000000e+00> : vector<16x32xf32>
    %174 = tpu.matmul %172, %173, %cst_61 {dimension_numbers = #tpu.dot_dimension_numbers<[1], [0], [0], [1], [0, 0, 1, 1], [], []>} : vector<16x128xbf16>, vector<128x32xbf16>, vector<16x32xf32> -> vector<16x32xf32>
    %c0_62 = arith.constant 0 : index
    %c0_63 = arith.constant 0 : index
    %175 = vector.load %arg13[%c0_62, %c0_63] : memref<1x32xf32, #tpu.memory_space<vmem>>, vector<1x32xf32>
    %176 = vector.shape_cast %175 : vector<1x32xf32> to vector<32xf32>
    %177 = vector.shape_cast %176 : vector<32xf32> to vector<1x32xf32>
    %178 = vector.broadcast %177 : vector<1x32xf32> to vector<16x32xf32>
    %179 = arith.addf %174, %178 : vector<16x32xf32>
    %180 = arith.addf %127, %179 : vector<16x32xf32>
    %181 = vector.shape_cast %180 : vector<16x32xf32> to vector<2x8x32xf32>
    %c0_64 = arith.constant 0 : index
    %c0_65 = arith.constant 0 : index
    %c0_66 = arith.constant 0 : index
    %182 = vector.load %arg14[%c0_64, %c0_65, %c0_66] : memref<2x8x32xf32, #tpu.memory_space<vmem>>, vector<2x8x32xf32>
    tpu.vector_store %arg14[%c0_64, %c0_65, %c0_66], %181 {strides = array<i32>} : memref<2x8x32xf32, #tpu.memory_space<vmem>>, vector<2x8x32xf32>,
    return
  }
  func.func @transform_0(%arg0: i32) -> (i32, i32, i32) {
    %c0_i32 = arith.constant 0 : i32
    %c0_i32_0 = arith.constant 0 : i32
    %c0_i32_1 = arith.constant 0 : i32
    return %arg0, %c0_i32, %c0_i32_0 : i32, i32, i32
  }
  func.func @transform_1(%arg0: i32) -> (i32, i32) {
    %c0_i32 = arith.constant 0 : i32
    %c0_i32_0 = arith.constant 0 : i32
    %c0_i32_1 = arith.constant 0 : i32
    return %c0_i32, %c0_i32_0 : i32, i32
  }
  func.func @transform_2(%arg0: i32) -> (i32, i32) {
    %c0_i32 = arith.constant 0 : i32
    %c0_i32_0 = arith.constant 0 : i32
    %c0_i32_1 = arith.constant 0 : i32
    return %c0_i32, %c0_i32_0 : i32, i32
  }
  func.func @transform_3(%arg0: i32) -> (i32, i32) {
    %c0_i32 = arith.constant 0 : i32
    %c0_i32_0 = arith.constant 0 : i32
    %c0_i32_1 = arith.constant 0 : i32
    return %c0_i32, %c0_i32_0 : i32, i32
  }
  func.func @transform_4(%arg0: i32) -> (i32, i32) {
    %c0_i32 = arith.constant 0 : i32
    %c0_i32_0 = arith.constant 0 : i32
    %c0_i32_1 = arith.constant 0 : i32
    return %c0_i32, %c0_i32_0 : i32, i32
  }
  func.func @transform_5(%arg0: i32) -> (i32, i32) {
    %c0_i32 = arith.constant 0 : i32
    %c0_i32_0 = arith.constant 0 : i32
    %c0_i32_1 = arith.constant 0 : i32
    return %c0_i32, %c0_i32_0 : i32, i32
  }
  func.func @transform_6(%arg0: i32) -> (i32, i32) {
    %c0_i32 = arith.constant 0 : i32
    %c0_i32_0 = arith.constant 0 : i32
    %c0_i32_1 = arith.constant 0 : i32
    return %c0_i32, %c0_i32_0 : i32, i32
  }
  func.func @transform_7(%arg0: i32) -> (i32, i32) {
    %c0_i32 = arith.constant 0 : i32
    %c0_i32_0 = arith.constant 0 : i32
    %c0_i32_1 = arith.constant 0 : i32
    return %c0_i32, %c0_i32_0 : i32, i32
  }
  func.func @transform_8(%arg0: i32) -> (i32, i32) {
    %c0_i32 = arith.constant 0 : i32
    %c0_i32_0 = arith.constant 0 : i32
    %c0_i32_1 = arith.constant 0 : i32
    return %c0_i32, %c0_i32_0 : i32, i32
  }
  func.func @transform_9(%arg0: i32) -> (i32, i32) {
    %c0_i32 = arith.constant 0 : i32
    %c0_i32_0 = arith.constant 0 : i32
    %c0_i32_1 = arith.constant 0 : i32
    return %c0_i32, %c0_i32_0 : i32, i32
  }
  func.func @transform_10(%arg0: i32) -> (i32, i32) {
    %c0_i32 = arith.constant 0 : i32
    %c0_i32_0 = arith.constant 0 : i32
    %c0_i32_1 = arith.constant 0 : i32
    return %c0_i32, %c0_i32_0 : i32, i32
  }
  func.func @transform_11(%arg0: i32) -> (i32, i32) {
    %c0_i32 = arith.constant 0 : i32
    %c0_i32_0 = arith.constant 0 : i32
    %c0_i32_1 = arith.constant 0 : i32
    return %c0_i32, %c0_i32_0 : i32, i32
  }
  func.func @transform_12(%arg0: i32) -> (i32, i32) {
    %c0_i32 = arith.constant 0 : i32
    %c0_i32_0 = arith.constant 0 : i32
    %c0_i32_1 = arith.constant 0 : i32
    return %c0_i32, %c0_i32_0 : i32, i32
  }
  func.func @transform_13(%arg0: i32) -> (i32, i32, i32) {
    %c0_i32 = arith.constant 0 : i32
    %c0_i32_0 = arith.constant 0 : i32
    %c0_i32_1 = arith.constant 0 : i32
    return %arg0, %c0_i32, %c0_i32_0 : i32, i32, i32
  }
}

module attributes {stable_mosaic.version = 11 : i64} {
  func.func @_block_kernel(%arg0: i32, %arg1: memref<2x8x32xf32, #tpu.memory_space<vmem>>, %arg2: memref<1x32xf32, #tpu.memory_space<vmem>>, %arg3: memref<1x32xf32, #tpu.memory_space<vmem>>, %arg4: memref<32x96xbf16, #tpu.memory_space<vmem>>, %arg5: memref<1x96xf32, #tpu.memory_space<vmem>>, %arg6: memref<32x32xbf16, #tpu.memory_space<vmem>>, %arg7: memref<1x32xf32, #tpu.memory_space<vmem>>, %arg8: memref<1x32xf32, #tpu.memory_space<vmem>>, %arg9: memref<1x32xf32, #tpu.memory_space<vmem>>, %arg10: memref<32x128xbf16, #tpu.memory_space<vmem>>, %arg11: memref<1x128xf32, #tpu.memory_space<vmem>>, %arg12: memref<128x32xbf16, #tpu.memory_space<vmem>>, %arg13: memref<1x32xf32, #tpu.memory_space<vmem>>, %arg14: memref<2x8x32xf32, #tpu.memory_space<vmem>>, %arg15: memref<16x32xbf16, #tpu.memory_space<vmem>>) attributes {dimension_semantics = [#tpu.dimension_semantics<parallel>], iteration_bounds = array<i64: 2>, scalar_prefetch = 0 : i64, scratch_operands = 1 : i64, tpu.core_type = #tpu.core_type<tc>, window_params = [{transform_indices = @transform_0, window_bounds = array<i64: 2, 8, 32>}, {pipeline_mode = #tpu.pipeline_mode<synchronous>, transform_indices = @transform_1, window_bounds = array<i64: 1, 32>}, {pipeline_mode = #tpu.pipeline_mode<synchronous>, transform_indices = @transform_2, window_bounds = array<i64: 1, 32>}, {pipeline_mode = #tpu.pipeline_mode<synchronous>, transform_indices = @transform_3, window_bounds = array<i64: 32, 96>}, {pipeline_mode = #tpu.pipeline_mode<synchronous>, transform_indices = @transform_4, window_bounds = array<i64: 1, 96>}, {pipeline_mode = #tpu.pipeline_mode<synchronous>, transform_indices = @transform_5, window_bounds = array<i64: 32, 32>}, {pipeline_mode = #tpu.pipeline_mode<synchronous>, transform_indices = @transform_6, window_bounds = array<i64: 1, 32>}, {pipeline_mode = #tpu.pipeline_mode<synchronous>, transform_indices = @transform_7, window_bounds = array<i64: 1, 32>}, {pipeline_mode = #tpu.pipeline_mode<synchronous>, transform_indices = @transform_8, window_bounds = array<i64: 1, 32>}, {pipeline_mode = #tpu.pipeline_mode<synchronous>, transform_indices = @transform_9, window_bounds = array<i64: 32, 128>}, {pipeline_mode = #tpu.pipeline_mode<synchronous>, transform_indices = @transform_10, window_bounds = array<i64: 1, 128>}, {pipeline_mode = #tpu.pipeline_mode<synchronous>, transform_indices = @transform_11, window_bounds = array<i64: 128, 32>}, {pipeline_mode = #tpu.pipeline_mode<synchronous>, transform_indices = @transform_12, window_bounds = array<i64: 1, 32>}, {transform_indices = @transform_13, window_bounds = array<i64: 2, 8, 32>}]} {
    %c0 = arith.constant 0 : index
    %c0_0 = arith.constant 0 : index
    %c0_1 = arith.constant 0 : index
    %0 = vector.load %arg1[%c0, %c0_0, %c0_1] : memref<2x8x32xf32, #tpu.memory_space<vmem>>, vector<2x8x32xf32>
    %1 = vector.shape_cast %0 : vector<2x8x32xf32> to vector<16x32xf32>
    %c0_2 = arith.constant 0 : index
    %c0_3 = arith.constant 0 : index
    %2 = vector.load %arg2[%c0_2, %c0_3] : memref<1x32xf32, #tpu.memory_space<vmem>>, vector<1x32xf32>
    %3 = vector.shape_cast %2 : vector<1x32xf32> to vector<32xf32>
    %c0_4 = arith.constant 0 : index
    %c0_5 = arith.constant 0 : index
    %4 = vector.load %arg3[%c0_4, %c0_5] : memref<1x32xf32, #tpu.memory_space<vmem>>, vector<1x32xf32>
    %5 = vector.shape_cast %4 : vector<1x32xf32> to vector<32xf32>
    %cst = arith.constant dense<0.000000e+00> : vector<16xf32>
    %6 = vector.multi_reduction <add>, %1, %cst [1] : vector<16x32xf32> to vector<16xf32>
    %7 = vector.shape_cast %6 : vector<16xf32> to vector<16x1xf32>
    %cst_6 = arith.constant 3.200000e+01 : f32
    %8 = vector.broadcast %cst_6 : f32 to vector<16x1xf32>
    %9 = arith.divf %7, %8 : vector<16x1xf32>
    %10 = vector.broadcast %9 : vector<16x1xf32> to vector<16x32xf32>
    %11 = arith.subf %1, %10 : vector<16x32xf32>
    %12 = arith.mulf %11, %11 : vector<16x32xf32>
    %cst_7 = arith.constant dense<0.000000e+00> : vector<16xf32>
    %13 = vector.multi_reduction <add>, %12, %cst_7 [1] : vector<16x32xf32> to vector<16xf32>
    %14 = vector.shape_cast %13 : vector<16xf32> to vector<16x1xf32>
    %cst_8 = arith.constant 3.200000e+01 : f32
    %15 = vector.broadcast %cst_8 : f32 to vector<16x1xf32>
    %16 = arith.divf %14, %15 : vector<16x1xf32>
    %17 = vector.broadcast %9 : vector<16x1xf32> to vector<16x32xf32>
    %18 = arith.subf %1, %17 : vector<16x32xf32>
    %cst_9 = arith.constant 9.99999974E-6 : f32
    %19 = vector.broadcast %cst_9 : f32 to vector<16x1xf32>
    %20 = arith.addf %16, %19 : vector<16x1xf32>
    %21 = math.rsqrt %20 : vector<16x1xf32>
    %22 = vector.broadcast %21 : vector<16x1xf32> to vector<16x32xf32>
    %23 = arith.mulf %18, %22 : vector<16x32xf32>
    %24 = vector.shape_cast %3 : vector<32xf32> to vector<1x32xf32>
    %25 = vector.broadcast %24 : vector<1x32xf32> to vector<16x32xf32>
    %26 = arith.mulf %23, %25 : vector<16x32xf32>
    %27 = vector.shape_cast %5 : vector<32xf32> to vector<1x32xf32>
    %28 = vector.broadcast %27 : vector<1x32xf32> to vector<16x32xf32>
    %29 = arith.addf %26, %28 : vector<16x32xf32>
    %30 = arith.truncf %29 : vector<16x32xf32> to vector<16x32xbf16>
    %c0_10 = arith.constant 0 : index
    %c0_11 = arith.constant 0 : index
    %31 = vector.load %arg4[%c0_10, %c0_11] : memref<32x96xbf16, #tpu.memory_space<vmem>>, vector<32x96xbf16>
    %cst_12 = arith.constant dense<0.000000e+00> : vector<16x96xf32>
    %32 = tpu.matmul %30, %31, %cst_12 {dimension_numbers = #tpu.dot_dimension_numbers<[1], [0], [0], [1], [0, 0, 1, 1], [], []>} : vector<16x32xbf16>, vector<32x96xbf16>, vector<16x96xf32> -> vector<16x96xf32>
    %c0_13 = arith.constant 0 : index
    %c0_14 = arith.constant 0 : index
    %33 = vector.load %arg5[%c0_13, %c0_14] : memref<1x96xf32, #tpu.memory_space<vmem>>, vector<1x96xf32>
    %34 = vector.shape_cast %33 : vector<1x96xf32> to vector<96xf32>
    %35 = vector.shape_cast %34 : vector<96xf32> to vector<1x96xf32>
    %36 = vector.broadcast %35 : vector<1x96xf32> to vector<16x96xf32>
    %37 = arith.addf %32, %36 : vector<16x96xf32>
    %38 = arith.truncf %37 : vector<16x96xf32> to vector<16x96xbf16>
    %39 = vector.shape_cast %38 : vector<16x96xbf16> to vector<2x8x96xbf16>
    %40 = vector.extract_strided_slice %39 {offsets = [0, 0, 0], sizes = [2, 8, 32], strides = [1, 1, 1]} : vector<2x8x96xbf16> to vector<2x8x32xbf16>
    %41 = vector.extract_strided_slice %39 {offsets = [0, 0, 32], sizes = [2, 8, 32], strides = [1, 1, 1]} : vector<2x8x96xbf16> to vector<2x8x32xbf16>
    %42 = vector.extract_strided_slice %39 {offsets = [0, 0, 64], sizes = [2, 8, 32], strides = [1, 1, 1]} : vector<2x8x96xbf16> to vector<2x8x32xbf16>
    %43 = vector.extract_strided_slice %40 {offsets = [0, 0, 0], sizes = [2, 8, 8], strides = [1, 1, 1]} : vector<2x8x32xbf16> to vector<2x8x8xbf16>
    %44 = vector.extract_strided_slice %41 {offsets = [0, 0, 0], sizes = [2, 8, 8], strides = [1, 1, 1]} : vector<2x8x32xbf16> to vector<2x8x8xbf16>
    %45 = vector.extract_strided_slice %42 {offsets = [0, 0, 0], sizes = [2, 8, 8], strides = [1, 1, 1]} : vector<2x8x32xbf16> to vector<2x8x8xbf16>
    "tpu.trace_start"() <{level = 10 : i32, message = "bld,bmd->blm"}> : () -> ()
    %cst_15 = arith.constant dense<0.000000e+00> : vector<2x8x8xf32>
    %46 = tpu.matmul %43, %44, %cst_15 {dimension_numbers = #tpu.dot_dimension_numbers<[2], [2], [1], [1], [0, 0, 0, 1, 1, 1], [0], [0]>} : vector<2x8x8xbf16>, vector<2x8x8xbf16>, vector<2x8x8xf32> -> vector<2x8x8xf32>
    "tpu.trace_stop"() : () -> ()
    %cst_16 = arith.constant dense<0xFF800000> : vector<2x8xf32>
    %47 = vector.multi_reduction <maximumf>, %46, %cst_16 [2] : vector<2x8x8xf32> to vector<2x8xf32>
    %48 = vector.shape_cast %47 : vector<2x8xf32> to vector<2x8x1xf32>
    %49 = vector.broadcast %48 : vector<2x8x1xf32> to vector<2x8x8xf32>
    %50 = arith.subf %46, %49 : vector<2x8x8xf32>
    %51 = math.exp %50 : vector<2x8x8xf32>
    %cst_17 = arith.constant dense<0.000000e+00> : vector<2x8xf32>
    %52 = vector.multi_reduction <add>, %51, %cst_17 [2] : vector<2x8x8xf32> to vector<2x8xf32>
    %53 = vector.shape_cast %52 : vector<2x8xf32> to vector<2x8x1xf32>
    %54 = tpu.reciprocal %53 {approx = true} : vector<2x8x1xf32> -> vector<2x8x1xf32>
    %55 = vector.broadcast %54 : vector<2x8x1xf32> to vector<2x8x8xf32>
    %56 = arith.mulf %51, %55 : vector<2x8x8xf32>
    %57 = arith.truncf %56 : vector<2x8x8xf32> to vector<2x8x8xbf16>
    "tpu.trace_start"() <{level = 10 : i32, message = "blm,bmd->bld"}> : () -> ()
    %cst_18 = arith.constant dense<0.000000e+00> : vector<2x8x8xf32>
    %58 = tpu.matmul %57, %45, %cst_18 {dimension_numbers = #tpu.dot_dimension_numbers<[2], [1], [1], [2], [0, 0, 0, 1, 1, 2], [0], [0]>} : vector<2x8x8xbf16>, vector<2x8x8xbf16>, vector<2x8x8xf32> -> vector<2x8x8xf32>
    "tpu.trace_stop"() : () -> ()
    %59 = vector.shape_cast %58 : vector<2x8x8xf32> to vector<16x8xf32>
    %60 = arith.truncf %59 : vector<16x8xf32> to vector<16x8xbf16>
    %c0_19 = arith.constant 0 : index
    %c0_20 = arith.constant 0 : index
    %61 = vector.load %arg15[%c0_19, %c0_20] : memref<16x32xbf16, #tpu.memory_space<vmem>>, vector<16x8xbf16>
    tpu.vector_store %arg15[%c0_19, %c0_20], %60 {strides = array<i32>} : memref<16x32xbf16, #tpu.memory_space<vmem>>, vector<16x8xbf16>,
    %62 = vector.extract_strided_slice %40 {offsets = [0, 0, 8], sizes = [2, 8, 8], strides = [1, 1, 1]} : vector<2x8x32xbf16> to vector<2x8x8xbf16>
    %63 = vector.extract_strided_slice %41 {offsets = [0, 0, 8], sizes = [2, 8, 8], strides = [1, 1, 1]} : vector<2x8x32xbf16> to vector<2x8x8xbf16>
    %64 = vector.extract_strided_slice %42 {offsets = [0, 0, 8], sizes = [2, 8, 8], strides = [1, 1, 1]} : vector<2x8x32xbf16> to vector<2x8x8xbf16>
    "tpu.trace_start"() <{level = 10 : i32, message = "bld,bmd->blm"}> : () -> ()
    %cst_21 = arith.constant dense<0.000000e+00> : vector<2x8x8xf32>
    %65 = tpu.matmul %62, %63, %cst_21 {dimension_numbers = #tpu.dot_dimension_numbers<[2], [2], [1], [1], [0, 0, 0, 1, 1, 1], [0], [0]>} : vector<2x8x8xbf16>, vector<2x8x8xbf16>, vector<2x8x8xf32> -> vector<2x8x8xf32>
    "tpu.trace_stop"() : () -> ()
    %cst_22 = arith.constant dense<0xFF800000> : vector<2x8xf32>
    %66 = vector.multi_reduction <maximumf>, %65, %cst_22 [2] : vector<2x8x8xf32> to vector<2x8xf32>
    %67 = vector.shape_cast %66 : vector<2x8xf32> to vector<2x8x1xf32>
    %68 = vector.broadcast %67 : vector<2x8x1xf32> to vector<2x8x8xf32>
    %69 = arith.subf %65, %68 : vector<2x8x8xf32>
    %70 = math.exp %69 : vector<2x8x8xf32>
    %cst_23 = arith.constant dense<0.000000e+00> : vector<2x8xf32>
    %71 = vector.multi_reduction <add>, %70, %cst_23 [2] : vector<2x8x8xf32> to vector<2x8xf32>
    %72 = vector.shape_cast %71 : vector<2x8xf32> to vector<2x8x1xf32>
    %73 = tpu.reciprocal %72 {approx = true} : vector<2x8x1xf32> -> vector<2x8x1xf32>
    %74 = vector.broadcast %73 : vector<2x8x1xf32> to vector<2x8x8xf32>
    %75 = arith.mulf %70, %74 : vector<2x8x8xf32>
    %76 = arith.truncf %75 : vector<2x8x8xf32> to vector<2x8x8xbf16>
    "tpu.trace_start"() <{level = 10 : i32, message = "blm,bmd->bld"}> : () -> ()
    %cst_24 = arith.constant dense<0.000000e+00> : vector<2x8x8xf32>
    %77 = tpu.matmul %76, %64, %cst_24 {dimension_numbers = #tpu.dot_dimension_numbers<[2], [1], [1], [2], [0, 0, 0, 1, 1, 2], [0], [0]>} : vector<2x8x8xbf16>, vector<2x8x8xbf16>, vector<2x8x8xf32> -> vector<2x8x8xf32>
    "tpu.trace_stop"() : () -> ()
    %78 = vector.shape_cast %77 : vector<2x8x8xf32> to vector<16x8xf32>
    %79 = arith.truncf %78 : vector<16x8xf32> to vector<16x8xbf16>
    %c0_25 = arith.constant 0 : index
    %c8 = arith.constant 8 : index
    %80 = vector.load %arg15[%c0_25, %c8] : memref<16x32xbf16, #tpu.memory_space<vmem>>, vector<16x8xbf16>
    tpu.vector_store %arg15[%c0_25, %c8], %79 {strides = array<i32>} : memref<16x32xbf16, #tpu.memory_space<vmem>>, vector<16x8xbf16>,
    %81 = vector.extract_strided_slice %40 {offsets = [0, 0, 16], sizes = [2, 8, 8], strides = [1, 1, 1]} : vector<2x8x32xbf16> to vector<2x8x8xbf16>
    %82 = vector.extract_strided_slice %41 {offsets = [0, 0, 16], sizes = [2, 8, 8], strides = [1, 1, 1]} : vector<2x8x32xbf16> to vector<2x8x8xbf16>
    %83 = vector.extract_strided_slice %42 {offsets = [0, 0, 16], sizes = [2, 8, 8], strides = [1, 1, 1]} : vector<2x8x32xbf16> to vector<2x8x8xbf16>
    "tpu.trace_start"() <{level = 10 : i32, message = "bld,bmd->blm"}> : () -> ()
    %cst_26 = arith.constant dense<0.000000e+00> : vector<2x8x8xf32>
    %84 = tpu.matmul %81, %82, %cst_26 {dimension_numbers = #tpu.dot_dimension_numbers<[2], [2], [1], [1], [0, 0, 0, 1, 1, 1], [0], [0]>} : vector<2x8x8xbf16>, vector<2x8x8xbf16>, vector<2x8x8xf32> -> vector<2x8x8xf32>
    "tpu.trace_stop"() : () -> ()
    %cst_27 = arith.constant dense<0xFF800000> : vector<2x8xf32>
    %85 = vector.multi_reduction <maximumf>, %84, %cst_27 [2] : vector<2x8x8xf32> to vector<2x8xf32>
    %86 = vector.shape_cast %85 : vector<2x8xf32> to vector<2x8x1xf32>
    %87 = vector.broadcast %86 : vector<2x8x1xf32> to vector<2x8x8xf32>
    %88 = arith.subf %84, %87 : vector<2x8x8xf32>
    %89 = math.exp %88 : vector<2x8x8xf32>
    %cst_28 = arith.constant dense<0.000000e+00> : vector<2x8xf32>
    %90 = vector.multi_reduction <add>, %89, %cst_28 [2] : vector<2x8x8xf32> to vector<2x8xf32>
    %91 = vector.shape_cast %90 : vector<2x8xf32> to vector<2x8x1xf32>
    %92 = tpu.reciprocal %91 {approx = true} : vector<2x8x1xf32> -> vector<2x8x1xf32>
    %93 = vector.broadcast %92 : vector<2x8x1xf32> to vector<2x8x8xf32>
    %94 = arith.mulf %89, %93 : vector<2x8x8xf32>
    %95 = arith.truncf %94 : vector<2x8x8xf32> to vector<2x8x8xbf16>
    "tpu.trace_start"() <{level = 10 : i32, message = "blm,bmd->bld"}> : () -> ()
    %cst_29 = arith.constant dense<0.000000e+00> : vector<2x8x8xf32>
    %96 = tpu.matmul %95, %83, %cst_29 {dimension_numbers = #tpu.dot_dimension_numbers<[2], [1], [1], [2], [0, 0, 0, 1, 1, 2], [0], [0]>} : vector<2x8x8xbf16>, vector<2x8x8xbf16>, vector<2x8x8xf32> -> vector<2x8x8xf32>
    "tpu.trace_stop"() : () -> ()
    %97 = vector.shape_cast %96 : vector<2x8x8xf32> to vector<16x8xf32>
    %98 = arith.truncf %97 : vector<16x8xf32> to vector<16x8xbf16>
    %c0_30 = arith.constant 0 : index
    %c16 = arith.constant 16 : index
    %99 = vector.load %arg15[%c0_30, %c16] : memref<16x32xbf16, #tpu.memory_space<vmem>>, vector<16x8xbf16>
    tpu.vector_store %arg15[%c0_30, %c16], %98 {strides = array<i32>} : memref<16x32xbf16, #tpu.memory_space<vmem>>, vector<16x8xbf16>,
    %100 = vector.extract_strided_slice %40 {offsets = [0, 0, 24], sizes = [2, 8, 8], strides = [1, 1, 1]} : vector<2x8x32xbf16> to vector<2x8x8xbf16>
    %101 = vector.extract_strided_slice %41 {offsets = [0, 0, 24], sizes = [2, 8, 8], strides = [1, 1, 1]} : vector<2x8x32xbf16> to vector<2x8x8xbf16>
    %102 = vector.extract_strided_slice %42 {offsets = [0, 0, 24], sizes = [2, 8, 8], strides = [1, 1, 1]} : vector<2x8x32xbf16> to vector<2x8x8xbf16>
    "tpu.trace_start"() <{level = 10 : i32, message = "bld,bmd->blm"}> : () -> ()
    %cst_31 = arith.constant dense<0.000000e+00> : vector<2x8x8xf32>
    %103 = tpu.matmul %100, %101, %cst_31 {dimension_numbers = #tpu.dot_dimension_numbers<[2], [2], [1], [1], [0, 0, 0, 1, 1, 1], [0], [0]>} : vector<2x8x8xbf16>, vector<2x8x8xbf16>, vector<2x8x8xf32> -> vector<2x8x8xf32>
    "tpu.trace_stop"() : () -> ()
    %cst_32 = arith.constant dense<0xFF800000> : vector<2x8xf32>
    %104 = vector.multi_reduction <maximumf>, %103, %cst_32 [2] : vector<2x8x8xf32> to vector<2x8xf32>
    %105 = vector.shape_cast %104 : vector<2x8xf32> to vector<2x8x1xf32>
    %106 = vector.broadcast %105 : vector<2x8x1xf32> to vector<2x8x8xf32>
    %107 = arith.subf %103, %106 : vector<2x8x8xf32>
    %108 = math.exp %107 : vector<2x8x8xf32>
    %cst_33 = arith.constant dense<0.000000e+00> : vector<2x8xf32>
    %109 = vector.multi_reduction <add>, %108, %cst_33 [2] : vector<2x8x8xf32> to vector<2x8xf32>
    %110 = vector.shape_cast %109 : vector<2x8xf32> to vector<2x8x1xf32>
    %111 = tpu.reciprocal %110 {approx = true} : vector<2x8x1xf32> -> vector<2x8x1xf32>
    %112 = vector.broadcast %111 : vector<2x8x1xf32> to vector<2x8x8xf32>
    %113 = arith.mulf %108, %112 : vector<2x8x8xf32>
    %114 = arith.truncf %113 : vector<2x8x8xf32> to vector<2x8x8xbf16>
    "tpu.trace_start"() <{level = 10 : i32, message = "blm,bmd->bld"}> : () -> ()
    %cst_34 = arith.constant dense<0.000000e+00> : vector<2x8x8xf32>
    %115 = tpu.matmul %114, %102, %cst_34 {dimension_numbers = #tpu.dot_dimension_numbers<[2], [1], [1], [2], [0, 0, 0, 1, 1, 2], [0], [0]>} : vector<2x8x8xbf16>, vector<2x8x8xbf16>, vector<2x8x8xf32> -> vector<2x8x8xf32>
    "tpu.trace_stop"() : () -> ()
    %116 = vector.shape_cast %115 : vector<2x8x8xf32> to vector<16x8xf32>
    %117 = arith.truncf %116 : vector<16x8xf32> to vector<16x8xbf16>
    %c0_35 = arith.constant 0 : index
    %c24 = arith.constant 24 : index
    %118 = vector.load %arg15[%c0_35, %c24] : memref<16x32xbf16, #tpu.memory_space<vmem>>, vector<16x8xbf16>
    tpu.vector_store %arg15[%c0_35, %c24], %117 {strides = array<i32>} : memref<16x32xbf16, #tpu.memory_space<vmem>>, vector<16x8xbf16>,
    %c0_36 = arith.constant 0 : index
    %c0_37 = arith.constant 0 : index
    %119 = vector.load %arg15[%c0_36, %c0_37] : memref<16x32xbf16, #tpu.memory_space<vmem>>, vector<16x32xbf16>
    %c0_38 = arith.constant 0 : index
    %c0_39 = arith.constant 0 : index
    %120 = vector.load %arg6[%c0_38, %c0_39] : memref<32x32xbf16, #tpu.memory_space<vmem>>, vector<32x32xbf16>
    %cst_40 = arith.constant dense<0.000000e+00> : vector<16x32xf32>
    %121 = tpu.matmul %119, %120, %cst_40 {dimension_numbers = #tpu.dot_dimension_numbers<[1], [0], [0], [1], [0, 0, 1, 1], [], []>} : vector<16x32xbf16>, vector<32x32xbf16>, vector<16x32xf32> -> vector<16x32xf32>
    %c0_41 = arith.constant 0 : index
    %c0_42 = arith.constant 0 : index
    %122 = vector.load %arg7[%c0_41, %c0_42] : memref<1x32xf32, #tpu.memory_space<vmem>>, vector<1x32xf32>
    %123 = vector.shape_cast %122 : vector<1x32xf32> to vector<32xf32>
    %124 = vector.shape_cast %123 : vector<32xf32> to vector<1x32xf32>
    %125 = vector.broadcast %124 : vector<1x32xf32> to vector<16x32xf32>
    %126 = arith.addf %121, %125 : vector<16x32xf32>
    %127 = arith.addf %1, %126 : vector<16x32xf32>
    %c0_43 = arith.constant 0 : index
    %c0_44 = arith.constant 0 : index
    %128 = vector.load %arg8[%c0_43, %c0_44] : memref<1x32xf32, #tpu.memory_space<vmem>>, vector<1x32xf32>
    %129 = vector.shape_cast %128 : vector<1x32xf32> to vector<32xf32>
    %c0_45 = arith.constant 0 : index
    %c0_46 = arith.constant 0 : index
    %130 = vector.load %arg9[%c0_45, %c0_46] : memref<1x32xf32, #tpu.memory_space<vmem>>, vector<1x32xf32>
    %131 = vector.shape_cast %130 : vector<1x32xf32> to vector<32xf32>
    %cst_47 = arith.constant dense<0.000000e+00> : vector<16xf32>
    %132 = vector.multi_reduction <add>, %127, %cst_47 [1] : vector<16x32xf32> to vector<16xf32>
    %133 = vector.shape_cast %132 : vector<16xf32> to vector<16x1xf32>
    %cst_48 = arith.constant 3.200000e+01 : f32
    %134 = vector.broadcast %cst_48 : f32 to vector<16x1xf32>
    %135 = arith.divf %133, %134 : vector<16x1xf32>
    %136 = vector.broadcast %135 : vector<16x1xf32> to vector<16x32xf32>
    %137 = arith.subf %127, %136 : vector<16x32xf32>
    %138 = arith.mulf %137, %137 : vector<16x32xf32>
    %cst_49 = arith.constant dense<0.000000e+00> : vector<16xf32>
    %139 = vector.multi_reduction <add>, %138, %cst_49 [1] : vector<16x32xf32> to vector<16xf32>
    %140 = vector.shape_cast %139 : vector<16xf32> to vector<16x1xf32>
    %cst_50 = arith.constant 3.200000e+01 : f32
    %141 = vector.broadcast %cst_50 : f32 to vector<16x1xf32>
    %142 = arith.divf %140, %141 : vector<16x1xf32>
    %143 = vector.broadcast %135 : vector<16x1xf32> to vector<16x32xf32>
    %144 = arith.subf %127, %143 : vector<16x32xf32>
    %cst_51 = arith.constant 9.99999974E-6 : f32
    %145 = vector.broadcast %cst_51 : f32 to vector<16x1xf32>
    %146 = arith.addf %142, %145 : vector<16x1xf32>
    %147 = math.rsqrt %146 : vector<16x1xf32>
    %148 = vector.broadcast %147 : vector<16x1xf32> to vector<16x32xf32>
    %149 = arith.mulf %144, %148 : vector<16x32xf32>
    %150 = vector.shape_cast %129 : vector<32xf32> to vector<1x32xf32>
    %151 = vector.broadcast %150 : vector<1x32xf32> to vector<16x32xf32>
    %152 = arith.mulf %149, %151 : vector<16x32xf32>
    %153 = vector.shape_cast %131 : vector<32xf32> to vector<1x32xf32>
    %154 = vector.broadcast %153 : vector<1x32xf32> to vector<16x32xf32>
    %155 = arith.addf %152, %154 : vector<16x32xf32>
    %156 = arith.truncf %155 : vector<16x32xf32> to vector<16x32xbf16>
    %c0_52 = arith.constant 0 : index
    %c0_53 = arith.constant 0 : index
    %157 = vector.load %arg10[%c0_52, %c0_53] : memref<32x128xbf16, #tpu.memory_space<vmem>>, vector<32x128xbf16>
    %cst_54 = arith.constant dense<0.000000e+00> : vector<16x128xf32>
    %158 = tpu.matmul %156, %157, %cst_54 {dimension_numbers = #tpu.dot_dimension_numbers<[1], [0], [0], [1], [0, 0, 1, 1], [], []>} : vector<16x32xbf16>, vector<32x128xbf16>, vector<16x128xf32> -> vector<16x128xf32>
    %c0_55 = arith.constant 0 : index
    %c0_56 = arith.constant 0 : index
    %159 = vector.load %arg11[%c0_55, %c0_56] : memref<1x128xf32, #tpu.memory_space<vmem>>, vector<1x128xf32>
    %160 = vector.shape_cast %159 : vector<1x128xf32> to vector<128xf32>
    %161 = vector.shape_cast %160 : vector<128xf32> to vector<1x128xf32>
    %162 = vector.broadcast %161 : vector<1x128xf32> to vector<16x128xf32>
    %163 = arith.addf %158, %162 : vector<16x128xf32>
    %164 = arith.truncf %163 : vector<16x128xf32> to vector<16x128xbf16>
    %cst_57 = arith.constant 1.703130e+00 : bf16
    %165 = vector.broadcast %cst_57 : bf16 to vector<16x128xbf16>
    %166 = arith.mulf %165, %164 : vector<16x128xbf16>
    %167 = arith.negf %166 : vector<16x128xbf16>
    %168 = math.exp %167 : vector<16x128xbf16>
    %cst_58 = arith.constant 1.000000e+00 : bf16
    %169 = vector.broadcast %cst_58 : bf16 to vector<16x128xbf16>
    %170 = arith.addf %169, %168 : vector<16x128xbf16>
    %171 = arith.divf %169, %170 : vector<16x128xbf16>
    %172 = arith.mulf %164, %171 : vector<16x128xbf16>
    %c0_59 = arith.constant 0 : index
    %c0_60 = arith.constant 0 : index
    %173 = vector.load %arg12[%c0_59, %c0_60] : memref<128x32xbf16, #tpu.memory_space<vmem>>, vector<128x32xbf16>
    %cst_61 = arith.constant dense<0.000000e+00> : vector<16x32xf32>
    %174 = tpu.matmul %172, %173, %cst_61 {dimension_numbers = #tpu.dot_dimension_numbers<[1], [0], [0], [1], [0, 0, 1, 1], [], []>} : vector<16x128xbf16>, vector<128x32xbf16>, vector<16x32xf32> -> vector<16x32xf32>
    %c0_62 = arith.constant 0 : index
    %c0_63 = arith.constant 0 : index
    %175 = vector.load %arg13[%c0_62, %c0_63] : memref<1x32xf32, #tpu.memory_space<vmem>>, vector<1x32xf32>
    %176 = vector.shape_cast %175 : vector<1x32xf32> to vector<32xf32>
    %177 = vector.shape_cast %176 : vector<32xf32> to vector<1x32xf32>
    %178 = vector.broadcast %177 : vector<1x32xf32> to vector<16x32xf32>
    %179 = arith.addf %174, %178 : vector<16x32xf32>
    %180 = arith.addf %127, %179 : vector<16x32xf32>
    %181 = vector.shape_cast %180 : vector<16x32xf32> to vector<2x8x32xf32>
    %c0_64 = arith.constant 0 : index
    %c0_65 = arith.constant 0 : index
    %c0_66 = arith.constant 0 : index
    %182 = vector.load %arg14[%c0_64, %c0_65, %c0_66] : memref<2x8x32xf32, #tpu.memory_space<vmem>>, vector<2x8x32xf32>
    tpu.vector_store %arg14[%c0_64, %c0_65, %c0_66], %181 {strides = array<i32>} : memref<2x8x32xf32, #tpu.memory_space<vmem>>, vector<2x8x32xf32>,
    return
  }
  func.func @transform_0(%arg0: i32) -> (i32, i32, i32) {
    %c0_i32 = arith.constant 0 : i32
    %c0_i32_0 = arith.constant 0 : i32
    %c0_i32_1 = arith.constant 0 : i32
    return %arg0, %c0_i32, %c0_i32_0 : i32, i32, i32
  }
  func.func @transform_1(%arg0: i32) -> (i32, i32) {
    %c0_i32 = arith.constant 0 : i32
    %c0_i32_0 = arith.constant 0 : i32
    %c0_i32_1 = arith.constant 0 : i32
    return %c0_i32, %c0_i32_0 : i32, i32
  }
  func.func @transform_2(%arg0: i32) -> (i32, i32) {
    %c0_i32 = arith.constant 0 : i32
    %c0_i32_0 = arith.constant 0 : i32
    %c0_i32_1 = arith.constant 0 : i32
    return %c0_i32, %c0_i32_0 : i32, i32
  }
  func.func @transform_3(%arg0: i32) -> (i32, i32) {
    %c0_i32 = arith.constant 0 : i32
    %c0_i32_0 = arith.constant 0 : i32
    %c0_i32_1 = arith.constant 0 : i32
    return %c0_i32, %c0_i32_0 : i32, i32
  }
  func.func @transform_4(%arg0: i32) -> (i32, i32) {
    %c0_i32 = arith.constant 0 : i32
    %c0_i32_0 = arith.constant 0 : i32
    %c0_i32_1 = arith.constant 0 : i32
    return %c0_i32, %c0_i32_0 : i32, i32
  }
  func.func @transform_5(%arg0: i32) -> (i32, i32) {
    %c0_i32 = arith.constant 0 : i32
    %c0_i32_0 = arith.constant 0 : i32
    %c0_i32_1 = arith.constant 0 : i32
    return %c0_i32, %c0_i32_0 : i32, i32
  }
  func.func @transform_6(%arg0: i32) -> (i32, i32) {
    %c0_i32 = arith.constant 0 : i32
    %c0_i32_0 = arith.constant 0 : i32
    %c0_i32_1 = arith.constant 0 : i32
    return %c0_i32, %c0_i32_0 : i32, i32
  }
  func.func @transform_7(%arg0: i32) -> (i32, i32) {
    %c0_i32 = arith.constant 0 : i32
    %c0_i32_0 = arith.constant 0 : i32
    %c0_i32_1 = arith.constant 0 : i32
    return %c0_i32, %c0_i32_0 : i32, i32
  }
  func.func @transform_8(%arg0: i32) -> (i32, i32) {
    %c0_i32 = arith.constant 0 : i32
    %c0_i32_0 = arith.constant 0 : i32
    %c0_i32_1 = arith.constant 0 : i32
    return %c0_i32, %c0_i32_0 : i32, i32
  }
  func.func @transform_9(%arg0: i32) -> (i32, i32) {
    %c0_i32 = arith.constant 0 : i32
    %c0_i32_0 = arith.constant 0 : i32
    %c0_i32_1 = arith.constant 0 : i32
    return %c0_i32, %c0_i32_0 : i32, i32
  }
  func.func @transform_10(%arg0: i32) -> (i32, i32) {
    %c0_i32 = arith.constant 0 : i32
    %c0_i32_0 = arith.constant 0 : i32
    %c0_i32_1 = arith.constant 0 : i32
    return %c0_i32, %c0_i32_0 : i32, i32
  }
  func.func @transform_11(%arg0: i32) -> (i32, i32) {
    %c0_i32 = arith.constant 0 : i32
    %c0_i32_0 = arith.constant 0 : i32
    %c0_i32_1 = arith.constant 0 : i32
    return %c0_i32, %c0_i32_0 : i32, i32
  }
  func.func @transform_12(%arg0: i32) -> (i32, i32) {
    %c0_i32 = arith.constant 0 : i32
    %c0_i32_0 = arith.constant 0 : i32
    %c0_i32_1 = arith.constant 0 : i32
    return %c0_i32, %c0_i32_0 : i32, i32
  }
  func.func @transform_13(%arg0: i32) -> (i32, i32, i32) {
    %c0_i32 = arith.constant 0 : i32
    %c0_i32_0 = arith.constant 0 : i32
    %c0_i32_1 = arith.constant 0 : i32
    return %arg0, %c0_i32, %c0_i32_0 : i32, i32, i32
  }
}

</mosaic_0001>

<llo_original>
// kernel: tpu_custom_call.1
$region0: #{tpu_custom_call.1}
  #allocation0 [shape = 'u32[]', space=smem, size = 0x4, offset = 0x4, fixed_abs, tag = 'smem constant byte address 0x4 - core index']
  #allocation1 [shape = 'u32[72,128]{1,0:T(1,128)}', space=vmem, size = 0x9000, scoped, tag = 'internal scratch']
  #allocation2 [shape = 'bf16[16,32]{1,0:T(8,128)(2,1)}', space=vmem, size = 0x1000, scoped, tag = 'scratch operand']
  %s0 = inlined_call_operand.vmem [shape: f32[4,8,32], index: 0, kind: input, shape index: {}]
  %s1 = inlined_call_operand.hbm [shape: f32[1,32], index: 1, kind: input, shape index: {}]
  %s2 = inlined_call_operand.vmem [shape: f32[1,32], index: 2, kind: input, shape index: {}]
  %s3 = inlined_call_operand.vmem [shape: bf16[32,96], index: 3, kind: input, shape index: {}]
  %s4 = inlined_call_operand.vmem [shape: f32[1,96], index: 4, kind: input, shape index: {}]
  %s5 = inlined_call_operand.vmem [shape: bf16[32,32], index: 5, kind: input, shape index: {}]
  %s6 = inlined_call_operand.vmem [shape: f32[1,32], index: 6, kind: input, shape index: {}]
  %s7 = inlined_call_operand.vmem [shape: f32[1,32], index: 7, kind: input, shape index: {}]
  %s8 = inlined_call_operand.vmem [shape: f32[1,32], index: 8, kind: input, shape index: {}]
  %s9 = inlined_call_operand.vmem [shape: bf16[32,128], index: 9, kind: input, shape index: {}]
  %s10 = inlined_call_operand.vmem [shape: f32[1,128], index: 10, kind: input, shape index: {}]
  %s11 = inlined_call_operand.vmem [shape: bf16[128,32], index: 11, kind: input, shape index: {}]
  %s12 = inlined_call_operand.vmem [shape: f32[1,32], index: 12, kind: input, shape index: {}]
  %s13 = inlined_call_operand.hbm [shape: f32[4,8,32], index: 13, kind: output, shape index: {}]
  %s14 = sld [smem:[#allocation0]]
  $region89: #{tpu_custom_call.1} parent=0
    _
  %s16 = ssub.s32 1, %s14
  %s17 = scalar_select 0, %s16, %s14
  $region1: #{tpu_custom_call.1} parent=0
    #allocation3 [shape = 'u8[512]{0}', space=vmem, size = 0x400, scoped, tag = 'input window, operand 1, single buffered']
    #allocation4 [shape = 's32[2]{0}', space=sflag, size = 0x8, scoped, tag = 'scoped memory for tpu_custom_call.1']
    #allocation5 [shape = 's32[2]{0}', space=sflag, size = 0x8, scoped, tag = 'scoped memory for tpu_custom_call.1']
    #allocation6 [shape = 'u8[16384]{0}', space=vmem, size = 0x4000, scoped, tag = 'output window, operand 0']
    %18 = vsyncpa [#allocation4], 0
    %19 = vsyncpa [#allocation5], 0
    %s20 = scalar_lea.sflag [#allocation5], 1
    %21 = vsyncpa %s20, 0
    loop: start=0, step=1, limit=4
    $region2: #{tpu_custom_call.1} parent=1 // loop_pre_header
      _
    $region3: #{tpu_custom_call.1} parent=1 // loop_header
      %s23 = sphi 0, %s27
      %p24 = scmp.ge.s32.totalorder %s23, 4
      %s33 = sphi 0, %s35
      %s36 = sphi 0, %s33
      %s37 = sphi 0, %s36
      %s53 = sphi 0, %s37
      %s57 = sphi 0, %s57
      %s59 = sphi 0, %s57
      %s60 = sphi 0, %s59
      %s74 = sphi 0, %s60
      %s78 = sphi 0, %s78
      %s80 = sphi 0, %s78
      %s81 = sphi 0, %s80
      %s95 = sphi 0, %s81
      %s99 = sphi 0, %s99
      %s101 = sphi 0, %s99
      %s102 = sphi 0, %s101
      %s116 = sphi 0, %s102
      %s120 = sphi 0, %s120
      %s122 = sphi 0, %s120
      %s123 = sphi 0, %s122
      %s137 = sphi 0, %s123
      %s141 = sphi 0, %s141
      %s143 = sphi 0, %s141
      %s144 = sphi 0, %s143
      %s158 = sphi 0, %s144
      %s162 = sphi 0, %s162
      %s164 = sphi 0, %s162
      %s165 = sphi 0, %s164
      %s179 = sphi 0, %s165
      %s183 = sphi 0, %s183
      %s185 = sphi 0, %s183
      %s186 = sphi 0, %s185
      %s200 = sphi 0, %s186
      %s204 = sphi 0, %s204
      %s206 = sphi 0, %s204
      %s207 = sphi 0, %s206
      %s221 = sphi 0, %s207
      %s225 = sphi 0, %s225
      %s227 = sphi 0, %s225
      %s228 = sphi 0, %s227
      %s242 = sphi 0, %s228
      %s246 = sphi 0, %s246
      %s248 = sphi 0, %s246
      %s249 = sphi 0, %s248
      %s263 = sphi 0, %s249
      %s267 = sphi 0, %s267
      %s269 = sphi 0, %s267
      %s270 = sphi 0, %s269
      %s284 = sphi 0, %s270
      %s288 = sphi 0, %s288
      %s290 = sphi 0, %s288
      %s291 = sphi 0, %s290
      %s305 = sphi 0, %s291
      %s311 = sphi 0, %s313
      %s314 = sphi 0, %s311
      %s315 = sphi 0, %s314
      %s331 = sphi 0, %s315
    $region4: #{tpu_custom_call.1} parent=1 // loop_header_branch
      %26 = sbr.rel (%p24) target = $region8
    $region5: #{tpu_custom_call.1} parent=1 // loop_body
      %s28 = ssub.s32 %s23, 1
      %s29 = ssub.s32 %s23, 2
      %s30 = sadd.s32 %s23, 1
      %s31 = ssub.s32 %s23, %s30
      %p32 = scmp.eq.s32.totalorder %s31, 0
      %s34 = sadd.s32 %s33, 1
      %s35 = scalar_select %p32, %s33, %s34
      %p38 = pneg %p32
      %p39 = scmp.eq.s32.totalorder %s23, 1
      %p40 = por %p38, %p39
      %p41 = scmp.ne.s32.totalorder %s33, %s36
      %p42 = scmp.eq.s32.totalorder %s23, 0
      %p43 = por %p41, %p42
      %p44 = scmp.ne.s32.totalorder %s33, %s36
      %p45 = scmp.eq.s32.totalorder %s28, 1
      %p46 = por %p44, %p45
      %p47 = scmp.ne.s32.totalorder %s36, %s37
      %p48 = scmp.eq.s32.totalorder %s28, 0
      %p49 = por %p47, %p48
      %p50 = scmp.ne.s32.totalorder %s36, %s37
      %p51 = scmp.eq.s32.totalorder %s29, 1
      %p52 = por %p50, %p51
      %p54 = scmp.ne.s32.totalorder %s37, %s53
      %p55 = scmp.eq.s32.totalorder %s29, 0
      %p56 = por %p54, %p55
      %s58 = sadd.s32 %s57, 1
      %p61 = scmp.eq.s32.totalorder %s23, 1
      %p62 = scmp.ne.s32.totalorder %s57, %s59
      %p63 = scmp.eq.s32.totalorder %s23, 0
      %p64 = por %p62, %p63
      %p65 = scmp.ne.s32.totalorder %s57, %s59
      %p66 = scmp.eq.s32.totalorder %s28, 1
      %p67 = por %p65, %p66
      %p68 = scmp.ne.s32.totalorder %s59, %s60
      %p69 = scmp.eq.s32.totalorder %s28, 0
      %p70 = por %p68, %p69
      %p71 = scmp.ne.s32.totalorder %s59, %s60
      %p72 = scmp.eq.s32.totalorder %s29, 1
      %p73 = por %p71, %p72
      %p75 = scmp.ne.s32.totalorder %s60, %s74
      %p76 = scmp.eq.s32.totalorder %s29, 0
      %p77 = por %p75, %p76
      %s79 = sadd.s32 %s78, 1
      %p82 = scmp.eq.s32.totalorder %s23, 1
      %p83 = scmp.ne.s32.totalorder %s78, %s80
      %p84 = scmp.eq.s32.totalorder %s23, 0
      %p85 = por %p83, %p84
      %p86 = scmp.ne.s32.totalorder %s78, %s80
      %p87 = scmp.eq.s32.totalorder %s28, 1
      %p88 = por %p86, %p87
      %p89 = scmp.ne.s32.totalorder %s80, %s81
      %p90 = scmp.eq.s32.totalorder %s28, 0
      %p91 = por %p89, %p90
      %p92 = scmp.ne.s32.totalorder %s80, %s81
      %p93 = scmp.eq.s32.totalorder %s29, 1
      %p94 = por %p92, %p93
      %p96 = scmp.ne.s32.totalorder %s81, %s95
      %p97 = scmp.eq.s32.totalorder %s29, 0
      %p98 = por %p96, %p97
      %s100 = sadd.s32 %s99, 1
      %p103 = scmp.eq.s32.totalorder %s23, 1
      %p104 = scmp.ne.s32.totalorder %s99, %s101
      %p105 = scmp.eq.s32.totalorder %s23, 0
      %p106 = por %p104, %p105
      %p107 = scmp.ne.s32.totalorder %s99, %s101
      %p108 = scmp.eq.s32.totalorder %s28, 1
      %p109 = por %p107, %p108
      %p110 = scmp.ne.s32.totalorder %s101, %s102
      %p111 = scmp.eq.s32.totalorder %s28, 0
      %p112 = por %p110, %p111
      %p113 = scmp.ne.s32.totalorder %s101, %s102
      %p114 = scmp.eq.s32.totalorder %s29, 1
      %p115 = por %p113, %p114
      %p117 = scmp.ne.s32.totalorder %s102, %s116
      %p118 = scmp.eq.s32.totalorder %s29, 0
      %p119 = por %p117, %p118
      %s121 = sadd.s32 %s120, 1
      %p124 = scmp.eq.s32.totalorder %s23, 1
      %p125 = scmp.ne.s32.totalorder %s120, %s122
      %p126 = scmp.eq.s32.totalorder %s23, 0
      %p127 = por %p125, %p126
      %p128 = scmp.ne.s32.totalorder %s120, %s122
      %p129 = scmp.eq.s32.totalorder %s28, 1
      %p130 = por %p128, %p129
      %p131 = scmp.ne.s32.totalorder %s122, %s123
      %p132 = scmp.eq.s32.totalorder %s28, 0
      %p133 = por %p131, %p132
      %p134 = scmp.ne.s32.totalorder %s122, %s123
      %p135 = scmp.eq.s32.totalorder %s29, 1
      %p136 = por %p134, %p135
      %p138 = scmp.ne.s32.totalorder %s123, %s137
      %p139 = scmp.eq.s32.totalorder %s29, 0
      %p140 = por %p138, %p139
      %s142 = sadd.s32 %s141, 1
      %p145 = scmp.eq.s32.totalorder %s23, 1
      %p146 = scmp.ne.s32.totalorder %s141, %s143
      %p147 = scmp.eq.s32.totalorder %s23, 0
      %p148 = por %p146, %p147
      %p149 = scmp.ne.s32.totalorder %s141, %s143
      %p150 = scmp.eq.s32.totalorder %s28, 1
      %p151 = por %p149, %p150
      %p152 = scmp.ne.s32.totalorder %s143, %s144
      %p153 = scmp.eq.s32.totalorder %s28, 0
      %p154 = por %p152, %p153
      %p155 = scmp.ne.s32.totalorder %s143, %s144
      %p156 = scmp.eq.s32.totalorder %s29, 1
      %p157 = por %p155, %p156
      %p159 = scmp.ne.s32.totalorder %s144, %s158
      %p160 = scmp.eq.s32.totalorder %s29, 0
      %p161 = por %p159, %p160
      %s163 = sadd.s32 %s162, 1
      %p166 = scmp.eq.s32.totalorder %s23, 1
      %p167 = scmp.ne.s32.totalorder %s162, %s164
      %p168 = scmp.eq.s32.totalorder %s23, 0
      %p169 = por %p167, %p168
      %p170 = scmp.ne.s32.totalorder %s162, %s164
      %p171 = scmp.eq.s32.totalorder %s28, 1
      %p172 = por %p170, %p171
      %p173 = scmp.ne.s32.totalorder %s164, %s165
      %p174 = scmp.eq.s32.totalorder %s28, 0
      %p175 = por %p173, %p174
      %p176 = scmp.ne.s32.totalorder %s164, %s165
      %p177 = scmp.eq.s32.totalorder %s29, 1
      %p178 = por %p176, %p177
      %p180 = scmp.ne.s32.totalorder %s165, %s179
      %p181 = scmp.eq.s32.totalorder %s29, 0
      %p182 = por %p180, %p181
      %s184 = sadd.s32 %s183, 1
      %p187 = scmp.eq.s32.totalorder %s23, 1
      %p188 = scmp.ne.s32.totalorder %s183, %s185
      %p189 = scmp.eq.s32.totalorder %s23, 0
      %p190 = por %p188, %p189
      %p191 = scmp.ne.s32.totalorder %s183, %s185
      %p192 = scmp.eq.s32.totalorder %s28, 1
      %p193 = por %p191, %p192
      %p194 = scmp.ne.s32.totalorder %s185, %s186
      %p195 = scmp.eq.s32.totalorder %s28, 0
      %p196 = por %p194, %p195
      %p197 = scmp.ne.s32.totalorder %s185, %s186
      %p198 = scmp.eq.s32.totalorder %s29, 1
      %p199 = por %p197, %p198
      %p201 = scmp.ne.s32.totalorder %s186, %s200
      %p202 = scmp.eq.s32.totalorder %s29, 0
      %p203 = por %p201, %p202
      %s205 = sadd.s32 %s204, 1
      %p208 = scmp.eq.s32.totalorder %s23, 1
      %p209 = scmp.ne.s32.totalorder %s204, %s206
      %p210 = scmp.eq.s32.totalorder %s23, 0
      %p211 = por %p209, %p210
      %p212 = scmp.ne.s32.totalorder %s204, %s206
      %p213 = scmp.eq.s32.totalorder %s28, 1
      %p214 = por %p212, %p213
      %p215 = scmp.ne.s32.totalorder %s206, %s207
      %p216 = scmp.eq.s32.totalorder %s28, 0
      %p217 = por %p215, %p216
      %p218 = scmp.ne.s32.totalorder %s206, %s207
      %p219 = scmp.eq.s32.totalorder %s29, 1
      %p220 = por %p218, %p219
      %p222 = scmp.ne.s32.totalorder %s207, %s221
      %p223 = scmp.eq.s32.totalorder %s29, 0
      %p224 = por %p222, %p223
      %s226 = sadd.s32 %s225, 1
      %p229 = scmp.eq.s32.totalorder %s23, 1
      %p230 = scmp.ne.s32.totalorder %s225, %s227
      %p231 = scmp.eq.s32.totalorder %s23, 0
      %p232 = por %p230, %p231
      %p233 = scmp.ne.s32.totalorder %s225, %s227
      %p234 = scmp.eq.s32.totalorder %s28, 1
      %p235 = por %p233, %p234
      %p236 = scmp.ne.s32.totalorder %s227, %s228
      %p237 = scmp.eq.s32.totalorder %s28, 0
      %p238 = por %p236, %p237
      %p239 = scmp.ne.s32.totalorder %s227, %s228
      %p240 = scmp.eq.s32.totalorder %s29, 1
      %p241 = por %p239, %p240
      %p243 = scmp.ne.s32.totalorder %s228, %s242
      %p244 = scmp.eq.s32.totalorder %s29, 0
      %p245 = por %p243, %p244
      %s247 = sadd.s32 %s246, 1
      %p250 = scmp.eq.s32.totalorder %s23, 1
      %p251 = scmp.ne.s32.totalorder %s246, %s248
      %p252 = scmp.eq.s32.totalorder %s23, 0
      %p253 = por %p251, %p252
      %p254 = scmp.ne.s32.totalorder %s246, %s248
      %p255 = scmp.eq.s32.totalorder %s28, 1
      %p256 = por %p254, %p255
      %p257 = scmp.ne.s32.totalorder %s248, %s249
      %p258 = scmp.eq.s32.totalorder %s28, 0
      %p259 = por %p257, %p258
      %p260 = scmp.ne.s32.totalorder %s248, %s249
      %p261 = scmp.eq.s32.totalorder %s29, 1
      %p262 = por %p260, %p261
      %p264 = scmp.ne.s32.totalorder %s249, %s263
      %p265 = scmp.eq.s32.totalorder %s29, 0
      %p266 = por %p264, %p265
      %s268 = sadd.s32 %s267, 1
      %p271 = scmp.eq.s32.totalorder %s23, 1
      %p272 = scmp.ne.s32.totalorder %s267, %s269
      %p273 = scmp.eq.s32.totalorder %s23, 0
      %p274 = por %p272, %p273
      %p275 = scmp.ne.s32.totalorder %s267, %s269
      %p276 = scmp.eq.s32.totalorder %s28, 1
      %p277 = por %p275, %p276
      %p278 = scmp.ne.s32.totalorder %s269, %s270
      %p279 = scmp.eq.s32.totalorder %s28, 0
      %p280 = por %p278, %p279
      %p281 = scmp.ne.s32.totalorder %s269, %s270
      %p282 = scmp.eq.s32.totalorder %s29, 1
      %p283 = por %p281, %p282
      %p285 = scmp.ne.s32.totalorder %s270, %s284
      %p286 = scmp.eq.s32.totalorder %s29, 0
      %p287 = por %p285, %p286
      %s289 = sadd.s32 %s288, 1
      %p292 = scmp.eq.s32.totalorder %s23, 1
      %p293 = scmp.ne.s32.totalorder %s288, %s290
      %p294 = scmp.eq.s32.totalorder %s23, 0
      %p295 = por %p293, %p294
      %p296 = scmp.ne.s32.totalorder %s288, %s290
      %p297 = scmp.eq.s32.totalorder %s28, 1
      %p298 = por %p296, %p297
      %p299 = scmp.ne.s32.totalorder %s290, %s291
      %p300 = scmp.eq.s32.totalorder %s28, 0
      %p301 = por %p299, %p300
      %p302 = scmp.ne.s32.totalorder %s290, %s291
      %p303 = scmp.eq.s32.totalorder %s29, 1
      %p304 = por %p302, %p303
      %p306 = scmp.ne.s32.totalorder %s291, %s305
      %p307 = scmp.eq.s32.totalorder %s29, 0
      %p308 = por %p306, %p307
      %s309 = ssub.s32 %s23, %s30
      %p310 = scmp.eq.s32.totalorder %s309, 0
      %s312 = sadd.s32 %s311, 1
      %s313 = scalar_select %p310, %s311, %s312
      %p316 = pneg %p310
      %p317 = scmp.eq.s32.totalorder %s23, 1
      %p318 = por %p316, %p317
      %p319 = scmp.ne.s32.totalorder %s311, %s314
      %p320 = scmp.eq.s32.totalorder %s23, 0
      %p321 = por %p319, %p320
      %p322 = scmp.ne.s32.totalorder %s311, %s314
      %p323 = scmp.eq.s32.totalorder %s28, 1
      %p324 = por %p322, %p323
      %p325 = scmp.ne.s32.totalorder %s314, %s315
      %p326 = scmp.eq.s32.totalorder %s28, 0
      %p327 = por %p325, %p326
      %p328 = scmp.ne.s32.totalorder %s314, %s315
      %p329 = scmp.eq.s32.totalorder %s29, 1
      %p330 = por %p328, %p329
      %p332 = scmp.ne.s32.totalorder %s315, %s331
      %p333 = scmp.eq.s32.totalorder %s29, 0
      %p334 = por %p332, %p333
      %p335 = scmp.le.s32.totalorder 1, %s23
      %p336 = scmp.lt.s32.totalorder %s23, 3
      %p337 = pnand %p335, %p336
      %p338 = pneg %p337
      // Predicated region
      $region9: #{tpu_custom_call.1} parent=5 // pred_check
        _
      $region10: #{tpu_custom_call.1} parent=5 // pred_check_branch
        %340 = sbr.rel (%p337) target = $region12
      $region11: #{tpu_custom_call.1} parent=5 // pred_region
        %s341 = ssub.s32 %s23, 1
        // Predicated region
        $region13: #{tpu_custom_call.1} parent=11 // pred_check
          %p342 = pneg %p70
        $region14: #{tpu_custom_call.1} parent=11 // pred_check_branch
          %344 = sbr.rel (%p342) target = $region16
        $region15: #{tpu_custom_call.1} parent=11 // pred_region
          %346 = vsyncadd [#allocation4], 0
          %s348 = sshll.u32 %s1, 4
          %s349 = int_to_ptr.hbm [resolvable:$true] %s348
          %s350 = sshll.u32 [#allocation3], 4
          %s351 = int_to_ptr.vmem [resolvable:$true] %s350
          %353 = dma.hbm_to_vmem [thread:$0]  %s349, 16, %s351, [#allocation4]
        $region16: #{tpu_custom_call.1} parent=11 // pred_fallthru
          _
        // Predicated region
        $region17: #{tpu_custom_call.1} parent=11 // pred_check
          %p354 = pneg %p91
        $region18: #{tpu_custom_call.1} parent=11 // pred_check_branch
          %356 = sbr.rel (%p354) target = $region20
        $region19: #{tpu_custom_call.1} parent=11 // pred_region
          _
        $region20: #{tpu_custom_call.1} parent=11 // pred_fallthru
          _
        // Predicated region
        $region21: #{tpu_custom_call.1} parent=11 // pred_check
          %p357 = pneg %p112
        $region22: #{tpu_custom_call.1} parent=11 // pred_check_branch
          %359 = sbr.rel (%p357) target = $region24
        $region23: #{tpu_custom_call.1} parent=11 // pred_region
          _
        $region24: #{tpu_custom_call.1} parent=11 // pred_fallthru
          _
        // Predicated region
        $region25: #{tpu_custom_call.1} parent=11 // pred_check
          %p360 = pneg %p133
        $region26: #{tpu_custom_call.1} parent=11 // pred_check_branch
          %362 = sbr.rel (%p360) target = $region28
        $region27: #{tpu_custom_call.1} parent=11 // pred_region
          _
        $region28: #{tpu_custom_call.1} parent=11 // pred_fallthru
          _
        // Predicated region
        $region29: #{tpu_custom_call.1} parent=11 // pred_check
          %p363 = pneg %p154
        $region30: #{tpu_custom_call.1} parent=11 // pred_check_branch
          %365 = sbr.rel (%p363) target = $region32
        $region31: #{tpu_custom_call.1} parent=11 // pred_region
          _
        $region32: #{tpu_custom_call.1} parent=11 // pred_fallthru
          _
        // Predicated region
        $region33: #{tpu_custom_call.1} parent=11 // pred_check
          %p366 = pneg %p175
        $region34: #{tpu_custom_call.1} parent=11 // pred_check_branch
          %368 = sbr.rel (%p366) target = $region36
        $region35: #{tpu_custom_call.1} parent=11 // pred_region
          _
        $region36: #{tpu_custom_call.1} parent=11 // pred_fallthru
          _
        // Predicated region
        $region37: #{tpu_custom_call.1} parent=11 // pred_check
          %p369 = pneg %p196
        $region38: #{tpu_custom_call.1} parent=11 // pred_check_branch
          %371 = sbr.rel (%p369) target = $region40
        $region39: #{tpu_custom_call.1} parent=11 // pred_region
          _
        $region40: #{tpu_custom_call.1} parent=11 // pred_fallthru
          _
        // Predicated region
        $region41: #{tpu_custom_call.1} parent=11 // pred_check
          %p372 = pneg %p217
        $region42: #{tpu_custom_call.1} parent=11 // pred_check_branch
          %374 = sbr.rel (%p372) target = $region44
        $region43: #{tpu_custom_call.1} parent=11 // pred_region
          _
        $region44: #{tpu_custom_call.1} parent=11 // pred_fallthru
          _
        // Predicated region
        $region45: #{tpu_custom_call.1} parent=11 // pred_check
          %p375 = pneg %p238
        $region46: #{tpu_custom_call.1} parent=11 // pred_check_branch
          %377 = sbr.rel (%p375) target = $region48
        $region47: #{tpu_custom_call.1} parent=11 // pred_region
          _
        $region48: #{tpu_custom_call.1} parent=11 // pred_fallthru
          _
        // Predicated region
        $region49: #{tpu_custom_call.1} parent=11 // pred_check
          %p378 = pneg %p259
        $region50: #{tpu_custom_call.1} parent=11 // pred_check_branch
          %380 = sbr.rel (%p378) target = $region52
        $region51: #{tpu_custom_call.1} parent=11 // pred_region
          _
        $region52: #{tpu_custom_call.1} parent=11 // pred_fallthru
          _
        // Predicated region
        $region53: #{tpu_custom_call.1} parent=11 // pred_check
          %p381 = pneg %p280
        $region54: #{tpu_custom_call.1} parent=11 // pred_check_branch
          %383 = sbr.rel (%p381) target = $region56
        $region55: #{tpu_custom_call.1} parent=11 // pred_region
          _
        $region56: #{tpu_custom_call.1} parent=11 // pred_fallthru
          _
        // Predicated region
        $region57: #{tpu_custom_call.1} parent=11 // pred_check
          %p384 = pneg %p301
        $region58: #{tpu_custom_call.1} parent=11 // pred_check_branch
          %386 = sbr.rel (%p384) target = $region60
        $region59: #{tpu_custom_call.1} parent=11 // pred_region
          _
        $region60: #{tpu_custom_call.1} parent=11 // pred_fallthru
          _
      $region12: #{tpu_custom_call.1} parent=5 // pred_fallthru
        _
      %p387 = scmp.lt.s32.totalorder %s23, 2
      // Predicated region
      $region61: #{tpu_custom_call.1} parent=5 // pred_check
        %p388 = pneg %p387
      $region62: #{tpu_custom_call.1} parent=5 // pred_check_branch
        %390 = sbr.rel (%p388) target = $region64
      $region63: #{tpu_custom_call.1} parent=5 // pred_region
        // Predicated region
        $region65: #{tpu_custom_call.1} parent=63 // pred_check
          %p391 = pneg %p43
        $region66: #{tpu_custom_call.1} parent=63 // pred_check_branch
          %393 = sbr.rel (%p391) target = $region68
        $region67: #{tpu_custom_call.1} parent=63 // pred_region
          %s394 = smul.u32 2, %s23
          %p395 = scmp.lt.s32.totalorder %s394, 3
          %s396 = scalar_select %p395, %s394, 3
          %s397 = smul.addr %s396, 8
          %s398 = scalar_lea.vmem %s0, %s397
          %s399 = smul.u32 2, %s23
        $region68: #{tpu_custom_call.1} parent=63 // pred_fallthru
          _
      $region64: #{tpu_custom_call.1} parent=5 // pred_fallthru
        _
      %p400 = scmp.le.s32.totalorder 1, %s23
      %p401 = scmp.lt.s32.totalorder %s23, 3
      %p402 = pnand %p400, %p401
      %p403 = pneg %p402
      // Predicated region
      $region69: #{tpu_custom_call.1} parent=5 // pred_check
        _
      $region70: #{tpu_custom_call.1} parent=5 // pred_check_branch
        %405 = sbr.rel (%p402) target = $region72
      $region71: #{tpu_custom_call.1} parent=5 // pred_region
        %s406 = ssub.s32 %s23, 1
        // Predicated region
        $region73: #{tpu_custom_call.1} parent=71 // pred_check
          %p407 = pneg %p70
        $region74: #{tpu_custom_call.1} parent=71 // pred_check_branch
          %409 = sbr.rel (%p407) target = $region76
        $region75: #{tpu_custom_call.1} parent=71 // pred_region
          %411 = dma.done [#allocation4], 16
        $region76: #{tpu_custom_call.1} parent=71 // pred_fallthru
          _
        %s412 = smul.u32 2, %s28
        %p413 = scmp.lt.s32.totalorder %s412, 3
        %s414 = scalar_select %p413, %s412, 3
        %s415 = smul.addr %s414, 8
        %s416 = scalar_lea.vmem %s0, %s415
        %p417 = pneg %p49
        %p418 = pneg %p46
        %p419 = pneg %p70
        %p420 = pneg %p67
        %p421 = pneg %p91
        %p422 = pneg %p88
        %p423 = pneg %p112
        %p424 = pneg %p109
        %p425 = pneg %p133
        %p426 = pneg %p130
        %p427 = pneg %p154
        %p428 = pneg %p151
        %p429 = pneg %p175
        %p430 = pneg %p172
        %p431 = pneg %p196
        %p432 = pneg %p193
        %p433 = pneg %p217
        %p434 = pneg %p214
        %p435 = pneg %p238
        %p436 = pneg %p235
        %p437 = pneg %p259
        %p438 = pneg %p256
        %p439 = pneg %p280
        %p440 = pneg %p277
        %p441 = pneg %p301
        %p442 = pneg %p298
        %p443 = pneg %p327
        %p444 = pneg %p324
        %s445 = sand.u32 %s314, 1
        %s446 = scalar_lea.sflag [#allocation5], %s445
        %s447 = sand.u32 %s314, 1
        %s448 = smul.addr %s447, 16
        %s449 = scalar_lea.vmem [#allocation6], %s448
        %s450 = smul.u32 2, %s28
        %p451 = scmp.lt.s32.totalorder %s450, 3
        %s452 = scalar_select %p451, %s450, 3
        %s453 = smul.addr %s452, 8
        %s454 = scalar_lea.vmem %s0, %s453
        %s455 = smul.u32 2, %s28
        %s456 = smul.u32 2, %s28
        %v459 = vld [vmem:[%s454] sm:$0xff]
        %v460 = vld [vmem:[%s454 + $0x8] sm:$0xff]
        %v461 = vld [vmem:[#allocation3] sm:$0x1]
        %v462 = vld [vmem:[%s2] sm:$0x1]
        %vm463 = vcmask 261120
        %v464 = vsel %vm463, %v459, 0.0
        %465 = vadd.xlane.f32.xlu0 %v464
        %v466 = vpop.xlane.xlu0 %465
        %v467 = vsel %vm463, %v460, 0.0
        %468 = vadd.xlane.f32.xlu0 %v467
        %v469 = vpop.xlane.xlu0 %468
        %v470 = vrcp.pop 32.0
        %v471 = vmul.f32 32.0, %v470
        %v472 = vsub.f32 1.0, %v471
        %v473 = vmul.f32 %v470, %v472
        %v474 = vadd.f32 %v470, %v473
        %vm475 = vweird.f32 %v470
        %v476 = vsel %vm475, %v470, %v474
        %v477 = vmul.f32 %v466, %v476
        %v478 = vmul.f32 %v469, %v476
        %v479 = vsub.f32 %v459, %v477
        %v480 = vsub.f32 %v460, %v478
        %v481 = vmul.f32 %v479, %v479
        %v482 = vmul.f32 %v480, %v480
        %v483 = vsel %vm463, %v481, 0.0
        %484 = vadd.xlane.f32.xlu0 %v483
        %v485 = vpop.xlane.xlu0 %484
        %v486 = vsel %vm463, %v482, 0.0
        %487 = vadd.xlane.f32.xlu0 %v486
        %v488 = vpop.xlane.xlu0 %487
        %v489 = vmul.f32 %v485, %v476
        %v490 = vmul.f32 %v488, %v476
        %v491 = vadd.f32 %v489, 1e-05
        %v492 = vadd.f32 %v490, 1e-05
        %v493 = vrsqrt.pop %v491
        %v494 = vmul.f32 %v493, %v491
        %v495 = vmul.f32 %v494, %v493
        %v496 = vmul.f32 0.5, %v495
        %v497 = vsub.f32 1.5, %v496
        %v498 = vmul.f32 %v493, %v497
        %vm499 = vweird.f32 %v491
        %vm500 = vweird.f32 %v493
        %vm501 = vmor %vm499, %vm500
        %v502 = vsel %vm501, %v493, %v498
        %v503 = vrsqrt.pop %v492
        %v504 = vmul.f32 %v503, %v492
        %v505 = vmul.f32 %v504, %v503
        %v506 = vmul.f32 0.5, %v505
        %v507 = vsub.f32 1.5, %v506
        %v508 = vmul.f32 %v503, %v507
        %vm509 = vweird.f32 %v492
        %vm510 = vweird.f32 %v503
        %vm511 = vmor %vm509, %vm510
        %v512 = vsel %vm511, %v503, %v508
        %v513 = vmul.f32 %v479, %v502
        %v514 = vmul.f32 %v480, %v512
        %v516 = vperm.slane %v461, 0
        %v518 = vmul.f32 %v513, %v516
        %v519 = vmul.f32 %v514, %v516
        %v521 = vperm.slane %v462, 0
        %v523 = vadd.f32 %v518, %v521
        %v524 = vadd.f32 %v519, %v521
        %v525 = vpack.c.bf16 %v524, %v523
        %v526 = vld [vmem:[%s3] sm:$0xf]
        %v527 = vld [vmem:[%s3 + $0x4] sm:$0xf]
        %v528 = vld [vmem:[%s3 + $0x8] sm:$0xf]
        %v529 = vld [vmem:[%s3 + $0xc] sm:$0xf]
        %v530 = vld [vmem:[%s4] sm:$0x1]
        %v532 = vperm.slane %v530, 0
        %v538 = vunpack.c.l.b16 %v526
        %v539 = vunpack.c.l.b16 %v527
        %v540 = vunpack.c.l.b16 %v528
        %v541 = vunpack.c.l.b16 %v529
        %v542 = vpack.c.b16 %v539, %v538
        %v543 = vpack.c.b16 %v541, %v540
        %v547 = vsel %vm463, %v525, 0
        %549 = vmatpush.bf16.msra.mxu0 0
        %550 = vmatpush.bf16.msra.mxu0 0
        %551 = vmatpush.bf16.msra.mxu0 0
        %552 = vmatpush.bf16.msra.mxu0 0
        %553 = vmatpush.bf16.msra.mxu0 0
        %554 = vmatpush.bf16.msra.mxu0 0
        %555 = vmatpush.bf16.msra.mxu0 %v543
        %556 = vmatpush.bf16.msra.mxu0 %v542
        %557 = vmatmul.bf16.gmra.mxu0 %v547
        %v558 = vpop.f32.mrf.mxu0
        %v559 = vadd.f32 %v532, %v558
        %v560 = vpop.f32.mrf.mxu0
        %v561 = vadd.f32 %v532, %v560
        %562 = vdwg.mxu0
        %v563 = vpack.c.bf16 %v559, %v559
        %v564 = vpack.c.bf16 %v561, %v561
        %v566 = vunpack.c.l.b16 %v563
        %v567 = vpack.c.b16 %v566, %v566
        %568 = vrot.lane.b32.xlu0 %v567, 96
        %v569 = vpop.permute.xlu0 %568
        %vm570 = vcmask 64512
        %v572 = vsel %vm570, %v563, 0
        %v575 = vsel %vm570, %v569, 0
        %577 = vmatpush.bf16.xpose.msra.mxu0 0
        %578 = vmatpush.bf16.xpose.msra.mxu0 0
        %579 = vmatpush.bf16.xpose.msra.mxu0 0
        %580 = vmatpush.bf16.xpose.msra.mxu0 0
        %581 = vmatpush.bf16.xpose.msra.mxu0 0
        %582 = vmatpush.bf16.xpose.msra.mxu0 0
        %583 = vmatpush.bf16.xpose.msra.mxu0 0
        %584 = vmatpush.bf16.xpose.msra.mxu0 %v575
        %585 = vmatmul.bf16.gmra.mxu0 %v572
        %v586 = vpop.f32.mrf.mxu0
        %v587 = vadd.f32 0.0, %v586
        %v588 = vpop.f32.mrf.mxu0
        %589 = vdwg.mxu0
        %v591 = vunpack.c.l.b16 %v564
        %v592 = vpack.c.b16 %v591, %v591
        %593 = vrot.lane.b32.xlu0 %v592, 96
        %v594 = vpop.permute.xlu0 %593
        %v596 = vsel %vm570, %v564, 0
        %v599 = vsel %vm570, %v594, 0
        %601 = vmatpush.bf16.xpose.msra.mxu0 0
        %602 = vmatpush.bf16.xpose.msra.mxu0 0
        %603 = vmatpush.bf16.xpose.msra.mxu0 0
        %604 = vmatpush.bf16.xpose.msra.mxu0 0
        %605 = vmatpush.bf16.xpose.msra.mxu0 0
        %606 = vmatpush.bf16.xpose.msra.mxu0 0
        %607 = vmatpush.bf16.xpose.msra.mxu0 0
        %608 = vmatpush.bf16.xpose.msra.mxu0 %v599
        %609 = vmatmul.bf16.gmra.mxu0 %v596
        %v610 = vpop.f32.mrf.mxu0
        %v611 = vadd.f32 0.0, %v610
        %v612 = vpop.f32.mrf.mxu0
        %613 = vdwg.mxu0
        %v614 = vsel %vm570, %v587, -inf
        %615 = vmax.xlane.f32.xlu0 %v614
        %v616 = vpop.xlane.xlu0 %615
        %v617 = vsel %vm570, %v611, -inf
        %618 = vmax.xlane.f32.xlu0 %v617
        %v619 = vpop.xlane.xlu0 %618
        %v620 = vsub.f32 %v587, %v616
        %v621 = vsub.f32 %v611, %v619
        %v622 = vmul.f32 %v620, 1.442695
        %v623 = vpow.pop %v622
        %v624 = vmul.f32 %v621, 1.442695
        %v625 = vpow.pop %v624
        %v626 = vsel %vm570, %v623, 0.0
        %627 = vadd.xlane.f32.xlu0 %v626
        %v628 = vpop.xlane.xlu0 %627
        %v629 = vsel %vm570, %v625, 0.0
        %630 = vadd.xlane.f32.xlu0 %v629
        %v631 = vpop.xlane.xlu0 %630
        %v632 = vrcp.pop %v628
        %v633 = vrcp.pop %v631
        %v634 = vmul.f32 %v623, %v632
        %v635 = vmul.f32 %v625, %v633
        %v636 = vpack.c.bf16 %v634, %v634
        %v637 = vpack.c.bf16 %v635, %v635
        %638 = vrot.lane.b32.xlu0 %v567, 64
        %v639 = vpop.permute.xlu0 %638
        %v641 = vsel %vm570, %v636, 0
        %vm643 = vcmask 1043456
        %v645 = vsel %vm643, %v639, 0
        %647 = vmatpush.bf16.msra.mxu0 0
        %648 = vmatpush.bf16.msra.mxu0 0
        %649 = vmatpush.bf16.msra.mxu0 0
        %650 = vmatpush.bf16.msra.mxu0 0
        %651 = vmatpush.bf16.msra.mxu0 0
        %652 = vmatpush.bf16.msra.mxu0 0
        %653 = vmatpush.bf16.msra.mxu0 0
        %654 = vmatpush.bf16.msra.mxu0 %v645
        %655 = vmatmul.bf16.gmra.mxu0 %v641
        %v656 = vpop.f32.mrf.mxu0
        %v657 = vadd.f32 0.0, %v656
        %v658 = vpop.f32.mrf.mxu0
        %659 = vdwg.mxu0
        %660 = vrot.lane.b32.xlu0 %v592, 64
        %v661 = vpop.permute.xlu0 %660
        %v663 = vsel %vm570, %v637, 0
        %v666 = vsel %vm643, %v661, 0
        %668 = vmatpush.bf16.msra.mxu0 0
        %669 = vmatpush.bf16.msra.mxu0 0
        %670 = vmatpush.bf16.msra.mxu0 0
        %671 = vmatpush.bf16.msra.mxu0 0
        %672 = vmatpush.bf16.msra.mxu0 0
        %673 = vmatpush.bf16.msra.mxu0 0
        %674 = vmatpush.bf16.msra.mxu0 0
        %675 = vmatpush.bf16.msra.mxu0 %v666
        %676 = vmatmul.bf16.gmra.mxu0 %v663
        %v677 = vpop.f32.mrf.mxu0
        %v678 = vadd.f32 0.0, %v677
        %v679 = vpop.f32.mrf.mxu0
        %680 = vdwg.mxu0
        %v681 = vpack.c.bf16 %v657, %v657
        %v682 = vpack.c.bf16 %v678, %v678
        %vm683 = vcmask 60416
        %684 = vst.msk [vmem:[#allocation2] sm:$0xf] %vm683, %v681
        %685 = vst.msk [vmem:[#allocation2 + $0x4] sm:$0xf] %vm683, %v682
        %686 = vrot.lane.b32.xlu0 %v567, 120
        %v687 = vpop.permute.xlu0 %686
        %688 = vrot.lane.b32.xlu0 %v567, 88
        %v689 = vpop.permute.xlu0 %688
        %v691 = vsel %vm570, %v687, 0
        %v694 = vsel %vm570, %v689, 0
        %696 = vmatpush.bf16.xpose.msra.mxu0 0
        %697 = vmatpush.bf16.xpose.msra.mxu0 0
        %698 = vmatpush.bf16.xpose.msra.mxu0 0
        %699 = vmatpush.bf16.xpose.msra.mxu0 0
        %700 = vmatpush.bf16.xpose.msra.mxu0 0
        %701 = vmatpush.bf16.xpose.msra.mxu0 0
        %702 = vmatpush.bf16.xpose.msra.mxu0 0
        %703 = vmatpush.bf16.xpose.msra.mxu0 %v694
        %704 = vmatmul.bf16.gmra.mxu0 %v691
        %v705 = vpop.f32.mrf.mxu0
        %v706 = vadd.f32 0.0, %v705
        %v707 = vpop.f32.mrf.mxu0
        %708 = vdwg.mxu0
        %709 = vrot.lane.b32.xlu0 %v592, 120
        %v710 = vpop.permute.xlu0 %709
        %711 = vrot.lane.b32.xlu0 %v592, 88
        %v712 = vpop.permute.xlu0 %711
        %v714 = vsel %vm570, %v710, 0
        %v717 = vsel %vm570, %v712, 0
        %719 = vmatpush.bf16.xpose.msra.mxu0 0
        %720 = vmatpush.bf16.xpose.msra.mxu0 0
        %721 = vmatpush.bf16.xpose.msra.mxu0 0
        %722 = vmatpush.bf16.xpose.msra.mxu0 0
        %723 = vmatpush.bf16.xpose.msra.mxu0 0
        %724 = vmatpush.bf16.xpose.msra.mxu0 0
        %725 = vmatpush.bf16.xpose.msra.mxu0 0
        %726 = vmatpush.bf16.xpose.msra.mxu0 %v717
        %727 = vmatmul.bf16.gmra.mxu0 %v714
        %v728 = vpop.f32.mrf.mxu0
        %v729 = vadd.f32 0.0, %v728
        %v730 = vpop.f32.mrf.mxu0
        %731 = vdwg.mxu0
        %v732 = vsel %vm570, %v706, -inf
        %733 = vmax.xlane.f32.xlu0 %v732
        %v734 = vpop.xlane.xlu0 %733
        %v735 = vsel %vm570, %v729, -inf
        %736 = vmax.xlane.f32.xlu0 %v735
        %v737 = vpop.xlane.xlu0 %736
        %v738 = vsub.f32 %v706, %v734
        %v739 = vsub.f32 %v729, %v737
        %v740 = vmul.f32 %v738, 1.442695
        %v741 = vpow.pop %v740
        %v742 = vmul.f32 %v739, 1.442695
        %v743 = vpow.pop %v742
        %v744 = vsel %vm570, %v741, 0.0
        %745 = vadd.xlane.f32.xlu0 %v744
        %v746 = vpop.xlane.xlu0 %745
        %v747 = vsel %vm570, %v743, 0.0
        %748 = vadd.xlane.f32.xlu0 %v747
        %v749 = vpop.xlane.xlu0 %748
        %v750 = vrcp.pop %v746
        %v751 = vrcp.pop %v749
        %v752 = vmul.f32 %v741, %v750
        %v753 = vmul.f32 %v743, %v751
        %v754 = vpack.c.bf16 %v752, %v752
        %v755 = vpack.c.bf16 %v753, %v753
        %756 = vrot.lane.b32.xlu0 %v567, 56
        %v757 = vpop.permute.xlu0 %756
        %v759 = vsel %vm570, %v754, 0
        %v762 = vsel %vm643, %v757, 0
        %764 = vmatpush.bf16.msra.mxu0 0
        %765 = vmatpush.bf16.msra.mxu0 0
        %766 = vmatpush.bf16.msra.mxu0 0
        %767 = vmatpush.bf16.msra.mxu0 0
        %768 = vmatpush.bf16.msra.mxu0 0
        %769 = vmatpush.bf16.msra.mxu0 0
        %770 = vmatpush.bf16.msra.mxu0 0
        %771 = vmatpush.bf16.msra.mxu0 %v762
        %772 = vmatmul.bf16.gmra.mxu0 %v759
        %v773 = vpop.f32.mrf.mxu0
        %v774 = vadd.f32 0.0, %v773
        %v775 = vpop.f32.mrf.mxu0
        %776 = vdwg.mxu0
        %777 = vrot.lane.b32.xlu0 %v592, 56
        %v778 = vpop.permute.xlu0 %777
        %v780 = vsel %vm570, %v755, 0
        %v783 = vsel %vm643, %v778, 0
        %785 = vmatpush.bf16.msra.mxu0 0
        %786 = vmatpush.bf16.msra.mxu0 0
        %787 = vmatpush.bf16.msra.mxu0 0
        %788 = vmatpush.bf16.msra.mxu0 0
        %789 = vmatpush.bf16.msra.mxu0 0
        %790 = vmatpush.bf16.msra.mxu0 0
        %791 = vmatpush.bf16.msra.mxu0 0
        %792 = vmatpush.bf16.msra.mxu0 %v783
        %793 = vmatmul.bf16.gmra.mxu0 %v780
        %v794 = vpop.f32.mrf.mxu0
        %v795 = vadd.f32 0.0, %v794
        %v796 = vpop.f32.mrf.mxu0
        %797 = vdwg.mxu0
        %v798 = vpack.c.bf16 %v774, %v774
        %v799 = vpack.c.bf16 %v795, %v795
        %802 = vrot.lane.b32.xlu0 %v798, 8
        %v803 = vpop.permute.xlu0 %802
        %804 = vrot.lane.b32.xlu0 %v799, 8
        %v805 = vpop.permute.xlu0 %804
        %vm808 = vcmask 126016
        %809 = vst.msk [vmem:[#allocation2] sm:$0xf] %vm808, %v803
        %810 = vst.msk [vmem:[#allocation2 + $0x4] sm:$0xf] %vm808, %v805
        %811 = vrot.lane.b32.xlu0 %v567, 112
        %v812 = vpop.permute.xlu0 %811
        %813 = vrot.lane.b32.xlu0 %v567, 80
        %v814 = vpop.permute.xlu0 %813
        %v816 = vsel %vm570, %v812, 0
        %v819 = vsel %vm570, %v814, 0
        %821 = vmatpush.bf16.xpose.msra.mxu0 0
        %822 = vmatpush.bf16.xpose.msra.mxu0 0
        %823 = vmatpush.bf16.xpose.msra.mxu0 0
        %824 = vmatpush.bf16.xpose.msra.mxu0 0
        %825 = vmatpush.bf16.xpose.msra.mxu0 0
        %826 = vmatpush.bf16.xpose.msra.mxu0 0
        %827 = vmatpush.bf16.xpose.msra.mxu0 0
        %828 = vmatpush.bf16.xpose.msra.mxu0 %v819
        %829 = vmatmul.bf16.gmra.mxu0 %v816
        %v830 = vpop.f32.mrf.mxu0
        %v831 = vadd.f32 0.0, %v830
        %v832 = vpop.f32.mrf.mxu0
        %833 = vdwg.mxu0
        %834 = vrot.lane.b32.xlu0 %v592, 112
        %v835 = vpop.permute.xlu0 %834
        %836 = vrot.lane.b32.xlu0 %v592, 80
        %v837 = vpop.permute.xlu0 %836
        %v839 = vsel %vm570, %v835, 0
        %v842 = vsel %vm570, %v837, 0
        %844 = vmatpush.bf16.xpose.msra.mxu0 0
        %845 = vmatpush.bf16.xpose.msra.mxu0 0
        %846 = vmatpush.bf16.xpose.msra.mxu0 0
        %847 = vmatpush.bf16.xpose.msra.mxu0 0
        %848 = vmatpush.bf16.xpose.msra.mxu0 0
        %849 = vmatpush.bf16.xpose.msra.mxu0 0
        %850 = vmatpush.bf16.xpose.msra.mxu0 0
        %851 = vmatpush.bf16.xpose.msra.mxu0 %v842
        %852 = vmatmul.bf16.gmra.mxu0 %v839
        %v853 = vpop.f32.mrf.mxu0
        %v854 = vadd.f32 0.0, %v853
        %v855 = vpop.f32.mrf.mxu0
        %856 = vdwg.mxu0
        %v857 = vsel %vm570, %v831, -inf
        %858 = vmax.xlane.f32.xlu0 %v857
        %v859 = vpop.xlane.xlu0 %858
        %v860 = vsel %vm570, %v854, -inf
        %861 = vmax.xlane.f32.xlu0 %v860
        %v862 = vpop.xlane.xlu0 %861
        %v863 = vsub.f32 %v831, %v859
        %v864 = vsub.f32 %v854, %v862
        %v865 = vmul.f32 %v863, 1.442695
        %v866 = vpow.pop %v865
        %v867 = vmul.f32 %v864, 1.442695
        %v868 = vpow.pop %v867
        %v869 = vsel %vm570, %v866, 0.0
        %870 = vadd.xlane.f32.xlu0 %v869
        %v871 = vpop.xlane.xlu0 %870
        %v872 = vsel %vm570, %v868, 0.0
        %873 = vadd.xlane.f32.xlu0 %v872
        %v874 = vpop.xlane.xlu0 %873
        %v875 = vrcp.pop %v871
        %v876 = vrcp.pop %v874
        %v877 = vmul.f32 %v866, %v875
        %v878 = vmul.f32 %v868, %v876
        %v879 = vpack.c.bf16 %v877, %v877
        %v880 = vpack.c.bf16 %v878, %v878
        %881 = vrot.lane.b32.xlu0 %v567, 48
        %v882 = vpop.permute.xlu0 %881
        %v884 = vsel %vm570, %v879, 0
        %v887 = vsel %vm643, %v882, 0
        %889 = vmatpush.bf16.msra.mxu0 0
        %890 = vmatpush.bf16.msra.mxu0 0
        %891 = vmatpush.bf16.msra.mxu0 0
        %892 = vmatpush.bf16.msra.mxu0 0
        %893 = vmatpush.bf16.msra.mxu0 0
        %894 = vmatpush.bf16.msra.mxu0 0
        %895 = vmatpush.bf16.msra.mxu0 0
        %896 = vmatpush.bf16.msra.mxu0 %v887
        %897 = vmatmul.bf16.gmra.mxu0 %v884
        %v898 = vpop.f32.mrf.mxu0
        %v899 = vadd.f32 0.0, %v898
        %v900 = vpop.f32.mrf.mxu0
        %901 = vdwg.mxu0
        %902 = vrot.lane.b32.xlu0 %v592, 48
        %v903 = vpop.permute.xlu0 %902
        %v905 = vsel %vm570, %v880, 0
        %v908 = vsel %vm643, %v903, 0
        %910 = vmatpush.bf16.msra.mxu0 0
        %911 = vmatpush.bf16.msra.mxu0 0
        %912 = vmatpush.bf16.msra.mxu0 0
        %913 = vmatpush.bf16.msra.mxu0 0
        %914 = vmatpush.bf16.msra.mxu0 0
        %915 = vmatpush.bf16.msra.mxu0 0
        %916 = vmatpush.bf16.msra.mxu0 0
        %917 = vmatpush.bf16.msra.mxu0 %v908
        %918 = vmatmul.bf16.gmra.mxu0 %v905
        %v919 = vpop.f32.mrf.mxu0
        %v920 = vadd.f32 0.0, %v919
        %v921 = vpop.f32.mrf.mxu0
        %922 = vdwg.mxu0
        %v923 = vpack.c.bf16 %v899, %v899
        %v924 = vpack.c.bf16 %v920, %v920
        %927 = vrot.lane.b32.xlu0 %v923, 16
        %v928 = vpop.permute.xlu0 %927
        %929 = vrot.lane.b32.xlu0 %v924, 16
        %v930 = vpop.permute.xlu0 %929
        %vm933 = vcmask 191616
        %934 = vst.msk [vmem:[#allocation2] sm:$0xf] %vm933, %v928
        %935 = vst.msk [vmem:[#allocation2 + $0x4] sm:$0xf] %vm933, %v930
        %936 = vrot.lane.b32.xlu0 %v567, 104
        %v937 = vpop.permute.xlu0 %936
        %938 = vrot.lane.b32.xlu0 %v567, 72
        %v939 = vpop.permute.xlu0 %938
        %v941 = vsel %vm570, %v937, 0
        %v944 = vsel %vm570, %v939, 0
        %946 = vmatpush.bf16.xpose.msra.mxu0 0
        %947 = vmatpush.bf16.xpose.msra.mxu0 0
        %948 = vmatpush.bf16.xpose.msra.mxu0 0
        %949 = vmatpush.bf16.xpose.msra.mxu0 0
        %950 = vmatpush.bf16.xpose.msra.mxu0 0
        %951 = vmatpush.bf16.xpose.msra.mxu0 0
        %952 = vmatpush.bf16.xpose.msra.mxu0 0
        %953 = vmatpush.bf16.xpose.msra.mxu0 %v944
        %954 = vmatmul.bf16.gmra.mxu0 %v941
        %v955 = vpop.f32.mrf.mxu0
        %v956 = vadd.f32 0.0, %v955
        %v957 = vpop.f32.mrf.mxu0
        %958 = vdwg.mxu0
        %959 = vrot.lane.b32.xlu0 %v592, 104
        %v960 = vpop.permute.xlu0 %959
        %961 = vrot.lane.b32.xlu0 %v592, 72
        %v962 = vpop.permute.xlu0 %961
        %v964 = vsel %vm570, %v960, 0
        %v967 = vsel %vm570, %v962, 0
        %969 = vmatpush.bf16.xpose.msra.mxu0 0
        %970 = vmatpush.bf16.xpose.msra.mxu0 0
        %971 = vmatpush.bf16.xpose.msra.mxu0 0
        %972 = vmatpush.bf16.xpose.msra.mxu0 0
        %973 = vmatpush.bf16.xpose.msra.mxu0 0
        %974 = vmatpush.bf16.xpose.msra.mxu0 0
        %975 = vmatpush.bf16.xpose.msra.mxu0 0
        %976 = vmatpush.bf16.xpose.msra.mxu0 %v967
        %977 = vmatmul.bf16.gmra.mxu0 %v964
        %v978 = vpop.f32.mrf.mxu0
        %v979 = vadd.f32 0.0, %v978
        %v980 = vpop.f32.mrf.mxu0
        %981 = vdwg.mxu0
        %v982 = vsel %vm570, %v956, -inf
        %983 = vmax.xlane.f32.xlu0 %v982
        %v984 = vpop.xlane.xlu0 %983
        %v985 = vsel %vm570, %v979, -inf
        %986 = vmax.xlane.f32.xlu0 %v985
        %v987 = vpop.xlane.xlu0 %986
        %v988 = vsub.f32 %v956, %v984
        %v989 = vsub.f32 %v979, %v987
        %v990 = vmul.f32 %v988, 1.442695
        %v991 = vpow.pop %v990
        %v992 = vmul.f32 %v989, 1.442695
        %v993 = vpow.pop %v992
        %v994 = vsel %vm570, %v991, 0.0
        %995 = vadd.xlane.f32.xlu0 %v994
        %v996 = vpop.xlane.xlu0 %995
        %v997 = vsel %vm570, %v993, 0.0
        %998 = vadd.xlane.f32.xlu0 %v997
        %v999 = vpop.xlane.xlu0 %998
        %v1000 = vrcp.pop %v996
        %v1001 = vrcp.pop %v999
        %v1002 = vmul.f32 %v991, %v1000
        %v1003 = vmul.f32 %v993, %v1001
        %v1004 = vpack.c.bf16 %v1002, %v1002
        %v1005 = vpack.c.bf16 %v1003, %v1003
        %1006 = vrot.lane.b32.xlu0 %v567, 40
        %v1007 = vpop.permute.xlu0 %1006
        %v1009 = vsel %vm570, %v1004, 0
        %v1012 = vsel %vm643, %v1007, 0
        %1014 = vmatpush.bf16.msra.mxu0 0
        %1015 = vmatpush.bf16.msra.mxu0 0
        %1016 = vmatpush.bf16.msra.mxu0 0
        %1017 = vmatpush.bf16.msra.mxu0 0
        %1018 = vmatpush.bf16.msra.mxu0 0
        %1019 = vmatpush.bf16.msra.mxu0 0
        %1020 = vmatpush.bf16.msra.mxu0 0
        %1021 = vmatpush.bf16.msra.mxu0 %v1012
        %1022 = vmatmul.bf16.gmra.mxu0 %v1009
        %v1023 = vpop.f32.mrf.mxu0
        %v1024 = vadd.f32 0.0, %v1023
        %v1025 = vpop.f32.mrf.mxu0
        %1026 = vdwg.mxu0
        %1027 = vrot.lane.b32.xlu0 %v592, 40
        %v1028 = vpop.permute.xlu0 %1027
        %v1030 = vsel %vm570, %v1005, 0
        %v1033 = vsel %vm643, %v1028, 0
        %1035 = vmatpush.bf16.msra.mxu0 0
        %1036 = vmatpush.bf16.msra.mxu0 0
        %1037 = vmatpush.bf16.msra.mxu0 0
        %1038 = vmatpush.bf16.msra.mxu0 0
        %1039 = vmatpush.bf16.msra.mxu0 0
        %1040 = vmatpush.bf16.msra.mxu0 0
        %1041 = vmatpush.bf16.msra.mxu0 0
        %1042 = vmatpush.bf16.msra.mxu0 %v1033
        %1043 = vmatmul.bf16.gmra.mxu0 %v1030
        %v1044 = vpop.f32.mrf.mxu0
        %v1045 = vadd.f32 0.0, %v1044
        %v1046 = vpop.f32.mrf.mxu0
        %1047 = vdwg.mxu0
        %v1048 = vpack.c.bf16 %v1024, %v1024
        %v1049 = vpack.c.bf16 %v1045, %v1045
        %1052 = vrot.lane.b32.xlu0 %v1048, 24
        %v1053 = vpop.permute.xlu0 %1052
        %1054 = vrot.lane.b32.xlu0 %v1049, 24
        %v1055 = vpop.permute.xlu0 %1054
        %vm1058 = vcmask 257216
        %1059 = vst.msk [vmem:[#allocation2] sm:$0xf] %vm1058, %v1053
        %1060 = vst.msk [vmem:[#allocation2 + $0x4] sm:$0xf] %vm1058, %v1055
        %v1061 = vld [vmem:[#allocation2] sm:$0xf]
        %v1062 = vld [vmem:[#allocation2 + $0x4] sm:$0xf]
        %v1063 = vld [vmem:[%s5] sm:$0xf]
        %v1064 = vld [vmem:[%s5 + $0x4] sm:$0xf]
        %v1065 = vld [vmem:[%s5 + $0x8] sm:$0xf]
        %v1066 = vld [vmem:[%s5 + $0xc] sm:$0xf]
        %v1067 = vld [vmem:[%s6] sm:$0x1]
        %v1069 = vperm.slane %v1067, 0
        %v1073 = vunpack.c.l.b16 %v1061
        %v1074 = vunpack.c.l.b16 %v1062
        %v1075 = vpack.c.b16 %v1074, %v1073
        %v1080 = vunpack.c.l.b16 %v1063
        %v1081 = vunpack.c.l.b16 %v1064
        %v1082 = vunpack.c.l.b16 %v1065
        %v1083 = vunpack.c.l.b16 %v1066
        %v1084 = vpack.c.b16 %v1081, %v1080
        %v1085 = vpack.c.b16 %v1083, %v1082
        %v1089 = vsel %vm463, %v1075, 0
        %1091 = vmatpush.bf16.msra.mxu0 0
        %1092 = vmatpush.bf16.msra.mxu0 0
        %1093 = vmatpush.bf16.msra.mxu0 0
        %1094 = vmatpush.bf16.msra.mxu0 0
        %1095 = vmatpush.bf16.msra.mxu0 0
        %1096 = vmatpush.bf16.msra.mxu0 0
        %1097 = vmatpush.bf16.msra.mxu0 %v1085
        %1098 = vmatpush.bf16.msra.mxu0 %v1084
        %1099 = vmatmul.bf16.gmra.mxu0 %v1089
        %v1100 = vpop.f32.mrf.mxu0
        %v1101 = vadd.f32 %v1069, %v1100
        %v1102 = vpop.f32.mrf.mxu0
        %v1103 = vadd.f32 %v1069, %v1102
        %1104 = vdwg.mxu0
        %v1105 = vadd.f32 %v459, %v1101
        %v1106 = vadd.f32 %v460, %v1103
        %v1107 = vld [vmem:[%s7] sm:$0x1]
        %v1108 = vld [vmem:[%s8] sm:$0x1]
        %v1109 = vsel %vm463, %v1105, 0.0
        %1110 = vadd.xlane.f32.xlu0 %v1109
        %v1111 = vpop.xlane.xlu0 %1110
        %v1112 = vsel %vm463, %v1106, 0.0
        %1113 = vadd.xlane.f32.xlu0 %v1112
        %v1114 = vpop.xlane.xlu0 %1113
        %v1115 = vmul.f32 %v1111, %v476
        %v1116 = vmul.f32 %v1114, %v476
        %v1117 = vsub.f32 %v1105, %v1115
        %v1118 = vsub.f32 %v1106, %v1116
        %v1119 = vmul.f32 %v1117, %v1117
        %v1120 = vmul.f32 %v1118, %v1118
        %v1121 = vsel %vm463, %v1119, 0.0
        %1122 = vadd.xlane.f32.xlu0 %v1121
        %v1123 = vpop.xlane.xlu0 %1122
        %v1124 = vsel %vm463, %v1120, 0.0
        %1125 = vadd.xlane.f32.xlu0 %v1124
        %v1126 = vpop.xlane.xlu0 %1125
        %v1127 = vmul.f32 %v1123, %v476
        %v1128 = vmul.f32 %v1126, %v476
        %v1129 = vadd.f32 %v1127, 1e-05
        %v1130 = vadd.f32 %v1128, 1e-05
        %v1131 = vrsqrt.pop %v1129
        %v1132 = vmul.f32 %v1131, %v1129
        %v1133 = vmul.f32 %v1132, %v1131
        %v1134 = vmul.f32 0.5, %v1133
        %v1135 = vsub.f32 1.5, %v1134
        %v1136 = vmul.f32 %v1131, %v1135
        %vm1137 = vweird.f32 %v1129
        %vm1138 = vweird.f32 %v1131
        %vm1139 = vmor %vm1137, %vm1138
        %v1140 = vsel %vm1139, %v1131, %v1136
        %v1141 = vrsqrt.pop %v1130
        %v1142 = vmul.f32 %v1141, %v1130
        %v1143 = vmul.f32 %v1142, %v1141
        %v1144 = vmul.f32 0.5, %v1143
        %v1145 = vsub.f32 1.5, %v1144
        %v1146 = vmul.f32 %v1141, %v1145
        %vm1147 = vweird.f32 %v1130
        %vm1148 = vweird.f32 %v1141
        %vm1149 = vmor %vm1147, %vm1148
        %v1150 = vsel %vm1149, %v1141, %v1146
        %v1151 = vmul.f32 %v1117, %v1140
        %v1152 = vmul.f32 %v1118, %v1150
        %v1154 = vperm.slane %v1107, 0
        %v1156 = vmul.f32 %v1151, %v1154
        %v1157 = vmul.f32 %v1152, %v1154
        %v1159 = vperm.slane %v1108, 0
        %v1161 = vadd.f32 %v1156, %v1159
        %v1162 = vadd.f32 %v1157, %v1159
        %v1163 = vpack.c.bf16 %v1162, %v1161
        %v1164 = vld [vmem:[%s9] sm:$0xf]
        %v1165 = vld [vmem:[%s9 + $0x4] sm:$0xf]
        %v1166 = vld [vmem:[%s9 + $0x8] sm:$0xf]
        %v1167 = vld [vmem:[%s9 + $0xc] sm:$0xf]
        %v1168 = vld [vmem:[%s10] sm:$0x1]
        %v1170 = vperm.slane %v1168, 0
        %v1176 = vunpack.c.l.b16 %v1164
        %v1177 = vunpack.c.l.b16 %v1165
        %v1178 = vunpack.c.l.b16 %v1166
        %v1179 = vunpack.c.l.b16 %v1167
        %v1180 = vpack.c.b16 %v1177, %v1176
        %v1181 = vpack.c.b16 %v1179, %v1178
        %v1185 = vsel %vm463, %v1163, 0
        %1187 = vmatpush.bf16.msra.mxu0 0
        %1188 = vmatpush.bf16.msra.mxu0 0
        %1189 = vmatpush.bf16.msra.mxu0 0
        %1190 = vmatpush.bf16.msra.mxu0 0
        %1191 = vmatpush.bf16.msra.mxu0 0
        %1192 = vmatpush.bf16.msra.mxu0 0
        %1193 = vmatpush.bf16.msra.mxu0 %v1181
        %1194 = vmatpush.bf16.msra.mxu0 %v1180
        %1195 = vmatmul.bf16.gmra.mxu0 %v1185
        %v1196 = vpop.f32.mrf.mxu0
        %v1197 = vadd.f32 %v1170, %v1196
        %v1198 = vpop.f32.mrf.mxu0
        %v1199 = vadd.f32 %v1170, %v1198
        %1200 = vdwg.mxu0
        %v1201 = vpack.c.bf16 %v1197, %v1197
        %v1202 = vpack.c.bf16 %v1199, %v1199
        %v1203 = vunpack.c.l.bf16 %v1201
        %v1204 = vunpack.c.l.bf16 %v1202
        %v1205 = vmul.f32 %v1203, 1.703125
        %v1206 = vmul.f32 %v1204, 1.703125
        %v1207 = vpack.c.bf16 %v1205, %v1205
        %v1208 = vpack.c.bf16 %v1206, %v1206
        %v1209 = vxor.u32 %v1207, 2147516416
        %v1210 = vxor.u32 %v1208, 2147516416
        %v1211 = vunpack.c.l.bf16 %v1209
        %v1212 = vunpack.c.l.bf16 %v1210
        %v1213 = vmul.f32 %v1211, 1.442695
        %v1214 = vpow.pop %v1213
        %v1215 = vmul.f32 %v1212, 1.442695
        %v1216 = vpow.pop %v1215
        %v1217 = vpack.c.bf16 %v1214, %v1214
        %v1218 = vpack.c.bf16 %v1216, %v1216
        %v1219 = vunpack.c.l.bf16 %v1217
        %v1220 = vunpack.c.l.bf16 %v1218
        %v1221 = vadd.f32 %v1219, 1.0
        %v1222 = vadd.f32 %v1220, 1.0
        %v1223 = vpack.c.bf16 %v1221, %v1221
        %v1224 = vpack.c.bf16 %v1222, %v1222
        %v1225 = vunpack.c.h.bf16 1065369472
        %v1226 = vunpack.c.l.bf16 1065369472
        %v1227 = vunpack.c.h.bf16 %v1223
        %v1228 = vunpack.c.l.bf16 %v1223
        %v1229 = vrcp.pop %v1227
        %v1230 = vmul.f32 %v1225, %v1229
        %v1231 = vrcp.pop %v1228
        %v1232 = vmul.f32 %v1226, %v1231
        %v1233 = vpack.c.bf16 %v1230, %v1232
        %v1234 = vunpack.c.h.bf16 %v1224
        %v1235 = vunpack.c.l.bf16 %v1224
        %v1236 = vrcp.pop %v1234
        %v1237 = vmul.f32 %v1225, %v1236
        %v1238 = vrcp.pop %v1235
        %v1239 = vmul.f32 %v1226, %v1238
        %v1240 = vpack.c.bf16 %v1237, %v1239
        %v1241 = vunpack.c.l.bf16 %v1233
        %v1242 = vunpack.c.l.bf16 %v1240
        %v1243 = vmul.f32 %v1203, %v1241
        %v1244 = vmul.f32 %v1204, %v1242
        %v1245 = vpack.c.bf16 %v1244, %v1243
        %v1246 = vld [vmem:[%s11] sm:$0xf]
        %v1247 = vld [vmem:[%s11 + $0x4] sm:$0xf]
        %v1248 = vld [vmem:[%s11 + $0x8] sm:$0xf]
        %v1249 = vld [vmem:[%s11 + $0xc] sm:$0xf]
        %v1250 = vld [vmem:[%s11 + $0x10] sm:$0xf]
        %v1251 = vld [vmem:[%s11 + $0x14] sm:$0xf]
        %v1252 = vld [vmem:[%s11 + $0x18] sm:$0xf]
        %v1253 = vld [vmem:[%s11 + $0x1c] sm:$0xf]
        %v1254 = vld [vmem:[%s11 + $0x20] sm:$0xf]
        %v1255 = vld [vmem:[%s11 + $0x24] sm:$0xf]
        %v1256 = vld [vmem:[%s11 + $0x28] sm:$0xf]
        %v1257 = vld [vmem:[%s11 + $0x2c] sm:$0xf]
        %v1258 = vld [vmem:[%s11 + $0x30] sm:$0xf]
        %v1259 = vld [vmem:[%s11 + $0x34] sm:$0xf]
        %v1260 = vld [vmem:[%s11 + $0x38] sm:$0xf]
        %v1261 = vld [vmem:[%s11 + $0x3c] sm:$0xf]
        %v1262 = vld [vmem:[%s12] sm:$0x1]
        %v1264 = vperm.slane %v1262, 0
        %v1282 = vunpack.c.l.b16 %v1246
        %v1283 = vunpack.c.l.b16 %v1247
        %v1284 = vunpack.c.l.b16 %v1248
        %v1285 = vunpack.c.l.b16 %v1249
        %v1286 = vunpack.c.l.b16 %v1250
        %v1287 = vunpack.c.l.b16 %v1251
        %v1288 = vunpack.c.l.b16 %v1252
        %v1289 = vunpack.c.l.b16 %v1253
        %v1290 = vunpack.c.l.b16 %v1254
        %v1291 = vunpack.c.l.b16 %v1255
        %v1292 = vunpack.c.l.b16 %v1256
        %v1293 = vunpack.c.l.b16 %v1257
        %v1294 = vunpack.c.l.b16 %v1258
        %v1295 = vunpack.c.l.b16 %v1259
        %v1296 = vunpack.c.l.b16 %v1260
        %v1297 = vunpack.c.l.b16 %v1261
        %v1298 = vpack.c.b16 %v1283, %v1282
        %v1299 = vpack.c.b16 %v1285, %v1284
        %v1300 = vpack.c.b16 %v1287, %v1286
        %v1301 = vpack.c.b16 %v1289, %v1288
        %v1302 = vpack.c.b16 %v1291, %v1290
        %v1303 = vpack.c.b16 %v1293, %v1292
        %v1304 = vpack.c.b16 %v1295, %v1294
        %v1305 = vpack.c.b16 %v1297, %v1296
        %1314 = vmatpush.bf16.msra.mxu0 %v1305
        %1315 = vmatpush.bf16.msra.mxu0 %v1304
        %1316 = vmatpush.bf16.msra.mxu0 %v1303
        %1317 = vmatpush.bf16.msra.mxu0 %v1302
        %1318 = vmatpush.bf16.msra.mxu0 %v1301
        %1319 = vmatpush.bf16.msra.mxu0 %v1300
        %1320 = vmatpush.bf16.msra.mxu0 %v1299
        %1321 = vmatpush.bf16.msra.mxu0 %v1298
        %1322 = vmatmul.bf16.gmra.mxu0 %v1245
        %v1323 = vpop.f32.mrf.mxu0
        %v1324 = vadd.f32 %v1264, %v1323
        %v1325 = vpop.f32.mrf.mxu0
        %v1326 = vadd.f32 %v1264, %v1325
        %1327 = vdwg.mxu0
        %v1328 = vadd.f32 %v1105, %v1324
        %v1329 = vadd.f32 %v1106, %v1326
        %1330 = vst.msk [vmem:[%s449] sm:$0xff] %vm463, %v1328
        %1331 = vst.msk [vmem:[%s449 + $0x8] sm:$0xff] %vm463, %v1329
        %s1332 = sand.u32 %s314, 1
        %s1333 = scalar_lea.sflag [#allocation5], %s1332
        %s1334 = sand.u32 %s314, 1
        %s1335 = smul.addr %s1334, 16
        %s1336 = scalar_lea.vmem [#allocation6], %s1335
        // Predicated region
        $region77: #{tpu_custom_call.1} parent=71 // pred_check
          %p1337 = pneg %p324
        $region78: #{tpu_custom_call.1} parent=71 // pred_check_branch
          %1339 = sbr.rel (%p1337) target = $region80
        $region79: #{tpu_custom_call.1} parent=71 // pred_region
          %s1340 = smul.u32 2, %s28
          %1342 = vsyncadd %s1333, 0
          %s1343 = smul.addr %s1340, 8
          %s1344 = scalar_lea.hbm %s13, %s1343
          %s1345 = sshll.u32 %s1336, 4
          %s1346 = int_to_ptr.vmem [resolvable:$true] %s1345
          %s1347 = sshll.u32 %s1344, 4
          %s1348 = int_to_ptr.hbm [resolvable:$true] %s1347
          %1353 = dma.vmem_to_hbm [thread:$0]  %s1346, 256, %s1348, %s1333, 128, 128, 8
        $region80: #{tpu_custom_call.1} parent=71 // pred_fallthru
          _
      $region72: #{tpu_custom_call.1} parent=5 // pred_fallthru
        _
      %p1354 = scmp.le.s32.totalorder 2, %s23
      // Predicated region
      $region81: #{tpu_custom_call.1} parent=5 // pred_check
        %p1355 = pneg %p1354
      $region82: #{tpu_custom_call.1} parent=5 // pred_check_branch
        %1357 = sbr.rel (%p1355) target = $region84
      $region83: #{tpu_custom_call.1} parent=5 // pred_region
        %s1358 = ssub.s32 %s23, 2
        // Predicated region
        $region85: #{tpu_custom_call.1} parent=83 // pred_check
          %p1359 = pneg %p330
        $region86: #{tpu_custom_call.1} parent=83 // pred_check_branch
          %1361 = sbr.rel (%p1359) target = $region88
        $region87: #{tpu_custom_call.1} parent=83 // pred_region
          %s1362 = sand.u32 %s315, 1
          %s1363 = scalar_lea.sflag [#allocation5], %s1362
          %s1364 = sand.u32 %s315, 1
          %s1365 = smul.addr %s1364, 16
          %s1366 = scalar_lea.vmem [#allocation6], %s1365
          %1368 = dma.done %s1363, 256
        $region88: #{tpu_custom_call.1} parent=83 // pred_fallthru
          _
      $region84: #{tpu_custom_call.1} parent=5 // pred_fallthru
        _
    $region6: #{tpu_custom_call.1} parent=1 // loop_footer
      %s27 = sadd.s32 1, %s23
    $region7: #{tpu_custom_call.1} parent=1 // loop_footer_branch
      %22 = sbr.rel target = $region3
    $region8: #{tpu_custom_call.1} parent=1 // loop_exit
      _
    %1369 = vsyncpa [#allocation4], 1
    %s1370 = scalar_lea.sflag [#allocation4], 1
    %1371 = vsyncpa %s1370, 1
    %1372 = vsyncpa [#allocation5], 1
    %s1373 = scalar_lea.sflag [#allocation5], 1
    %1374 = vsyncpa %s1373, 1

// kernel: tpu_custom_call.1
$region0: #{tpu_custom_call.1}
  #allocation0 [shape = 'u32[]', space=smem, size = 0x4, offset = 0x4, fixed_abs, tag = 'smem constant byte address 0x4 - core index']
  #allocation1 [shape = 'u32[72,128]{1,0:T(1,128)}', space=vmem, size = 0x9000, scoped, tag = 'internal scratch']
  #allocation2 [shape = 'bf16[16,32]{1,0:T(8,128)(2,1)}', space=vmem, size = 0x1000, scoped, tag = 'scratch operand']
  %s0 = inlined_call_operand.vmem [shape: f32[4,8,32], index: 0, kind: input, shape index: {}]
  %s1 = inlined_call_operand.hbm [shape: f32[1,32], index: 1, kind: input, shape index: {}]
  %s2 = inlined_call_operand.vmem [shape: f32[1,32], index: 2, kind: input, shape index: {}]
  %s3 = inlined_call_operand.vmem [shape: bf16[32,96], index: 3, kind: input, shape index: {}]
  %s4 = inlined_call_operand.vmem [shape: f32[1,96], index: 4, kind: input, shape index: {}]
  %s5 = inlined_call_operand.vmem [shape: bf16[32,32], index: 5, kind: input, shape index: {}]
  %s6 = inlined_call_operand.vmem [shape: f32[1,32], index: 6, kind: input, shape index: {}]
  %s7 = inlined_call_operand.vmem [shape: f32[1,32], index: 7, kind: input, shape index: {}]
  %s8 = inlined_call_operand.vmem [shape: f32[1,32], index: 8, kind: input, shape index: {}]
  %s9 = inlined_call_operand.vmem [shape: bf16[32,128], index: 9, kind: input, shape index: {}]
  %s10 = inlined_call_operand.vmem [shape: f32[1,128], index: 10, kind: input, shape index: {}]
  %s11 = inlined_call_operand.vmem [shape: bf16[128,32], index: 11, kind: input, shape index: {}]
  %s12 = inlined_call_operand.vmem [shape: f32[1,32], index: 12, kind: input, shape index: {}]
  %s13 = inlined_call_operand.hbm [shape: f32[4,8,32], index: 13, kind: output, shape index: {}]
  %s14 = sld [smem:[#allocation0]]
  $region89: #{tpu_custom_call.1} parent=0
    _
  %s16 = ssub.s32 1, %s14
  %s17 = scalar_select 0, %s16, %s14
  $region1: #{tpu_custom_call.1} parent=0
    #allocation3 [shape = 'u8[512]{0}', space=vmem, size = 0x400, scoped, tag = 'input window, operand 1, single buffered']
    #allocation4 [shape = 's32[2]{0}', space=sflag, size = 0x8, scoped, tag = 'scoped memory for tpu_custom_call.1']
    #allocation5 [shape = 's32[2]{0}', space=sflag, size = 0x8, scoped, tag = 'scoped memory for tpu_custom_call.1']
    #allocation6 [shape = 'u8[16384]{0}', space=vmem, size = 0x4000, scoped, tag = 'output window, operand 0']
    %18 = vsyncpa [#allocation4], 0
    %19 = vsyncpa [#allocation5], 0
    %s20 = scalar_lea.sflag [#allocation5], 1
    %21 = vsyncpa %s20, 0
    loop: start=0, step=1, limit=4
    $region2: #{tpu_custom_call.1} parent=1 // loop_pre_header
      _
    $region3: #{tpu_custom_call.1} parent=1 // loop_header
      %s23 = sphi 0, %s27
      %p24 = scmp.ge.s32.totalorder %s23, 4
      %s33 = sphi 0, %s35
      %s36 = sphi 0, %s33
      %s37 = sphi 0, %s36
      %s53 = sphi 0, %s37
      %s57 = sphi 0, %s57
      %s59 = sphi 0, %s57
      %s60 = sphi 0, %s59
      %s74 = sphi 0, %s60
      %s78 = sphi 0, %s78
      %s80 = sphi 0, %s78
      %s81 = sphi 0, %s80
      %s95 = sphi 0, %s81
      %s99 = sphi 0, %s99
      %s101 = sphi 0, %s99
      %s102 = sphi 0, %s101
      %s116 = sphi 0, %s102
      %s120 = sphi 0, %s120
      %s122 = sphi 0, %s120
      %s123 = sphi 0, %s122
      %s137 = sphi 0, %s123
      %s141 = sphi 0, %s141
      %s143 = sphi 0, %s141
      %s144 = sphi 0, %s143
      %s158 = sphi 0, %s144
      %s162 = sphi 0, %s162
      %s164 = sphi 0, %s162
      %s165 = sphi 0, %s164
      %s179 = sphi 0, %s165
      %s183 = sphi 0, %s183
      %s185 = sphi 0, %s183
      %s186 = sphi 0, %s185
      %s200 = sphi 0, %s186
      %s204 = sphi 0, %s204
      %s206 = sphi 0, %s204
      %s207 = sphi 0, %s206
      %s221 = sphi 0, %s207
      %s225 = sphi 0, %s225
      %s227 = sphi 0, %s225
      %s228 = sphi 0, %s227
      %s242 = sphi 0, %s228
      %s246 = sphi 0, %s246
      %s248 = sphi 0, %s246
      %s249 = sphi 0, %s248
      %s263 = sphi 0, %s249
      %s267 = sphi 0, %s267
      %s269 = sphi 0, %s267
      %s270 = sphi 0, %s269
      %s284 = sphi 0, %s270
      %s288 = sphi 0, %s288
      %s290 = sphi 0, %s288
      %s291 = sphi 0, %s290
      %s305 = sphi 0, %s291
      %s311 = sphi 0, %s313
      %s314 = sphi 0, %s311
      %s315 = sphi 0, %s314
      %s331 = sphi 0, %s315
    $region4: #{tpu_custom_call.1} parent=1 // loop_header_branch
      %26 = sbr.rel (%p24) target = $region8
    $region5: #{tpu_custom_call.1} parent=1 // loop_body
      %s28 = ssub.s32 %s23, 1
      %s29 = ssub.s32 %s23, 2
      %s30 = sadd.s32 %s23, 1
      %s31 = ssub.s32 %s23, %s30
      %p32 = scmp.eq.s32.totalorder %s31, 0
      %s34 = sadd.s32 %s33, 1
      %s35 = scalar_select %p32, %s33, %s34
      %p38 = pneg %p32
      %p39 = scmp.eq.s32.totalorder %s23, 1
      %p40 = por %p38, %p39
      %p41 = scmp.ne.s32.totalorder %s33, %s36
      %p42 = scmp.eq.s32.totalorder %s23, 0
      %p43 = por %p41, %p42
      %p44 = scmp.ne.s32.totalorder %s33, %s36
      %p45 = scmp.eq.s32.totalorder %s28, 1
      %p46 = por %p44, %p45
      %p47 = scmp.ne.s32.totalorder %s36, %s37
      %p48 = scmp.eq.s32.totalorder %s28, 0
      %p49 = por %p47, %p48
      %p50 = scmp.ne.s32.totalorder %s36, %s37
      %p51 = scmp.eq.s32.totalorder %s29, 1
      %p52 = por %p50, %p51
      %p54 = scmp.ne.s32.totalorder %s37, %s53
      %p55 = scmp.eq.s32.totalorder %s29, 0
      %p56 = por %p54, %p55
      %s58 = sadd.s32 %s57, 1
      %p61 = scmp.eq.s32.totalorder %s23, 1
      %p62 = scmp.ne.s32.totalorder %s57, %s59
      %p63 = scmp.eq.s32.totalorder %s23, 0
      %p64 = por %p62, %p63
      %p65 = scmp.ne.s32.totalorder %s57, %s59
      %p66 = scmp.eq.s32.totalorder %s28, 1
      %p67 = por %p65, %p66
      %p68 = scmp.ne.s32.totalorder %s59, %s60
      %p69 = scmp.eq.s32.totalorder %s28, 0
      %p70 = por %p68, %p69
      %p71 = scmp.ne.s32.totalorder %s59, %s60
      %p72 = scmp.eq.s32.totalorder %s29, 1
      %p73 = por %p71, %p72
      %p75 = scmp.ne.s32.totalorder %s60, %s74
      %p76 = scmp.eq.s32.totalorder %s29, 0
      %p77 = por %p75, %p76
      %s79 = sadd.s32 %s78, 1
      %p82 = scmp.eq.s32.totalorder %s23, 1
      %p83 = scmp.ne.s32.totalorder %s78, %s80
      %p84 = scmp.eq.s32.totalorder %s23, 0
      %p85 = por %p83, %p84
      %p86 = scmp.ne.s32.totalorder %s78, %s80
      %p87 = scmp.eq.s32.totalorder %s28, 1
      %p88 = por %p86, %p87
      %p89 = scmp.ne.s32.totalorder %s80, %s81
      %p90 = scmp.eq.s32.totalorder %s28, 0
      %p91 = por %p89, %p90
      %p92 = scmp.ne.s32.totalorder %s80, %s81
      %p93 = scmp.eq.s32.totalorder %s29, 1
      %p94 = por %p92, %p93
      %p96 = scmp.ne.s32.totalorder %s81, %s95
      %p97 = scmp.eq.s32.totalorder %s29, 0
      %p98 = por %p96, %p97
      %s100 = sadd.s32 %s99, 1
      %p103 = scmp.eq.s32.totalorder %s23, 1
      %p104 = scmp.ne.s32.totalorder %s99, %s101
      %p105 = scmp.eq.s32.totalorder %s23, 0
      %p106 = por %p104, %p105
      %p107 = scmp.ne.s32.totalorder %s99, %s101
      %p108 = scmp.eq.s32.totalorder %s28, 1
      %p109 = por %p107, %p108
      %p110 = scmp.ne.s32.totalorder %s101, %s102
      %p111 = scmp.eq.s32.totalorder %s28, 0
      %p112 = por %p110, %p111
      %p113 = scmp.ne.s32.totalorder %s101, %s102
      %p114 = scmp.eq.s32.totalorder %s29, 1
      %p115 = por %p113, %p114
      %p117 = scmp.ne.s32.totalorder %s102, %s116
      %p118 = scmp.eq.s32.totalorder %s29, 0
      %p119 = por %p117, %p118
      %s121 = sadd.s32 %s120, 1
      %p124 = scmp.eq.s32.totalorder %s23, 1
      %p125 = scmp.ne.s32.totalorder %s120, %s122
      %p126 = scmp.eq.s32.totalorder %s23, 0
      %p127 = por %p125, %p126
      %p128 = scmp.ne.s32.totalorder %s120, %s122
      %p129 = scmp.eq.s32.totalorder %s28, 1
      %p130 = por %p128, %p129
      %p131 = scmp.ne.s32.totalorder %s122, %s123
      %p132 = scmp.eq.s32.totalorder %s28, 0
      %p133 = por %p131, %p132
      %p134 = scmp.ne.s32.totalorder %s122, %s123
      %p135 = scmp.eq.s32.totalorder %s29, 1
      %p136 = por %p134, %p135
      %p138 = scmp.ne.s32.totalorder %s123, %s137
      %p139 = scmp.eq.s32.totalorder %s29, 0
      %p140 = por %p138, %p139
      %s142 = sadd.s32 %s141, 1
      %p145 = scmp.eq.s32.totalorder %s23, 1
      %p146 = scmp.ne.s32.totalorder %s141, %s143
      %p147 = scmp.eq.s32.totalorder %s23, 0
      %p148 = por %p146, %p147
      %p149 = scmp.ne.s32.totalorder %s141, %s143
      %p150 = scmp.eq.s32.totalorder %s28, 1
      %p151 = por %p149, %p150
      %p152 = scmp.ne.s32.totalorder %s143, %s144
      %p153 = scmp.eq.s32.totalorder %s28, 0
      %p154 = por %p152, %p153
      %p155 = scmp.ne.s32.totalorder %s143, %s144
      %p156 = scmp.eq.s32.totalorder %s29, 1
      %p157 = por %p155, %p156
      %p159 = scmp.ne.s32.totalorder %s144, %s158
      %p160 = scmp.eq.s32.totalorder %s29, 0
      %p161 = por %p159, %p160
      %s163 = sadd.s32 %s162, 1
      %p166 = scmp.eq.s32.totalorder %s23, 1
      %p167 = scmp.ne.s32.totalorder %s162, %s164
      %p168 = scmp.eq.s32.totalorder %s23, 0
      %p169 = por %p167, %p168
      %p170 = scmp.ne.s32.totalorder %s162, %s164
      %p171 = scmp.eq.s32.totalorder %s28, 1
      %p172 = por %p170, %p171
      %p173 = scmp.ne.s32.totalorder %s164, %s165
      %p174 = scmp.eq.s32.totalorder %s28, 0
      %p175 = por %p173, %p174
      %p176 = scmp.ne.s32.totalorder %s164, %s165
      %p177 = scmp.eq.s32.totalorder %s29, 1
      %p178 = por %p176, %p177
      %p180 = scmp.ne.s32.totalorder %s165, %s179
      %p181 = scmp.eq.s32.totalorder %s29, 0
      %p182 = por %p180, %p181
      %s184 = sadd.s32 %s183, 1
      %p187 = scmp.eq.s32.totalorder %s23, 1
      %p188 = scmp.ne.s32.totalorder %s183, %s185
      %p189 = scmp.eq.s32.totalorder %s23, 0
      %p190 = por %p188, %p189
      %p191 = scmp.ne.s32.totalorder %s183, %s185
      %p192 = scmp.eq.s32.totalorder %s28, 1
      %p193 = por %p191, %p192
      %p194 = scmp.ne.s32.totalorder %s185, %s186
      %p195 = scmp.eq.s32.totalorder %s28, 0
      %p196 = por %p194, %p195
      %p197 = scmp.ne.s32.totalorder %s185, %s186
      %p198 = scmp.eq.s32.totalorder %s29, 1
      %p199 = por %p197, %p198
      %p201 = scmp.ne.s32.totalorder %s186, %s200
      %p202 = scmp.eq.s32.totalorder %s29, 0
      %p203 = por %p201, %p202
      %s205 = sadd.s32 %s204, 1
      %p208 = scmp.eq.s32.totalorder %s23, 1
      %p209 = scmp.ne.s32.totalorder %s204, %s206
      %p210 = scmp.eq.s32.totalorder %s23, 0
      %p211 = por %p209, %p210
      %p212 = scmp.ne.s32.totalorder %s204, %s206
      %p213 = scmp.eq.s32.totalorder %s28, 1
      %p214 = por %p212, %p213
      %p215 = scmp.ne.s32.totalorder %s206, %s207
      %p216 = scmp.eq.s32.totalorder %s28, 0
      %p217 = por %p215, %p216
      %p218 = scmp.ne.s32.totalorder %s206, %s207
      %p219 = scmp.eq.s32.totalorder %s29, 1
      %p220 = por %p218, %p219
      %p222 = scmp.ne.s32.totalorder %s207, %s221
      %p223 = scmp.eq.s32.totalorder %s29, 0
      %p224 = por %p222, %p223
      %s226 = sadd.s32 %s225, 1
      %p229 = scmp.eq.s32.totalorder %s23, 1
      %p230 = scmp.ne.s32.totalorder %s225, %s227
      %p231 = scmp.eq.s32.totalorder %s23, 0
      %p232 = por %p230, %p231
      %p233 = scmp.ne.s32.totalorder %s225, %s227
      %p234 = scmp.eq.s32.totalorder %s28, 1
      %p235 = por %p233, %p234
      %p236 = scmp.ne.s32.totalorder %s227, %s228
      %p237 = scmp.eq.s32.totalorder %s28, 0
      %p238 = por %p236, %p237
      %p239 = scmp.ne.s32.totalorder %s227, %s228
      %p240 = scmp.eq.s32.totalorder %s29, 1
      %p241 = por %p239, %p240
      %p243 = scmp.ne.s32.totalorder %s228, %s242
      %p244 = scmp.eq.s32.totalorder %s29, 0
      %p245 = por %p243, %p244
      %s247 = sadd.s32 %s246, 1
      %p250 = scmp.eq.s32.totalorder %s23, 1
      %p251 = scmp.ne.s32.totalorder %s246, %s248
      %p252 = scmp.eq.s32.totalorder %s23, 0
      %p253 = por %p251, %p252
      %p254 = scmp.ne.s32.totalorder %s246, %s248
      %p255 = scmp.eq.s32.totalorder %s28, 1
      %p256 = por %p254, %p255
      %p257 = scmp.ne.s32.totalorder %s248, %s249
      %p258 = scmp.eq.s32.totalorder %s28, 0
      %p259 = por %p257, %p258
      %p260 = scmp.ne.s32.totalorder %s248, %s249
      %p261 = scmp.eq.s32.totalorder %s29, 1
      %p262 = por %p260, %p261
      %p264 = scmp.ne.s32.totalorder %s249, %s263
      %p265 = scmp.eq.s32.totalorder %s29, 0
      %p266 = por %p264, %p265
      %s268 = sadd.s32 %s267, 1
      %p271 = scmp.eq.s32.totalorder %s23, 1
      %p272 = scmp.ne.s32.totalorder %s267, %s269
      %p273 = scmp.eq.s32.totalorder %s23, 0
      %p274 = por %p272, %p273
      %p275 = scmp.ne.s32.totalorder %s267, %s269
      %p276 = scmp.eq.s32.totalorder %s28, 1
      %p277 = por %p275, %p276
      %p278 = scmp.ne.s32.totalorder %s269, %s270
      %p279 = scmp.eq.s32.totalorder %s28, 0
      %p280 = por %p278, %p279
      %p281 = scmp.ne.s32.totalorder %s269, %s270
      %p282 = scmp.eq.s32.totalorder %s29, 1
      %p283 = por %p281, %p282
      %p285 = scmp.ne.s32.totalorder %s270, %s284
      %p286 = scmp.eq.s32.totalorder %s29, 0
      %p287 = por %p285, %p286
      %s289 = sadd.s32 %s288, 1
      %p292 = scmp.eq.s32.totalorder %s23, 1
      %p293 = scmp.ne.s32.totalorder %s288, %s290
      %p294 = scmp.eq.s32.totalorder %s23, 0
      %p295 = por %p293, %p294
      %p296 = scmp.ne.s32.totalorder %s288, %s290
      %p297 = scmp.eq.s32.totalorder %s28, 1
      %p298 = por %p296, %p297
      %p299 = scmp.ne.s32.totalorder %s290, %s291
      %p300 = scmp.eq.s32.totalorder %s28, 0
      %p301 = por %p299, %p300
      %p302 = scmp.ne.s32.totalorder %s290, %s291
      %p303 = scmp.eq.s32.totalorder %s29, 1
      %p304 = por %p302, %p303
      %p306 = scmp.ne.s32.totalorder %s291, %s305
      %p307 = scmp.eq.s32.totalorder %s29, 0
      %p308 = por %p306, %p307
      %s309 = ssub.s32 %s23, %s30
      %p310 = scmp.eq.s32.totalorder %s309, 0
      %s312 = sadd.s32 %s311, 1
      %s313 = scalar_select %p310, %s311, %s312
      %p316 = pneg %p310
      %p317 = scmp.eq.s32.totalorder %s23, 1
      %p318 = por %p316, %p317
      %p319 = scmp.ne.s32.totalorder %s311, %s314
      %p320 = scmp.eq.s32.totalorder %s23, 0
      %p321 = por %p319, %p320
      %p322 = scmp.ne.s32.totalorder %s311, %s314
      %p323 = scmp.eq.s32.totalorder %s28, 1
      %p324 = por %p322, %p323
      %p325 = scmp.ne.s32.totalorder %s314, %s315
      %p326 = scmp.eq.s32.totalorder %s28, 0
      %p327 = por %p325, %p326
      %p328 = scmp.ne.s32.totalorder %s314, %s315
      %p329 = scmp.eq.s32.totalorder %s29, 1
      %p330 = por %p328, %p329
      %p332 = scmp.ne.s32.totalorder %s315, %s331
      %p333 = scmp.eq.s32.totalorder %s29, 0
      %p334 = por %p332, %p333
      %p335 = scmp.le.s32.totalorder 1, %s23
      %p336 = scmp.lt.s32.totalorder %s23, 3
      %p337 = pnand %p335, %p336
      %p338 = pneg %p337
      // Predicated region
      $region9: #{tpu_custom_call.1} parent=5 // pred_check
        _
      $region10: #{tpu_custom_call.1} parent=5 // pred_check_branch
        %340 = sbr.rel (%p337) target = $region12
      $region11: #{tpu_custom_call.1} parent=5 // pred_region
        %s341 = ssub.s32 %s23, 1
        // Predicated region
        $region13: #{tpu_custom_call.1} parent=11 // pred_check
          %p342 = pneg %p70
        $region14: #{tpu_custom_call.1} parent=11 // pred_check_branch
          %344 = sbr.rel (%p342) target = $region16
        $region15: #{tpu_custom_call.1} parent=11 // pred_region
          %346 = vsyncadd [#allocation4], 0
          %s348 = sshll.u32 %s1, 4
          %s349 = int_to_ptr.hbm [resolvable:$true] %s348
          %s350 = sshll.u32 [#allocation3], 4
          %s351 = int_to_ptr.vmem [resolvable:$true] %s350
          %353 = dma.hbm_to_vmem [thread:$0]  %s349, 16, %s351, [#allocation4]
        $region16: #{tpu_custom_call.1} parent=11 // pred_fallthru
          _
        // Predicated region
        $region17: #{tpu_custom_call.1} parent=11 // pred_check
          %p354 = pneg %p91
        $region18: #{tpu_custom_call.1} parent=11 // pred_check_branch
          %356 = sbr.rel (%p354) target = $region20
        $region19: #{tpu_custom_call.1} parent=11 // pred_region
          _
        $region20: #{tpu_custom_call.1} parent=11 // pred_fallthru
          _
        // Predicated region
        $region21: #{tpu_custom_call.1} parent=11 // pred_check
          %p357 = pneg %p112
        $region22: #{tpu_custom_call.1} parent=11 // pred_check_branch
          %359 = sbr.rel (%p357) target = $region24
        $region23: #{tpu_custom_call.1} parent=11 // pred_region
          _
        $region24: #{tpu_custom_call.1} parent=11 // pred_fallthru
          _
        // Predicated region
        $region25: #{tpu_custom_call.1} parent=11 // pred_check
          %p360 = pneg %p133
        $region26: #{tpu_custom_call.1} parent=11 // pred_check_branch
          %362 = sbr.rel (%p360) target = $region28
        $region27: #{tpu_custom_call.1} parent=11 // pred_region
          _
        $region28: #{tpu_custom_call.1} parent=11 // pred_fallthru
          _
        // Predicated region
        $region29: #{tpu_custom_call.1} parent=11 // pred_check
          %p363 = pneg %p154
        $region30: #{tpu_custom_call.1} parent=11 // pred_check_branch
          %365 = sbr.rel (%p363) target = $region32
        $region31: #{tpu_custom_call.1} parent=11 // pred_region
          _
        $region32: #{tpu_custom_call.1} parent=11 // pred_fallthru
          _
        // Predicated region
        $region33: #{tpu_custom_call.1} parent=11 // pred_check
          %p366 = pneg %p175
        $region34: #{tpu_custom_call.1} parent=11 // pred_check_branch
          %368 = sbr.rel (%p366) target = $region36
        $region35: #{tpu_custom_call.1} parent=11 // pred_region
          _
        $region36: #{tpu_custom_call.1} parent=11 // pred_fallthru
          _
        // Predicated region
        $region37: #{tpu_custom_call.1} parent=11 // pred_check
          %p369 = pneg %p196
        $region38: #{tpu_custom_call.1} parent=11 // pred_check_branch
          %371 = sbr.rel (%p369) target = $region40
        $region39: #{tpu_custom_call.1} parent=11 // pred_region
          _
        $region40: #{tpu_custom_call.1} parent=11 // pred_fallthru
          _
        // Predicated region
        $region41: #{tpu_custom_call.1} parent=11 // pred_check
          %p372 = pneg %p217
        $region42: #{tpu_custom_call.1} parent=11 // pred_check_branch
          %374 = sbr.rel (%p372) target = $region44
        $region43: #{tpu_custom_call.1} parent=11 // pred_region
          _
        $region44: #{tpu_custom_call.1} parent=11 // pred_fallthru
          _
        // Predicated region
        $region45: #{tpu_custom_call.1} parent=11 // pred_check
          %p375 = pneg %p238
        $region46: #{tpu_custom_call.1} parent=11 // pred_check_branch
          %377 = sbr.rel (%p375) target = $region48
        $region47: #{tpu_custom_call.1} parent=11 // pred_region
          _
        $region48: #{tpu_custom_call.1} parent=11 // pred_fallthru
          _
        // Predicated region
        $region49: #{tpu_custom_call.1} parent=11 // pred_check
          %p378 = pneg %p259
        $region50: #{tpu_custom_call.1} parent=11 // pred_check_branch
          %380 = sbr.rel (%p378) target = $region52
        $region51: #{tpu_custom_call.1} parent=11 // pred_region
          _
        $region52: #{tpu_custom_call.1} parent=11 // pred_fallthru
          _
        // Predicated region
        $region53: #{tpu_custom_call.1} parent=11 // pred_check
          %p381 = pneg %p280
        $region54: #{tpu_custom_call.1} parent=11 // pred_check_branch
          %383 = sbr.rel (%p381) target = $region56
        $region55: #{tpu_custom_call.1} parent=11 // pred_region
          _
        $region56: #{tpu_custom_call.1} parent=11 // pred_fallthru
          _
        // Predicated region
        $region57: #{tpu_custom_call.1} parent=11 // pred_check
          %p384 = pneg %p301
        $region58: #{tpu_custom_call.1} parent=11 // pred_check_branch
          %386 = sbr.rel (%p384) target = $region60
        $region59: #{tpu_custom_call.1} parent=11 // pred_region
          _
        $region60: #{tpu_custom_call.1} parent=11 // pred_fallthru
          _
      $region12: #{tpu_custom_call.1} parent=5 // pred_fallthru
        _
      %p387 = scmp.lt.s32.totalorder %s23, 2
      // Predicated region
      $region61: #{tpu_custom_call.1} parent=5 // pred_check
        %p388 = pneg %p387
      $region62: #{tpu_custom_call.1} parent=5 // pred_check_branch
        %390 = sbr.rel (%p388) target = $region64
      $region63: #{tpu_custom_call.1} parent=5 // pred_region
        // Predicated region
        $region65: #{tpu_custom_call.1} parent=63 // pred_check
          %p391 = pneg %p43
        $region66: #{tpu_custom_call.1} parent=63 // pred_check_branch
          %393 = sbr.rel (%p391) target = $region68
        $region67: #{tpu_custom_call.1} parent=63 // pred_region
          %s394 = smul.u32 2, %s23
          %p395 = scmp.lt.s32.totalorder %s394, 3
          %s396 = scalar_select %p395, %s394, 3
          %s397 = smul.addr %s396, 8
          %s398 = scalar_lea.vmem %s0, %s397
          %s399 = smul.u32 2, %s23
        $region68: #{tpu_custom_call.1} parent=63 // pred_fallthru
          _
      $region64: #{tpu_custom_call.1} parent=5 // pred_fallthru
        _
      %p400 = scmp.le.s32.totalorder 1, %s23
      %p401 = scmp.lt.s32.totalorder %s23, 3
      %p402 = pnand %p400, %p401
      %p403 = pneg %p402
      // Predicated region
      $region69: #{tpu_custom_call.1} parent=5 // pred_check
        _
      $region70: #{tpu_custom_call.1} parent=5 // pred_check_branch
        %405 = sbr.rel (%p402) target = $region72
      $region71: #{tpu_custom_call.1} parent=5 // pred_region
        %s406 = ssub.s32 %s23, 1
        // Predicated region
        $region73: #{tpu_custom_call.1} parent=71 // pred_check
          %p407 = pneg %p70
        $region74: #{tpu_custom_call.1} parent=71 // pred_check_branch
          %409 = sbr.rel (%p407) target = $region76
        $region75: #{tpu_custom_call.1} parent=71 // pred_region
          %411 = dma.done [#allocation4], 16
        $region76: #{tpu_custom_call.1} parent=71 // pred_fallthru
          _
        %s412 = smul.u32 2, %s28
        %p413 = scmp.lt.s32.totalorder %s412, 3
        %s414 = scalar_select %p413, %s412, 3
        %s415 = smul.addr %s414, 8
        %s416 = scalar_lea.vmem %s0, %s415
        %p417 = pneg %p49
        %p418 = pneg %p46
        %p419 = pneg %p70
        %p420 = pneg %p67
        %p421 = pneg %p91
        %p422 = pneg %p88
        %p423 = pneg %p112
        %p424 = pneg %p109
        %p425 = pneg %p133
        %p426 = pneg %p130
        %p427 = pneg %p154
        %p428 = pneg %p151
        %p429 = pneg %p175
        %p430 = pneg %p172
        %p431 = pneg %p196
        %p432 = pneg %p193
        %p433 = pneg %p217
        %p434 = pneg %p214
        %p435 = pneg %p238
        %p436 = pneg %p235
        %p437 = pneg %p259
        %p438 = pneg %p256
        %p439 = pneg %p280
        %p440 = pneg %p277
        %p441 = pneg %p301
        %p442 = pneg %p298
        %p443 = pneg %p327
        %p444 = pneg %p324
        %s445 = sand.u32 %s314, 1
        %s446 = scalar_lea.sflag [#allocation5], %s445
        %s447 = sand.u32 %s314, 1
        %s448 = smul.addr %s447, 16
        %s449 = scalar_lea.vmem [#allocation6], %s448
        %s450 = smul.u32 2, %s28
        %p451 = scmp.lt.s32.totalorder %s450, 3
        %s452 = scalar_select %p451, %s450, 3
        %s453 = smul.addr %s452, 8
        %s454 = scalar_lea.vmem %s0, %s453
        %s455 = smul.u32 2, %s28
        %s456 = smul.u32 2, %s28
        %v459 = vld [vmem:[%s454] sm:$0xff]
        %v460 = vld [vmem:[%s454 + $0x8] sm:$0xff]
        %v461 = vld [vmem:[#allocation3] sm:$0x1]
        %v462 = vld [vmem:[%s2] sm:$0x1]
        %vm463 = vcmask 261120
        %v464 = vsel %vm463, %v459, 0.0
        %465 = vadd.xlane.f32.xlu0 %v464
        %v466 = vpop.xlane.xlu0 %465
        %v467 = vsel %vm463, %v460, 0.0
        %468 = vadd.xlane.f32.xlu0 %v467
        %v469 = vpop.xlane.xlu0 %468
        %v470 = vrcp.pop 32.0
        %v471 = vmul.f32 32.0, %v470
        %v472 = vsub.f32 1.0, %v471
        %v473 = vmul.f32 %v470, %v472
        %v474 = vadd.f32 %v470, %v473
        %vm475 = vweird.f32 %v470
        %v476 = vsel %vm475, %v470, %v474
        %v477 = vmul.f32 %v466, %v476
        %v478 = vmul.f32 %v469, %v476
        %v479 = vsub.f32 %v459, %v477
        %v480 = vsub.f32 %v460, %v478
        %v481 = vmul.f32 %v479, %v479
        %v482 = vmul.f32 %v480, %v480
        %v483 = vsel %vm463, %v481, 0.0
        %484 = vadd.xlane.f32.xlu0 %v483
        %v485 = vpop.xlane.xlu0 %484
        %v486 = vsel %vm463, %v482, 0.0
        %487 = vadd.xlane.f32.xlu0 %v486
        %v488 = vpop.xlane.xlu0 %487
        %v489 = vmul.f32 %v485, %v476
        %v490 = vmul.f32 %v488, %v476
        %v491 = vadd.f32 %v489, 1e-05
        %v492 = vadd.f32 %v490, 1e-05
        %v493 = vrsqrt.pop %v491
        %v494 = vmul.f32 %v493, %v491
        %v495 = vmul.f32 %v494, %v493
        %v496 = vmul.f32 0.5, %v495
        %v497 = vsub.f32 1.5, %v496
        %v498 = vmul.f32 %v493, %v497
        %vm499 = vweird.f32 %v491
        %vm500 = vweird.f32 %v493
        %vm501 = vmor %vm499, %vm500
        %v502 = vsel %vm501, %v493, %v498
        %v503 = vrsqrt.pop %v492
        %v504 = vmul.f32 %v503, %v492
        %v505 = vmul.f32 %v504, %v503
        %v506 = vmul.f32 0.5, %v505
        %v507 = vsub.f32 1.5, %v506
        %v508 = vmul.f32 %v503, %v507
        %vm509 = vweird.f32 %v492
        %vm510 = vweird.f32 %v503
        %vm511 = vmor %vm509, %vm510
        %v512 = vsel %vm511, %v503, %v508
        %v513 = vmul.f32 %v479, %v502
        %v514 = vmul.f32 %v480, %v512
        %v516 = vperm.slane %v461, 0
        %v518 = vmul.f32 %v513, %v516
        %v519 = vmul.f32 %v514, %v516
        %v521 = vperm.slane %v462, 0
        %v523 = vadd.f32 %v518, %v521
        %v524 = vadd.f32 %v519, %v521
        %v525 = vpack.c.bf16 %v524, %v523
        %v526 = vld [vmem:[%s3] sm:$0xf]
        %v527 = vld [vmem:[%s3 + $0x4] sm:$0xf]
        %v528 = vld [vmem:[%s3 + $0x8] sm:$0xf]
        %v529 = vld [vmem:[%s3 + $0xc] sm:$0xf]
        %v530 = vld [vmem:[%s4] sm:$0x1]
        %v532 = vperm.slane %v530, 0
        %v538 = vunpack.c.l.b16 %v526
        %v539 = vunpack.c.l.b16 %v527
        %v540 = vunpack.c.l.b16 %v528
        %v541 = vunpack.c.l.b16 %v529
        %v542 = vpack.c.b16 %v539, %v538
        %v543 = vpack.c.b16 %v541, %v540
        %v547 = vsel %vm463, %v525, 0
        %549 = vmatpush.bf16.msra.mxu0 0
        %550 = vmatpush.bf16.msra.mxu0 0
        %551 = vmatpush.bf16.msra.mxu0 0
        %552 = vmatpush.bf16.msra.mxu0 0
        %553 = vmatpush.bf16.msra.mxu0 0
        %554 = vmatpush.bf16.msra.mxu0 0
        %555 = vmatpush.bf16.msra.mxu0 %v543
        %556 = vmatpush.bf16.msra.mxu0 %v542
        %557 = vmatmul.bf16.gmra.mxu0 %v547
        %v558 = vpop.f32.mrf.mxu0
        %v559 = vadd.f32 %v532, %v558
        %v560 = vpop.f32.mrf.mxu0
        %v561 = vadd.f32 %v532, %v560
        %562 = vdwg.mxu0
        %v563 = vpack.c.bf16 %v559, %v559
        %v564 = vpack.c.bf16 %v561, %v561
        %v566 = vunpack.c.l.b16 %v563
        %v567 = vpack.c.b16 %v566, %v566
        %568 = vrot.lane.b32.xlu0 %v567, 96
        %v569 = vpop.permute.xlu0 %568
        %vm570 = vcmask 64512
        %v572 = vsel %vm570, %v563, 0
        %v575 = vsel %vm570, %v569, 0
        %577 = vmatpush.bf16.xpose.msra.mxu0 0
        %578 = vmatpush.bf16.xpose.msra.mxu0 0
        %579 = vmatpush.bf16.xpose.msra.mxu0 0
        %580 = vmatpush.bf16.xpose.msra.mxu0 0
        %581 = vmatpush.bf16.xpose.msra.mxu0 0
        %582 = vmatpush.bf16.xpose.msra.mxu0 0
        %583 = vmatpush.bf16.xpose.msra.mxu0 0
        %584 = vmatpush.bf16.xpose.msra.mxu0 %v575
        %585 = vmatmul.bf16.gmra.mxu0 %v572
        %v586 = vpop.f32.mrf.mxu0
        %v587 = vadd.f32 0.0, %v586
        %v588 = vpop.f32.mrf.mxu0
        %589 = vdwg.mxu0
        %v591 = vunpack.c.l.b16 %v564
        %v592 = vpack.c.b16 %v591, %v591
        %593 = vrot.lane.b32.xlu0 %v592, 96
        %v594 = vpop.permute.xlu0 %593
        %v596 = vsel %vm570, %v564, 0
        %v599 = vsel %vm570, %v594, 0
        %601 = vmatpush.bf16.xpose.msra.mxu0 0
        %602 = vmatpush.bf16.xpose.msra.mxu0 0
        %603 = vmatpush.bf16.xpose.msra.mxu0 0
        %604 = vmatpush.bf16.xpose.msra.mxu0 0
        %605 = vmatpush.bf16.xpose.msra.mxu0 0
        %606 = vmatpush.bf16.xpose.msra.mxu0 0
        %607 = vmatpush.bf16.xpose.msra.mxu0 0
        %608 = vmatpush.bf16.xpose.msra.mxu0 %v599
        %609 = vmatmul.bf16.gmra.mxu0 %v596
        %v610 = vpop.f32.mrf.mxu0
        %v611 = vadd.f32 0.0, %v610
        %v612 = vpop.f32.mrf.mxu0
        %613 = vdwg.mxu0
        %v614 = vsel %vm570, %v587, -inf
        %615 = vmax.xlane.f32.xlu0 %v614
        %v616 = vpop.xlane.xlu0 %615
        %v617 = vsel %vm570, %v611, -inf
        %618 = vmax.xlane.f32.xlu0 %v617
        %v619 = vpop.xlane.xlu0 %618
        %v620 = vsub.f32 %v587, %v616
        %v621 = vsub.f32 %v611, %v619
        %v622 = vmul.f32 %v620, 1.442695
        %v623 = vpow.pop %v622
        %v624 = vmul.f32 %v621, 1.442695
        %v625 = vpow.pop %v624
        %v626 = vsel %vm570, %v623, 0.0
        %627 = vadd.xlane.f32.xlu0 %v626
        %v628 = vpop.xlane.xlu0 %627
        %v629 = vsel %vm570, %v625, 0.0
        %630 = vadd.xlane.f32.xlu0 %v629
        %v631 = vpop.xlane.xlu0 %630
        %v632 = vrcp.pop %v628
        %v633 = vrcp.pop %v631
        %v634 = vmul.f32 %v623, %v632
        %v635 = vmul.f32 %v625, %v633
        %v636 = vpack.c.bf16 %v634, %v634
        %v637 = vpack.c.bf16 %v635, %v635
        %638 = vrot.lane.b32.xlu0 %v567, 64
        %v639 = vpop.permute.xlu0 %638
        %v641 = vsel %vm570, %v636, 0
        %vm643 = vcmask 1043456
        %v645 = vsel %vm643, %v639, 0
        %647 = vmatpush.bf16.msra.mxu0 0
        %648 = vmatpush.bf16.msra.mxu0 0
        %649 = vmatpush.bf16.msra.mxu0 0
        %650 = vmatpush.bf16.msra.mxu0 0
        %651 = vmatpush.bf16.msra.mxu0 0
        %652 = vmatpush.bf16.msra.mxu0 0
        %653 = vmatpush.bf16.msra.mxu0 0
        %654 = vmatpush.bf16.msra.mxu0 %v645
        %655 = vmatmul.bf16.gmra.mxu0 %v641
        %v656 = vpop.f32.mrf.mxu0
        %v657 = vadd.f32 0.0, %v656
        %v658 = vpop.f32.mrf.mxu0
        %659 = vdwg.mxu0
        %660 = vrot.lane.b32.xlu0 %v592, 64
        %v661 = vpop.permute.xlu0 %660
        %v663 = vsel %vm570, %v637, 0
        %v666 = vsel %vm643, %v661, 0
        %668 = vmatpush.bf16.msra.mxu0 0
        %669 = vmatpush.bf16.msra.mxu0 0
        %670 = vmatpush.bf16.msra.mxu0 0
        %671 = vmatpush.bf16.msra.mxu0 0
        %672 = vmatpush.bf16.msra.mxu0 0
        %673 = vmatpush.bf16.msra.mxu0 0
        %674 = vmatpush.bf16.msra.mxu0 0
        %675 = vmatpush.bf16.msra.mxu0 %v666
        %676 = vmatmul.bf16.gmra.mxu0 %v663
        %v677 = vpop.f32.mrf.mxu0
        %v678 = vadd.f32 0.0, %v677
        %v679 = vpop.f32.mrf.mxu0
        %680 = vdwg.mxu0
        %v681 = vpack.c.bf16 %v657, %v657
        %v682 = vpack.c.bf16 %v678, %v678
        %vm683 = vcmask 60416
        %684 = vst.msk [vmem:[#allocation2] sm:$0xf] %vm683, %v681
        %685 = vst.msk [vmem:[#allocation2 + $0x4] sm:$0xf] %vm683, %v682
        %686 = vrot.lane.b32.xlu0 %v567, 120
        %v687 = vpop.permute.xlu0 %686
        %688 = vrot.lane.b32.xlu0 %v567, 88
        %v689 = vpop.permute.xlu0 %688
        %v691 = vsel %vm570, %v687, 0
        %v694 = vsel %vm570, %v689, 0
        %696 = vmatpush.bf16.xpose.msra.mxu0 0
        %697 = vmatpush.bf16.xpose.msra.mxu0 0
        %698 = vmatpush.bf16.xpose.msra.mxu0 0
        %699 = vmatpush.bf16.xpose.msra.mxu0 0
        %700 = vmatpush.bf16.xpose.msra.mxu0 0
        %701 = vmatpush.bf16.xpose.msra.mxu0 0
        %702 = vmatpush.bf16.xpose.msra.mxu0 0
        %703 = vmatpush.bf16.xpose.msra.mxu0 %v694
        %704 = vmatmul.bf16.gmra.mxu0 %v691
        %v705 = vpop.f32.mrf.mxu0
        %v706 = vadd.f32 0.0, %v705
        %v707 = vpop.f32.mrf.mxu0
        %708 = vdwg.mxu0
        %709 = vrot.lane.b32.xlu0 %v592, 120
        %v710 = vpop.permute.xlu0 %709
        %711 = vrot.lane.b32.xlu0 %v592, 88
        %v712 = vpop.permute.xlu0 %711
        %v714 = vsel %vm570, %v710, 0
        %v717 = vsel %vm570, %v712, 0
        %719 = vmatpush.bf16.xpose.msra.mxu0 0
        %720 = vmatpush.bf16.xpose.msra.mxu0 0
        %721 = vmatpush.bf16.xpose.msra.mxu0 0
        %722 = vmatpush.bf16.xpose.msra.mxu0 0
        %723 = vmatpush.bf16.xpose.msra.mxu0 0
        %724 = vmatpush.bf16.xpose.msra.mxu0 0
        %725 = vmatpush.bf16.xpose.msra.mxu0 0
        %726 = vmatpush.bf16.xpose.msra.mxu0 %v717
        %727 = vmatmul.bf16.gmra.mxu0 %v714
        %v728 = vpop.f32.mrf.mxu0
        %v729 = vadd.f32 0.0, %v728
        %v730 = vpop.f32.mrf.mxu0
        %731 = vdwg.mxu0
        %v732 = vsel %vm570, %v706, -inf
        %733 = vmax.xlane.f32.xlu0 %v732
        %v734 = vpop.xlane.xlu0 %733
        %v735 = vsel %vm570, %v729, -inf
        %736 = vmax.xlane.f32.xlu0 %v735
        %v737 = vpop.xlane.xlu0 %736
        %v738 = vsub.f32 %v706, %v734
        %v739 = vsub.f32 %v729, %v737
        %v740 = vmul.f32 %v738, 1.442695
        %v741 = vpow.pop %v740
        %v742 = vmul.f32 %v739, 1.442695
        %v743 = vpow.pop %v742
        %v744 = vsel %vm570, %v741, 0.0
        %745 = vadd.xlane.f32.xlu0 %v744
        %v746 = vpop.xlane.xlu0 %745
        %v747 = vsel %vm570, %v743, 0.0
        %748 = vadd.xlane.f32.xlu0 %v747
        %v749 = vpop.xlane.xlu0 %748
        %v750 = vrcp.pop %v746
        %v751 = vrcp.pop %v749
        %v752 = vmul.f32 %v741, %v750
        %v753 = vmul.f32 %v743, %v751
        %v754 = vpack.c.bf16 %v752, %v752
        %v755 = vpack.c.bf16 %v753, %v753
        %756 = vrot.lane.b32.xlu0 %v567, 56
        %v757 = vpop.permute.xlu0 %756
        %v759 = vsel %vm570, %v754, 0
        %v762 = vsel %vm643, %v757, 0
        %764 = vmatpush.bf16.msra.mxu0 0
        %765 = vmatpush.bf16.msra.mxu0 0
        %766 = vmatpush.bf16.msra.mxu0 0
        %767 = vmatpush.bf16.msra.mxu0 0
        %768 = vmatpush.bf16.msra.mxu0 0
        %769 = vmatpush.bf16.msra.mxu0 0
        %770 = vmatpush.bf16.msra.mxu0 0
        %771 = vmatpush.bf16.msra.mxu0 %v762
        %772 = vmatmul.bf16.gmra.mxu0 %v759
        %v773 = vpop.f32.mrf.mxu0
        %v774 = vadd.f32 0.0, %v773
        %v775 = vpop.f32.mrf.mxu0
        %776 = vdwg.mxu0
        %777 = vrot.lane.b32.xlu0 %v592, 56
        %v778 = vpop.permute.xlu0 %777
        %v780 = vsel %vm570, %v755, 0
        %v783 = vsel %vm643, %v778, 0
        %785 = vmatpush.bf16.msra.mxu0 0
        %786 = vmatpush.bf16.msra.mxu0 0
        %787 = vmatpush.bf16.msra.mxu0 0
        %788 = vmatpush.bf16.msra.mxu0 0
        %789 = vmatpush.bf16.msra.mxu0 0
        %790 = vmatpush.bf16.msra.mxu0 0
        %791 = vmatpush.bf16.msra.mxu0 0
        %792 = vmatpush.bf16.msra.mxu0 %v783
        %793 = vmatmul.bf16.gmra.mxu0 %v780
        %v794 = vpop.f32.mrf.mxu0
        %v795 = vadd.f32 0.0, %v794
        %v796 = vpop.f32.mrf.mxu0
        %797 = vdwg.mxu0
        %v798 = vpack.c.bf16 %v774, %v774
        %v799 = vpack.c.bf16 %v795, %v795
        %802 = vrot.lane.b32.xlu0 %v798, 8
        %v803 = vpop.permute.xlu0 %802
        %804 = vrot.lane.b32.xlu0 %v799, 8
        %v805 = vpop.permute.xlu0 %804
        %vm808 = vcmask 126016
        %809 = vst.msk [vmem:[#allocation2] sm:$0xf] %vm808, %v803
        %810 = vst.msk [vmem:[#allocation2 + $0x4] sm:$0xf] %vm808, %v805
        %811 = vrot.lane.b32.xlu0 %v567, 112
        %v812 = vpop.permute.xlu0 %811
        %813 = vrot.lane.b32.xlu0 %v567, 80
        %v814 = vpop.permute.xlu0 %813
        %v816 = vsel %vm570, %v812, 0
        %v819 = vsel %vm570, %v814, 0
        %821 = vmatpush.bf16.xpose.msra.mxu0 0
        %822 = vmatpush.bf16.xpose.msra.mxu0 0
        %823 = vmatpush.bf16.xpose.msra.mxu0 0
        %824 = vmatpush.bf16.xpose.msra.mxu0 0
        %825 = vmatpush.bf16.xpose.msra.mxu0 0
        %826 = vmatpush.bf16.xpose.msra.mxu0 0
        %827 = vmatpush.bf16.xpose.msra.mxu0 0
        %828 = vmatpush.bf16.xpose.msra.mxu0 %v819
        %829 = vmatmul.bf16.gmra.mxu0 %v816
        %v830 = vpop.f32.mrf.mxu0
        %v831 = vadd.f32 0.0, %v830
        %v832 = vpop.f32.mrf.mxu0
        %833 = vdwg.mxu0
        %834 = vrot.lane.b32.xlu0 %v592, 112
        %v835 = vpop.permute.xlu0 %834
        %836 = vrot.lane.b32.xlu0 %v592, 80
        %v837 = vpop.permute.xlu0 %836
        %v839 = vsel %vm570, %v835, 0
        %v842 = vsel %vm570, %v837, 0
        %844 = vmatpush.bf16.xpose.msra.mxu0 0
        %845 = vmatpush.bf16.xpose.msra.mxu0 0
        %846 = vmatpush.bf16.xpose.msra.mxu0 0
        %847 = vmatpush.bf16.xpose.msra.mxu0 0
        %848 = vmatpush.bf16.xpose.msra.mxu0 0
        %849 = vmatpush.bf16.xpose.msra.mxu0 0
        %850 = vmatpush.bf16.xpose.msra.mxu0 0
        %851 = vmatpush.bf16.xpose.msra.mxu0 %v842
        %852 = vmatmul.bf16.gmra.mxu0 %v839
        %v853 = vpop.f32.mrf.mxu0
        %v854 = vadd.f32 0.0, %v853
        %v855 = vpop.f32.mrf.mxu0
        %856 = vdwg.mxu0
        %v857 = vsel %vm570, %v831, -inf
        %858 = vmax.xlane.f32.xlu0 %v857
        %v859 = vpop.xlane.xlu0 %858
        %v860 = vsel %vm570, %v854, -inf
        %861 = vmax.xlane.f32.xlu0 %v860
        %v862 = vpop.xlane.xlu0 %861
        %v863 = vsub.f32 %v831, %v859
        %v864 = vsub.f32 %v854, %v862
        %v865 = vmul.f32 %v863, 1.442695
        %v866 = vpow.pop %v865
        %v867 = vmul.f32 %v864, 1.442695
        %v868 = vpow.pop %v867
        %v869 = vsel %vm570, %v866, 0.0
        %870 = vadd.xlane.f32.xlu0 %v869
        %v871 = vpop.xlane.xlu0 %870
        %v872 = vsel %vm570, %v868, 0.0
        %873 = vadd.xlane.f32.xlu0 %v872
        %v874 = vpop.xlane.xlu0 %873
        %v875 = vrcp.pop %v871
        %v876 = vrcp.pop %v874
        %v877 = vmul.f32 %v866, %v875
        %v878 = vmul.f32 %v868, %v876
        %v879 = vpack.c.bf16 %v877, %v877
        %v880 = vpack.c.bf16 %v878, %v878
        %881 = vrot.lane.b32.xlu0 %v567, 48
        %v882 = vpop.permute.xlu0 %881
        %v884 = vsel %vm570, %v879, 0
        %v887 = vsel %vm643, %v882, 0
        %889 = vmatpush.bf16.msra.mxu0 0
        %890 = vmatpush.bf16.msra.mxu0 0
        %891 = vmatpush.bf16.msra.mxu0 0
        %892 = vmatpush.bf16.msra.mxu0 0
        %893 = vmatpush.bf16.msra.mxu0 0
        %894 = vmatpush.bf16.msra.mxu0 0
        %895 = vmatpush.bf16.msra.mxu0 0
        %896 = vmatpush.bf16.msra.mxu0 %v887
        %897 = vmatmul.bf16.gmra.mxu0 %v884
        %v898 = vpop.f32.mrf.mxu0
        %v899 = vadd.f32 0.0, %v898
        %v900 = vpop.f32.mrf.mxu0
        %901 = vdwg.mxu0
        %902 = vrot.lane.b32.xlu0 %v592, 48
        %v903 = vpop.permute.xlu0 %902
        %v905 = vsel %vm570, %v880, 0
        %v908 = vsel %vm643, %v903, 0
        %910 = vmatpush.bf16.msra.mxu0 0
        %911 = vmatpush.bf16.msra.mxu0 0
        %912 = vmatpush.bf16.msra.mxu0 0
        %913 = vmatpush.bf16.msra.mxu0 0
        %914 = vmatpush.bf16.msra.mxu0 0
        %915 = vmatpush.bf16.msra.mxu0 0
        %916 = vmatpush.bf16.msra.mxu0 0
        %917 = vmatpush.bf16.msra.mxu0 %v908
        %918 = vmatmul.bf16.gmra.mxu0 %v905
        %v919 = vpop.f32.mrf.mxu0
        %v920 = vadd.f32 0.0, %v919
        %v921 = vpop.f32.mrf.mxu0
        %922 = vdwg.mxu0
        %v923 = vpack.c.bf16 %v899, %v899
        %v924 = vpack.c.bf16 %v920, %v920
        %927 = vrot.lane.b32.xlu0 %v923, 16
        %v928 = vpop.permute.xlu0 %927
        %929 = vrot.lane.b32.xlu0 %v924, 16
        %v930 = vpop.permute.xlu0 %929
        %vm933 = vcmask 191616
        %934 = vst.msk [vmem:[#allocation2] sm:$0xf] %vm933, %v928
        %935 = vst.msk [vmem:[#allocation2 + $0x4] sm:$0xf] %vm933, %v930
        %936 = vrot.lane.b32.xlu0 %v567, 104
        %v937 = vpop.permute.xlu0 %936
        %938 = vrot.lane.b32.xlu0 %v567, 72
        %v939 = vpop.permute.xlu0 %938
        %v941 = vsel %vm570, %v937, 0
        %v944 = vsel %vm570, %v939, 0
        %946 = vmatpush.bf16.xpose.msra.mxu0 0
        %947 = vmatpush.bf16.xpose.msra.mxu0 0
        %948 = vmatpush.bf16.xpose.msra.mxu0 0
        %949 = vmatpush.bf16.xpose.msra.mxu0 0
        %950 = vmatpush.bf16.xpose.msra.mxu0 0
        %951 = vmatpush.bf16.xpose.msra.mxu0 0
        %952 = vmatpush.bf16.xpose.msra.mxu0 0
        %953 = vmatpush.bf16.xpose.msra.mxu0 %v944
        %954 = vmatmul.bf16.gmra.mxu0 %v941
        %v955 = vpop.f32.mrf.mxu0
        %v956 = vadd.f32 0.0, %v955
        %v957 = vpop.f32.mrf.mxu0
        %958 = vdwg.mxu0
        %959 = vrot.lane.b32.xlu0 %v592, 104
        %v960 = vpop.permute.xlu0 %959
        %961 = vrot.lane.b32.xlu0 %v592, 72
        %v962 = vpop.permute.xlu0 %961
        %v964 = vsel %vm570, %v960, 0
        %v967 = vsel %vm570, %v962, 0
        %969 = vmatpush.bf16.xpose.msra.mxu0 0
        %970 = vmatpush.bf16.xpose.msra.mxu0 0
        %971 = vmatpush.bf16.xpose.msra.mxu0 0
        %972 = vmatpush.bf16.xpose.msra.mxu0 0
        %973 = vmatpush.bf16.xpose.msra.mxu0 0
        %974 = vmatpush.bf16.xpose.msra.mxu0 0
        %975 = vmatpush.bf16.xpose.msra.mxu0 0
        %976 = vmatpush.bf16.xpose.msra.mxu0 %v967
        %977 = vmatmul.bf16.gmra.mxu0 %v964
        %v978 = vpop.f32.mrf.mxu0
        %v979 = vadd.f32 0.0, %v978
        %v980 = vpop.f32.mrf.mxu0
        %981 = vdwg.mxu0
        %v982 = vsel %vm570, %v956, -inf
        %983 = vmax.xlane.f32.xlu0 %v982
        %v984 = vpop.xlane.xlu0 %983
        %v985 = vsel %vm570, %v979, -inf
        %986 = vmax.xlane.f32.xlu0 %v985
        %v987 = vpop.xlane.xlu0 %986
        %v988 = vsub.f32 %v956, %v984
        %v989 = vsub.f32 %v979, %v987
        %v990 = vmul.f32 %v988, 1.442695
        %v991 = vpow.pop %v990
        %v992 = vmul.f32 %v989, 1.442695
        %v993 = vpow.pop %v992
        %v994 = vsel %vm570, %v991, 0.0
        %995 = vadd.xlane.f32.xlu0 %v994
        %v996 = vpop.xlane.xlu0 %995
        %v997 = vsel %vm570, %v993, 0.0
        %998 = vadd.xlane.f32.xlu0 %v997
        %v999 = vpop.xlane.xlu0 %998
        %v1000 = vrcp.pop %v996
        %v1001 = vrcp.pop %v999
        %v1002 = vmul.f32 %v991, %v1000
        %v1003 = vmul.f32 %v993, %v1001
        %v1004 = vpack.c.bf16 %v1002, %v1002
        %v1005 = vpack.c.bf16 %v1003, %v1003
        %1006 = vrot.lane.b32.xlu0 %v567, 40
        %v1007 = vpop.permute.xlu0 %1006
        %v1009 = vsel %vm570, %v1004, 0
        %v1012 = vsel %vm643, %v1007, 0
        %1014 = vmatpush.bf16.msra.mxu0 0
        %1015 = vmatpush.bf16.msra.mxu0 0
        %1016 = vmatpush.bf16.msra.mxu0 0
        %1017 = vmatpush.bf16.msra.mxu0 0
        %1018 = vmatpush.bf16.msra.mxu0 0
        %1019 = vmatpush.bf16.msra.mxu0 0
        %1020 = vmatpush.bf16.msra.mxu0 0
        %1021 = vmatpush.bf16.msra.mxu0 %v1012
        %1022 = vmatmul.bf16.gmra.mxu0 %v1009
        %v1023 = vpop.f32.mrf.mxu0
        %v1024 = vadd.f32 0.0, %v1023
        %v1025 = vpop.f32.mrf.mxu0
        %1026 = vdwg.mxu0
        %1027 = vrot.lane.b32.xlu0 %v592, 40
        %v1028 = vpop.permute.xlu0 %1027
        %v1030 = vsel %vm570, %v1005, 0
        %v1033 = vsel %vm643, %v1028, 0
        %1035 = vmatpush.bf16.msra.mxu0 0
        %1036 = vmatpush.bf16.msra.mxu0 0
        %1037 = vmatpush.bf16.msra.mxu0 0
        %1038 = vmatpush.bf16.msra.mxu0 0
        %1039 = vmatpush.bf16.msra.mxu0 0
        %1040 = vmatpush.bf16.msra.mxu0 0
        %1041 = vmatpush.bf16.msra.mxu0 0
        %1042 = vmatpush.bf16.msra.mxu0 %v1033
        %1043 = vmatmul.bf16.gmra.mxu0 %v1030
        %v1044 = vpop.f32.mrf.mxu0
        %v1045 = vadd.f32 0.0, %v1044
        %v1046 = vpop.f32.mrf.mxu0
        %1047 = vdwg.mxu0
        %v1048 = vpack.c.bf16 %v1024, %v1024
        %v1049 = vpack.c.bf16 %v1045, %v1045
        %1052 = vrot.lane.b32.xlu0 %v1048, 24
        %v1053 = vpop.permute.xlu0 %1052
        %1054 = vrot.lane.b32.xlu0 %v1049, 24
        %v1055 = vpop.permute.xlu0 %1054
        %vm1058 = vcmask 257216
        %1059 = vst.msk [vmem:[#allocation2] sm:$0xf] %vm1058, %v1053
        %1060 = vst.msk [vmem:[#allocation2 + $0x4] sm:$0xf] %vm1058, %v1055
        %v1061 = vld [vmem:[#allocation2] sm:$0xf]
        %v1062 = vld [vmem:[#allocation2 + $0x4] sm:$0xf]
        %v1063 = vld [vmem:[%s5] sm:$0xf]
        %v1064 = vld [vmem:[%s5 + $0x4] sm:$0xf]
        %v1065 = vld [vmem:[%s5 + $0x8] sm:$0xf]
        %v1066 = vld [vmem:[%s5 + $0xc] sm:$0xf]
        %v1067 = vld [vmem:[%s6] sm:$0x1]
        %v1069 = vperm.slane %v1067, 0
        %v1073 = vunpack.c.l.b16 %v1061
        %v1074 = vunpack.c.l.b16 %v1062
        %v1075 = vpack.c.b16 %v1074, %v1073
        %v1080 = vunpack.c.l.b16 %v1063
        %v1081 = vunpack.c.l.b16 %v1064
        %v1082 = vunpack.c.l.b16 %v1065
        %v1083 = vunpack.c.l.b16 %v1066
        %v1084 = vpack.c.b16 %v1081, %v1080
        %v1085 = vpack.c.b16 %v1083, %v1082
        %v1089 = vsel %vm463, %v1075, 0
        %1091 = vmatpush.bf16.msra.mxu0 0
        %1092 = vmatpush.bf16.msra.mxu0 0
        %1093 = vmatpush.bf16.msra.mxu0 0
        %1094 = vmatpush.bf16.msra.mxu0 0
        %1095 = vmatpush.bf16.msra.mxu0 0
        %1096 = vmatpush.bf16.msra.mxu0 0
        %1097 = vmatpush.bf16.msra.mxu0 %v1085
        %1098 = vmatpush.bf16.msra.mxu0 %v1084
        %1099 = vmatmul.bf16.gmra.mxu0 %v1089
        %v1100 = vpop.f32.mrf.mxu0
        %v1101 = vadd.f32 %v1069, %v1100
        %v1102 = vpop.f32.mrf.mxu0
        %v1103 = vadd.f32 %v1069, %v1102
        %1104 = vdwg.mxu0
        %v1105 = vadd.f32 %v459, %v1101
        %v1106 = vadd.f32 %v460, %v1103
        %v1107 = vld [vmem:[%s7] sm:$0x1]
        %v1108 = vld [vmem:[%s8] sm:$0x1]
        %v1109 = vsel %vm463, %v1105, 0.0
        %1110 = vadd.xlane.f32.xlu0 %v1109
        %v1111 = vpop.xlane.xlu0 %1110
        %v1112 = vsel %vm463, %v1106, 0.0
        %1113 = vadd.xlane.f32.xlu0 %v1112
        %v1114 = vpop.xlane.xlu0 %1113
        %v1115 = vmul.f32 %v1111, %v476
        %v1116 = vmul.f32 %v1114, %v476
        %v1117 = vsub.f32 %v1105, %v1115
        %v1118 = vsub.f32 %v1106, %v1116
        %v1119 = vmul.f32 %v1117, %v1117
        %v1120 = vmul.f32 %v1118, %v1118
        %v1121 = vsel %vm463, %v1119, 0.0
        %1122 = vadd.xlane.f32.xlu0 %v1121
        %v1123 = vpop.xlane.xlu0 %1122
        %v1124 = vsel %vm463, %v1120, 0.0
        %1125 = vadd.xlane.f32.xlu0 %v1124
        %v1126 = vpop.xlane.xlu0 %1125
        %v1127 = vmul.f32 %v1123, %v476
        %v1128 = vmul.f32 %v1126, %v476
        %v1129 = vadd.f32 %v1127, 1e-05
        %v1130 = vadd.f32 %v1128, 1e-05
        %v1131 = vrsqrt.pop %v1129
        %v1132 = vmul.f32 %v1131, %v1129
        %v1133 = vmul.f32 %v1132, %v1131
        %v1134 = vmul.f32 0.5, %v1133
        %v1135 = vsub.f32 1.5, %v1134
        %v1136 = vmul.f32 %v1131, %v1135
        %vm1137 = vweird.f32 %v1129
        %vm1138 = vweird.f32 %v1131
        %vm1139 = vmor %vm1137, %vm1138
        %v1140 = vsel %vm1139, %v1131, %v1136
        %v1141 = vrsqrt.pop %v1130
        %v1142 = vmul.f32 %v1141, %v1130
        %v1143 = vmul.f32 %v1142, %v1141
        %v1144 = vmul.f32 0.5, %v1143
        %v1145 = vsub.f32 1.5, %v1144
        %v1146 = vmul.f32 %v1141, %v1145
        %vm1147 = vweird.f32 %v1130
        %vm1148 = vweird.f32 %v1141
        %vm1149 = vmor %vm1147, %vm1148
        %v1150 = vsel %vm1149, %v1141, %v1146
        %v1151 = vmul.f32 %v1117, %v1140
        %v1152 = vmul.f32 %v1118, %v1150
        %v1154 = vperm.slane %v1107, 0
        %v1156 = vmul.f32 %v1151, %v1154
        %v1157 = vmul.f32 %v1152, %v1154
        %v1159 = vperm.slane %v1108, 0
        %v1161 = vadd.f32 %v1156, %v1159
        %v1162 = vadd.f32 %v1157, %v1159
        %v1163 = vpack.c.bf16 %v1162, %v1161
        %v1164 = vld [vmem:[%s9] sm:$0xf]
        %v1165 = vld [vmem:[%s9 + $0x4] sm:$0xf]
        %v1166 = vld [vmem:[%s9 + $0x8] sm:$0xf]
        %v1167 = vld [vmem:[%s9 + $0xc] sm:$0xf]
        %v1168 = vld [vmem:[%s10] sm:$0x1]
        %v1170 = vperm.slane %v1168, 0
        %v1176 = vunpack.c.l.b16 %v1164
        %v1177 = vunpack.c.l.b16 %v1165
        %v1178 = vunpack.c.l.b16 %v1166
        %v1179 = vunpack.c.l.b16 %v1167
        %v1180 = vpack.c.b16 %v1177, %v1176
        %v1181 = vpack.c.b16 %v1179, %v1178
        %v1185 = vsel %vm463, %v1163, 0
        %1187 = vmatpush.bf16.msra.mxu0 0
        %1188 = vmatpush.bf16.msra.mxu0 0
        %1189 = vmatpush.bf16.msra.mxu0 0
        %1190 = vmatpush.bf16.msra.mxu0 0
        %1191 = vmatpush.bf16.msra.mxu0 0
        %1192 = vmatpush.bf16.msra.mxu0 0
        %1193 = vmatpush.bf16.msra.mxu0 %v1181
        %1194 = vmatpush.bf16.msra.mxu0 %v1180
        %1195 = vmatmul.bf16.gmra.mxu0 %v1185
        %v1196 = vpop.f32.mrf.mxu0
        %v1197 = vadd.f32 %v1170, %v1196
        %v1198 = vpop.f32.mrf.mxu0
        %v1199 = vadd.f32 %v1170, %v1198
        %1200 = vdwg.mxu0
        %v1201 = vpack.c.bf16 %v1197, %v1197
        %v1202 = vpack.c.bf16 %v1199, %v1199
        %v1203 = vunpack.c.l.bf16 %v1201
        %v1204 = vunpack.c.l.bf16 %v1202
        %v1205 = vmul.f32 %v1203, 1.703125
        %v1206 = vmul.f32 %v1204, 1.703125
        %v1207 = vpack.c.bf16 %v1205, %v1205
        %v1208 = vpack.c.bf16 %v1206, %v1206
        %v1209 = vxor.u32 %v1207, 2147516416
        %v1210 = vxor.u32 %v1208, 2147516416
        %v1211 = vunpack.c.l.bf16 %v1209
        %v1212 = vunpack.c.l.bf16 %v1210
        %v1213 = vmul.f32 %v1211, 1.442695
        %v1214 = vpow.pop %v1213
        %v1215 = vmul.f32 %v1212, 1.442695
        %v1216 = vpow.pop %v1215
        %v1217 = vpack.c.bf16 %v1214, %v1214
        %v1218 = vpack.c.bf16 %v1216, %v1216
        %v1219 = vunpack.c.l.bf16 %v1217
        %v1220 = vunpack.c.l.bf16 %v1218
        %v1221 = vadd.f32 %v1219, 1.0
        %v1222 = vadd.f32 %v1220, 1.0
        %v1223 = vpack.c.bf16 %v1221, %v1221
        %v1224 = vpack.c.bf16 %v1222, %v1222
        %v1225 = vunpack.c.h.bf16 1065369472
        %v1226 = vunpack.c.l.bf16 1065369472
        %v1227 = vunpack.c.h.bf16 %v1223
        %v1228 = vunpack.c.l.bf16 %v1223
        %v1229 = vrcp.pop %v1227
        %v1230 = vmul.f32 %v1225, %v1229
        %v1231 = vrcp.pop %v1228
        %v1232 = vmul.f32 %v1226, %v1231
        %v1233 = vpack.c.bf16 %v1230, %v1232
        %v1234 = vunpack.c.h.bf16 %v1224
        %v1235 = vunpack.c.l.bf16 %v1224
        %v1236 = vrcp.pop %v1234
        %v1237 = vmul.f32 %v1225, %v1236
        %v1238 = vrcp.pop %v1235
        %v1239 = vmul.f32 %v1226, %v1238
        %v1240 = vpack.c.bf16 %v1237, %v1239
        %v1241 = vunpack.c.l.bf16 %v1233
        %v1242 = vunpack.c.l.bf16 %v1240
        %v1243 = vmul.f32 %v1203, %v1241
        %v1244 = vmul.f32 %v1204, %v1242
        %v1245 = vpack.c.bf16 %v1244, %v1243
        %v1246 = vld [vmem:[%s11] sm:$0xf]
        %v1247 = vld [vmem:[%s11 + $0x4] sm:$0xf]
        %v1248 = vld [vmem:[%s11 + $0x8] sm:$0xf]
        %v1249 = vld [vmem:[%s11 + $0xc] sm:$0xf]
        %v1250 = vld [vmem:[%s11 + $0x10] sm:$0xf]
        %v1251 = vld [vmem:[%s11 + $0x14] sm:$0xf]
        %v1252 = vld [vmem:[%s11 + $0x18] sm:$0xf]
        %v1253 = vld [vmem:[%s11 + $0x1c] sm:$0xf]
        %v1254 = vld [vmem:[%s11 + $0x20] sm:$0xf]
        %v1255 = vld [vmem:[%s11 + $0x24] sm:$0xf]
        %v1256 = vld [vmem:[%s11 + $0x28] sm:$0xf]
        %v1257 = vld [vmem:[%s11 + $0x2c] sm:$0xf]
        %v1258 = vld [vmem:[%s11 + $0x30] sm:$0xf]
        %v1259 = vld [vmem:[%s11 + $0x34] sm:$0xf]
        %v1260 = vld [vmem:[%s11 + $0x38] sm:$0xf]
        %v1261 = vld [vmem:[%s11 + $0x3c] sm:$0xf]
        %v1262 = vld [vmem:[%s12] sm:$0x1]
        %v1264 = vperm.slane %v1262, 0
        %v1282 = vunpack.c.l.b16 %v1246
        %v1283 = vunpack.c.l.b16 %v1247
        %v1284 = vunpack.c.l.b16 %v1248
        %v1285 = vunpack.c.l.b16 %v1249
        %v1286 = vunpack.c.l.b16 %v1250
        %v1287 = vunpack.c.l.b16 %v1251
        %v1288 = vunpack.c.l.b16 %v1252
        %v1289 = vunpack.c.l.b16 %v1253
        %v1290 = vunpack.c.l.b16 %v1254
        %v1291 = vunpack.c.l.b16 %v1255
        %v1292 = vunpack.c.l.b16 %v1256
        %v1293 = vunpack.c.l.b16 %v1257
        %v1294 = vunpack.c.l.b16 %v1258
        %v1295 = vunpack.c.l.b16 %v1259
        %v1296 = vunpack.c.l.b16 %v1260
        %v1297 = vunpack.c.l.b16 %v1261
        %v1298 = vpack.c.b16 %v1283, %v1282
        %v1299 = vpack.c.b16 %v1285, %v1284
        %v1300 = vpack.c.b16 %v1287, %v1286
        %v1301 = vpack.c.b16 %v1289, %v1288
        %v1302 = vpack.c.b16 %v1291, %v1290
        %v1303 = vpack.c.b16 %v1293, %v1292
        %v1304 = vpack.c.b16 %v1295, %v1294
        %v1305 = vpack.c.b16 %v1297, %v1296
        %1314 = vmatpush.bf16.msra.mxu0 %v1305
        %1315 = vmatpush.bf16.msra.mxu0 %v1304
        %1316 = vmatpush.bf16.msra.mxu0 %v1303
        %1317 = vmatpush.bf16.msra.mxu0 %v1302
        %1318 = vmatpush.bf16.msra.mxu0 %v1301
        %1319 = vmatpush.bf16.msra.mxu0 %v1300
        %1320 = vmatpush.bf16.msra.mxu0 %v1299
        %1321 = vmatpush.bf16.msra.mxu0 %v1298
        %1322 = vmatmul.bf16.gmra.mxu0 %v1245
        %v1323 = vpop.f32.mrf.mxu0
        %v1324 = vadd.f32 %v1264, %v1323
        %v1325 = vpop.f32.mrf.mxu0
        %v1326 = vadd.f32 %v1264, %v1325
        %1327 = vdwg.mxu0
        %v1328 = vadd.f32 %v1105, %v1324
        %v1329 = vadd.f32 %v1106, %v1326
        %1330 = vst.msk [vmem:[%s449] sm:$0xff] %vm463, %v1328
        %1331 = vst.msk [vmem:[%s449 + $0x8] sm:$0xff] %vm463, %v1329
        %s1332 = sand.u32 %s314, 1
        %s1333 = scalar_lea.sflag [#allocation5], %s1332
        %s1334 = sand.u32 %s314, 1
        %s1335 = smul.addr %s1334, 16
        %s1336 = scalar_lea.vmem [#allocation6], %s1335
        // Predicated region
        $region77: #{tpu_custom_call.1} parent=71 // pred_check
          %p1337 = pneg %p324
        $region78: #{tpu_custom_call.1} parent=71 // pred_check_branch
          %1339 = sbr.rel (%p1337) target = $region80
        $region79: #{tpu_custom_call.1} parent=71 // pred_region
          %s1340 = smul.u32 2, %s28
          %1342 = vsyncadd %s1333, 0
          %s1343 = smul.addr %s1340, 8
          %s1344 = scalar_lea.hbm %s13, %s1343
          %s1345 = sshll.u32 %s1336, 4
          %s1346 = int_to_ptr.vmem [resolvable:$true] %s1345
          %s1347 = sshll.u32 %s1344, 4
          %s1348 = int_to_ptr.hbm [resolvable:$true] %s1347
          %1353 = dma.vmem_to_hbm [thread:$0]  %s1346, 256, %s1348, %s1333, 128, 128, 8
        $region80: #{tpu_custom_call.1} parent=71 // pred_fallthru
          _
      $region72: #{tpu_custom_call.1} parent=5 // pred_fallthru
        _
      %p1354 = scmp.le.s32.totalorder 2, %s23
      // Predicated region
      $region81: #{tpu_custom_call.1} parent=5 // pred_check
        %p1355 = pneg %p1354
      $region82: #{tpu_custom_call.1} parent=5 // pred_check_branch
        %1357 = sbr.rel (%p1355) target = $region84
      $region83: #{tpu_custom_call.1} parent=5 // pred_region
        %s1358 = ssub.s32 %s23, 2
        // Predicated region
        $region85: #{tpu_custom_call.1} parent=83 // pred_check
          %p1359 = pneg %p330
        $region86: #{tpu_custom_call.1} parent=83 // pred_check_branch
          %1361 = sbr.rel (%p1359) target = $region88
        $region87: #{tpu_custom_call.1} parent=83 // pred_region
          %s1362 = sand.u32 %s315, 1
          %s1363 = scalar_lea.sflag [#allocation5], %s1362
          %s1364 = sand.u32 %s315, 1
          %s1365 = smul.addr %s1364, 16
          %s1366 = scalar_lea.vmem [#allocation6], %s1365
          %1368 = dma.done %s1363, 256
        $region88: #{tpu_custom_call.1} parent=83 // pred_fallthru
          _
      $region84: #{tpu_custom_call.1} parent=5 // pred_fallthru
        _
    $region6: #{tpu_custom_call.1} parent=1 // loop_footer
      %s27 = sadd.s32 1, %s23
    $region7: #{tpu_custom_call.1} parent=1 // loop_footer_branch
      %22 = sbr.rel target = $region3
    $region8: #{tpu_custom_call.1} parent=1 // loop_exit
      _
    %1369 = vsyncpa [#allocation4], 1
    %s1370 = scalar_lea.sflag [#allocation4], 1
    %1371 = vsyncpa %s1370, 1
    %1372 = vsyncpa [#allocation5], 1
    %s1373 = scalar_lea.sflag [#allocation5], 1
    %1374 = vsyncpa %s1373, 1

</llo_original>
